<compile_context>
chip_gen: v6e
topology: v6e:2x2x1
jax: 0.10.0
libtpu: 0.0.40
codegen_flags: <defaults>
</compile_context>

<pallas_src>
import math

import jax
import jax.numpy as jnp
from jax.experimental import pallas as pl
from jax.experimental.pallas import tpu as pltpu

# ---- small demo shapes (original: S=500, F=vision_fea_dim, H=encoder_fea_dim) ----
B = 2            # batch
S = 8            # num patches (original module hardcodes 500)
F = 16           # vision_fea_dim
H = 32           # encoder_fea_dim (d_model)
NHEAD = 4        # vision_nhead
HD = H // NHEAD
FF = 32          # dim_feedforward (== encoder_fea_dim in the config)
NLAYERS = 2      # vision_tf_num_layers
T = S + 1        # sequence length incl. CLS
T_PAD = 16       # padded sequence length (multiple of 8 sublanes)
EPS = 1e-5       # PyTorch LayerNorm default
H2, H4, H8 = H // 2, H // 4, H // 8
QKV_PAD = 3 * 128   # q/k/v each in its own 128-lane slab


# ---------------------------------------------------------------- helpers (in-kernel)
def _layernorm(x, g, b):
    mu = jnp.mean(x, axis=-1, keepdims=True)
    var = jnp.mean((x - mu) ** 2, axis=-1, keepdims=True)
    return (x - mu) * jax.lax.rsqrt(var + EPS) * g + b


def _gelu(x):
    # TODO(synk): PyTorch activation='gelu' is the exact erf form; tanh approximation used here.
    c = math.sqrt(2.0 / math.pi)
    return 0.5 * x * (1.0 + jnp.tanh(c * (x + 0.044715 * x * x * x)))


# ---------------------------------------------------------------- fused forward kernel
def _fused_kernel(vis_ref, pe_mult_ref, pe_add_ref, mbias_ref, mean_sel_ref,
                  projw_ref, projb_ref,
                  wqkv_ref, bqkv_ref, wo_ref, bo_ref,
                  g1_ref, be1_ref, w1_ref, b1_ref, w2_ref, b2_ref, g2_ref, be2_ref,
                  lng_ref, lnb_ref,
                  cw0_ref, cb0_ref, cw1_ref, cb1_ref, cw2_ref, cb2_ref,
                  cw3_ref, cb3_ref,
                  feat_ref, pred_ref):
    # ---- PositionEncodingTraining: proj -> (CLS cat + pos add) as an affine ----
    vis = vis_ref[...].astype(jnp.bfloat16)                               # (T_PAD, F)
    proj = jnp.dot(vis, projw_ref[...],
                   preferred_element_type=jnp.float32) + projb_ref[...]   # (T_PAD, H)
    x = proj * pe_mult_ref[...] + pe_add_ref[...]                         # (T_PAD, H) f32

    mbias = mbias_ref[...]                                                # (1, 1, T_PAD)
    scale = 1.0 / math.sqrt(HD)

    # ---- TransformerEncoder: NLAYERS post-norm layers, gelu, key-padding mask ----
    for l in range(NLAYERS):
        # fused qkv projection; q/k/v land at lane offsets 0/128/256 (free slices)
        qkv = jnp.dot(x.astype(jnp.bfloat16), wqkv_ref[l],
                      preferred_element_type=jnp.float32) + bqkv_ref[l]   # (T_PAD, 384)
        qs = qkv[:, 0:H]
        ks = qkv[:, 128:128 + H]
        vs = qkv[:, 256:256 + H]

        # heads stacked on a leading (non-tiled) axis -> batched einsums
        q = jnp.stack([qs[:, h * HD:(h + 1) * HD] for h in range(NHEAD)],
                      axis=0).astype(jnp.bfloat16)                        # (NHEAD, T_PAD, HD)
        k = jnp.stack([ks[:, h * HD:(h + 1) * HD] for h in range(NHEAD)],
                      axis=0).astype(jnp.bfloat16)
        v = jnp.stack([vs[:, h * HD:(h + 1) * HD] for h in range(NHEAD)],
                      axis=0).astype(jnp.bfloat16)

        s = jnp.einsum('hqd,hkd->hqk', q, k,
                       preferred_element_type=jnp.float32) * scale + mbias  # (NHEAD, T_PAD, T_PAD)
        s = s - jnp.max(s, axis=-1, keepdims=True)                          # ONE softmax
        p = jnp.exp(s)
        p = p * pl.reciprocal(jnp.sum(p, axis=-1, keepdims=True), approx=True)
        ctx = jnp.einsum('hqk,hkd->hqd', p.astype(jnp.bfloat16), v,
                         preferred_element_type=jnp.float32)                # (NHEAD, T_PAD, HD)

        # merge heads back onto lanes and apply the FULL output projection in one dot
        ctx2d = jnp.concatenate([ctx[h] for h in range(NHEAD)], axis=-1)    # (T_PAD, H)
        attn = jnp.dot(ctx2d.astype(jnp.bfloat16), wo_ref[l],
                       preferred_element_type=jnp.float32) + bo_ref[l]      # (T_PAD, H)

        x = _layernorm(x + attn, g1_ref[l], be1_ref[l])

        hmid = _gelu(jnp.dot(x.astype(jnp.bfloat16), w1_ref[l],
                             preferred_element_type=jnp.float32) + b1_ref[l])
        ff = jnp.dot(hmid.astype(jnp.bfloat16), w2_ref[l],
                     preferred_element_type=jnp.float32) + b2_ref[l]
        x = _layernorm(x + ff, g2_ref[l], be2_ref[l])

    # ---- VisionEncoder tail: LayerNorm -> mean over the T valid tokens ----
    xn = _layernorm(x, lng_ref[...], lnb_ref[...])                        # (T_PAD, H)
    # mean over [CLS + patches] as a selector matmul (selector holds 1/T at valid rows)
    xm = jnp.dot(mean_sel_ref[...], xn, preferred_element_type=jnp.float32)   # (1, H)

    # lane-dense feature slab: valid lanes [0:H), rest zero
    feat_row = jnp.concatenate([xm, jnp.zeros((1, 128 - H), jnp.float32)], axis=-1)
    feat_ref[...] = feat_row.reshape(1, 1, 128)

    # ---- BaseClassifier MLP: H -> H/2 -> H/4 -> H/8 -> 1 (ReLU, dropout=identity) ----
    # Weights padded to 128-wide lane slabs (zeros outside the valid block).
    # TODO(synk): BaseClassifier source not provided; assumed Linear->ReLU->Dropout stack + final Linear.
    h0 = jnp.maximum(jnp.dot(xm, cw0_ref[...],
                             preferred_element_type=jnp.float32) + cb0_ref[...], 0.0)
    h1 = jnp.maximum(jnp.dot(h0, cw1_ref[...],
                             preferred_element_type=jnp.float32) + cb1_ref[...], 0.0)
    h2 = jnp.maximum(jnp.dot(h1, cw2_ref[...],
                             preferred_element_type=jnp.float32) + cb2_ref[...], 0.0)
    pred = jnp.sum(h2 * cw3_ref[...], axis=-1, keepdims=True) + cb3_ref[...]  # (1, 1)
    pred_ref[...] = jnp.broadcast_to(pred, (1, 1, 128))          # lane-dense output slab


# ---------------------------------------------------------------- pallas_call wrapper
def _const_spec(shape):
    nd = len(shape)
    return pl.BlockSpec(shape, lambda b, nd=nd: (0,) * nd)     # grid-invariant block


def _fused_forward(vis_flat, mbias, kp):
    in_specs = [
        pl.BlockSpec((T_PAD, F), lambda b: (b, 0)),            # vis (per batch)
        _const_spec((T_PAD, 1)),                               # pe_mult
        _const_spec((T_PAD, H)),                               # pe_add
        pl.BlockSpec((1, 1, T_PAD), lambda b: (b, 0, 0)),      # mask bias (per batch)
        _const_spec((1, T_PAD)),                               # mean selector
        _const_spec((F, H)), _const_spec((1, H)),              # proj w/b
        _const_spec((NLAYERS, H, QKV_PAD)), _const_spec((NLAYERS, 1, QKV_PAD)),
        _const_spec((NLAYERS, H, H)), _const_spec((NLAYERS, 1, H)),      # wo, bo
        _const_spec((NLAYERS, 1, H)), _const_spec((NLAYERS, 1, H)),      # g1, be1
        _const_spec((NLAYERS, H, FF)), _const_spec((NLAYERS, 1, FF)),    # w1, b1
        _const_spec((NLAYERS, FF, H)), _const_spec((NLAYERS, 1, H)),     # w2, b2
        _const_spec((NLAYERS, 1, H)), _const_spec((NLAYERS, 1, H)),      # g2, be2
        _const_spec((1, H)), _const_spec((1, H)),                        # final LN
        _const_spec((H, 128)), _const_spec((1, 128)),                    # cw0, cb0
        _const_spec((128, 128)), _const_spec((1, 128)),                  # cw1, cb1
        _const_spec((128, 128)), _const_spec((1, 128)),                  # cw2, cb2
        _const_spec((1, 128)), _const_spec((1, 1)),                      # cw3, cb3
    ]
    out_specs = (pl.BlockSpec((1, 1, 128), lambda b: (b, 0, 0)),
                 pl.BlockSpec((1, 1, 128), lambda b: (b, 0, 0)))
    return pl.pallas_call(
        _fused_kernel,
        out_shape=(jax.ShapeDtypeStruct((B, 1, 128), jnp.float32),
                   jax.ShapeDtypeStruct((B, 1, 128), jnp.float32)),
        grid_spec=pltpu.PrefetchScalarGridSpec(
            num_scalar_prefetch=0, grid=(B,),
            in_specs=in_specs, out_specs=out_specs),
        compiler_params=pltpu.CompilerParams(
            dimension_semantics=("parallel",)),     # shards batch across TCs on v7x
    )(vis_flat, kp["pe_mult"], kp["pe_add"], mbias, kp["mean_sel"],
      kp["proj_w"], kp["proj_b"],
      kp["wqkv"], kp["bqkv"], kp["wo"], kp["bo"],
      kp["g1"], kp["be1"], kp["w1"], kp["b1"], kp["w2"], kp["b2"],
      kp["g2"], kp["be2"],
      kp["ln_g"], kp["ln_b"],
      kp["cw0"], kp["cb0"], kp["cw1"], kp["cb1"],
      kp["cw2"], kp["cb2"], kp["cw3"], kp["cb3"])


# ---------------------------------------------------------------- parameter init (deterministic, synthetic)
def init_params(key):
    keys = iter(jax.random.split(key, 64))

    def lin(kin, kout, scale=0.05):
        w = jax.random.normal(next(keys), (kin, kout), jnp.float32) * scale
        b = jax.random.normal(next(keys), (1, kout), jnp.float32) * 0.01
        return w, b

    params = {}
    # PositionEncodingTraining
    params["proj_w"], params["proj_b"] = lin(F, H)
    params["cls"] = jnp.ones((1, H), jnp.float32)             # nn.Parameter(torch.ones(1,1,H))
    params["pos"] = jnp.zeros((T, H), jnp.float32)            # nn.Parameter(torch.zeros(1,T,H))

    # Transformer encoder layers
    layers = []
    for _ in range(NLAYERS):
        lp = {}
        lp["wq"], lp["bq"] = lin(H, H)
        lp["wk"], lp["bk"] = lin(H, H)
        lp["wv"], lp["bv"] = lin(H, H)
        lp["wo"], lp["bo"] = lin(H, H)
        lp["w1"], lp["b1"] = lin(H, FF)
        lp["w2"], lp["b2"] = lin(FF, H)
        lp["g1"] = jnp.ones((1, H), jnp.float32)
        lp["be1"] = jnp.zeros((1, H), jnp.float32)
        lp["g2"] = jnp.ones((1, H), jnp.float32)
        lp["be2"] = jnp.zeros((1, H), jnp.float32)
        layers.append(lp)
    params["layers"] = layers

    # VisionEncoder final LayerNorm
    params["ln_g"] = jnp.ones((1, H), jnp.float32)
    params["ln_b"] = jnp.zeros((1, H), jnp.float32)

    # BaseClassifier MLP: H -> H/2 -> H/4 -> H/8 -> 1
    params["cw0"], params["cb0"] = lin(H, H2)
    params["cw1"], params["cb1"] = lin(H2, H4)
    params["cw2"], params["cb2"] = lin(H4, H8)
    w3, b3 = lin(H8, 1)
    params["cw3"] = w3.T                                      # (1, H/8) row for in-kernel reduction
    params["cb3"] = b3                                        # (1, 1)
    return params


# ---------------------------------------------------------------- pack params for the fused kernel
def pack_params(params):
    """Stack per-layer weights, fuse+lane-pad QKV, precompute pos-encode affine,
    mean selector and lane-padded classifier weights."""
    kp = {}
    bf16 = jnp.bfloat16

    kp["proj_w"] = params["proj_w"].astype(bf16)
    kp["proj_b"] = params["proj_b"]

    # CLS concat + position-embedding add as an affine on the projection output.
    # Row layout per batch: [patch 0 .. S-1, CLS, pad ...]
    pos, cls = params["pos"], params["cls"]
    pe_mult = jnp.zeros((T_PAD, 1), jnp.float32).at[:S].set(1.0)          # kill proj on CLS/pad rows
    pe_add = jnp.zeros((T_PAD, H), jnp.float32)
    pe_add = pe_add.at[:S].set(pos[1:T])                                  # patch positions
    pe_add = pe_add.at[S].set(cls[0] + pos[0])                            # CLS token + its position
    kp["pe_mult"] = pe_mult                                               # (T_PAD, 1)
    kp["pe_add"] = pe_add                                                 # (T_PAD, H)

    # Per-batch mean over the T valid tokens (reference averages CLS + all patches).
    row_valid = (jnp.arange(T_PAD) < T).astype(jnp.float32) / float(T)    # (T_PAD,)
    kp["mean_sel"] = row_valid[None, :]                                   # (1, T_PAD)

    # Fused QKV weight padded so q/k/v each occupy their own 128-lane slab.
    L = params["layers"]

    def qkv_pad(lp):
        w = jnp.zeros((H, QKV_PAD), jnp.float32)
        w = w.at[:, 0:H].set(lp["wq"]).at[:, 128:128 + H].set(lp["wk"]) \
             .at[:, 256:256 + H].set(lp["wv"])
        b = jnp.zeros((1, QKV_PAD), jnp.float32)
        b = b.at[:, 0:H].set(lp["bq"]).at[:, 128:128 + H].set(lp["bk"]) \
             .at[:, 256:256 + H].set(lp["bv"])
        return w, b

    wq_list, bq_list = zip(*(qkv_pad(lp) for lp in L))
    kp["wqkv"] = jnp.stack(wq_list).astype(bf16)                          # (NL, H, 384)
    kp["bqkv"] = jnp.stack(bq_list)                                       # (NL, 1, 384)
    kp["wo"] = jnp.stack([lp["wo"] for lp in L]).astype(bf16)             # (NL, H, H)
    kp["bo"] = jnp.stack([lp["bo"] for lp in L])
    kp["g1"] = jnp.stack([lp["g1"] for lp in L])
    kp["be1"] = jnp.stack([lp["be1"] for lp in L])
    kp["w1"] = jnp.stack([lp["w1"] for lp in L]).astype(bf16)             # (NL, H, FF)
    kp["b1"] = jnp.stack([lp["b1"] for lp in L])
    kp["w2"] = jnp.stack([lp["w2"] for lp in L]).astype(bf16)             # (NL, FF, H)
    kp["b2"] = jnp.stack([lp["b2"] for lp in L])
    kp["g2"] = jnp.stack([lp["g2"] for lp in L])
    kp["be2"] = jnp.stack([lp["be2"] for lp in L])

    kp["ln_g"], kp["ln_b"] = params["ln_g"], params["ln_b"]

    # Classifier weights/biases zero-padded to 128-wide lane slabs (full-vreg dots).
    kp["cw0"] = jnp.zeros((H, 128), jnp.float32).at[:, :H2].set(params["cw0"])
    kp["cb0"] = jnp.zeros((1, 128), jnp.float32).at[:, :H2].set(params["cb0"])
    kp["cw1"] = jnp.zeros((128, 128), jnp.float32).at[:H2, :H4].set(params["cw1"])
    kp["cb1"] = jnp.zeros((1, 128), jnp.float32).at[:, :H4].set(params["cb1"])
    kp["cw2"] = jnp.zeros((128, 128), jnp.float32).at[:H4, :H8].set(params["cw2"])
    kp["cb2"] = jnp.zeros((1, 128), jnp.float32).at[:, :H8].set(params["cb2"])
    kp["cw3"] = jnp.zeros((1, 128), jnp.float32).at[:, :H8].set(params["cw3"])
    kp["cb3"] = params["cb3"]                                             # (1, 1)
    return kp


# ---------------------------------------------------------------- full forward (wrapper)
def vision_pretrain_forward(vision, label, key_padding_mask, kp):
    # Pad the patch sequence to T_PAD rows per batch in [patch, CLS, pad] layout and flatten.
    vis_pad = jnp.zeros((B, T_PAD, F), jnp.float32).at[:, :S, :].set(vision)
    vis_flat = vis_pad.reshape(B * T_PAD, F)

    # key_padding_mask: (B, T) over [CLS, patches], True = ignore.
    # Reorder to the kernel row layout, mask the synthetic pad rows, make additive bias.
    kpm = jnp.concatenate([key_padding_mask[:, 1:T],          # patches
                           key_padding_mask[:, 0:1],          # CLS
                           jnp.ones((B, T_PAD - T), jnp.bool_)], axis=1)   # pad rows
    mbias = jnp.where(kpm, -1e9, 0.0).astype(jnp.float32)[:, None, :]      # (B, 1, T_PAD)

    feat_slab, pred_slab = _fused_forward(vis_flat, mbias, kp)   # (B,1,128), (B,1,128)
    x_feat = feat_slab[:, :, :H]                              # mean with keepdim -> (B, 1, H)
    pred = pred_slab[:, 0, 0]                                 # .squeeze() -> (B,)

    # MSELoss(pred.squeeze(), label.squeeze())
    loss = jnp.mean((pred - label.reshape(-1)) ** 2)
    return pred, x_feat, loss


# ---------------------------------------------------------------- main
if __name__ == "__main__":
    root = jax.random.PRNGKey(0)
    k_param, k_vis, k_lab = jax.random.split(root, 3)

    params = init_params(k_param)
    kp = pack_params(params)

    vision = jax.random.normal(k_vis, (B, S, F), jnp.float32)
    label = jax.random.normal(k_lab, (B,), jnp.float32)
    # padding mask over the (CLS + patches) sequence; batch 1 has 2 padded tail positions
    key_padding_mask = jnp.zeros((B, T), jnp.bool_).at[1, T - 2:].set(True)

    fwd = jax.jit(lambda v, l, m: vision_pretrain_forward(v, l, m, kp))
    pred, x_feat, loss = fwd(vision, label, key_padding_mask)
    jax.block_until_ready((pred, x_feat, loss))

    assert pred.shape == (B,)
    assert x_feat.shape == (B, 1, H)
    assert loss.shape == ()
    assert bool(jnp.all(jnp.isfinite(pred))) and bool(jnp.isfinite(loss))
    print("KERNEL_OK")
</pallas_src>

<mosaic_0001>
module attributes {stable_mosaic.version = 11 : i64} {
  func.func @_fused_kernel(%arg0: i32, %arg1: memref<16x16xf32, #tpu.memory_space<vmem>>, %arg2: memref<16x1xf32, #tpu.memory_space<vmem>>, %arg3: memref<16x32xf32, #tpu.memory_space<vmem>>, %arg4: memref<1x1x16xf32, #tpu.memory_space<vmem>>, %arg5: memref<1x16xf32, #tpu.memory_space<vmem>>, %arg6: memref<16x32xbf16, #tpu.memory_space<vmem>>, %arg7: memref<1x32xf32, #tpu.memory_space<vmem>>, %arg8: memref<2x32x384xbf16, #tpu.memory_space<vmem>>, %arg9: memref<2x1x384xf32, #tpu.memory_space<vmem>>, %arg10: memref<2x32x32xbf16, #tpu.memory_space<vmem>>, %arg11: memref<2x1x32xf32, #tpu.memory_space<vmem>>, %arg12: memref<2x1x32xf32, #tpu.memory_space<vmem>>, %arg13: memref<2x1x32xf32, #tpu.memory_space<vmem>>, %arg14: memref<2x32x32xbf16, #tpu.memory_space<vmem>>, %arg15: memref<2x1x32xf32, #tpu.memory_space<vmem>>, %arg16: memref<2x32x32xbf16, #tpu.memory_space<vmem>>, %arg17: memref<2x1x32xf32, #tpu.memory_space<vmem>>, %arg18: memref<2x1x32xf32, #tpu.memory_space<vmem>>, %arg19: memref<2x1x32xf32, #tpu.memory_space<vmem>>, %arg20: memref<1x32xf32, #tpu.memory_space<vmem>>, %arg21: memref<1x32xf32, #tpu.memory_space<vmem>>, %arg22: memref<32x128xf32, #tpu.memory_space<vmem>>, %arg23: memref<1x128xf32, #tpu.memory_space<vmem>>, %arg24: memref<128x128xf32, #tpu.memory_space<vmem>>, %arg25: memref<1x128xf32, #tpu.memory_space<vmem>>, %arg26: memref<128x128xf32, #tpu.memory_space<vmem>>, %arg27: memref<1x128xf32, #tpu.memory_space<vmem>>, %arg28: memref<1x128xf32, #tpu.memory_space<vmem>>, %arg29: memref<1x1xf32, #tpu.memory_space<vmem>>, %arg30: memref<1x1x128xf32, #tpu.memory_space<vmem>>, %arg31: memref<1x1x128xf32, #tpu.memory_space<vmem>>) attributes {dimension_semantics = [#tpu.dimension_semantics<parallel>], iteration_bounds = array<i64: 2>, scalar_prefetch = 0 : i64, scratch_operands = 0 : i64, tpu.core_type = #tpu.core_type<tc>, window_params = [{transform_indices = @transform_0, window_bounds = array<i64: 16, 16>}, {pipeline_mode = #tpu.pipeline_mode<synchronous>, transform_indices = @transform_1, window_bounds = array<i64: 16, 1>}, {pipeline_mode = #tpu.pipeline_mode<synchronous>, transform_indices = @transform_2, window_bounds = array<i64: 16, 32>}, {transform_indices = @transform_3, window_bounds = array<i64: 1, 1, 16>}, {pipeline_mode = #tpu.pipeline_mode<synchronous>, transform_indices = @transform_4, window_bounds = array<i64: 1, 16>}, {pipeline_mode = #tpu.pipeline_mode<synchronous>, transform_indices = @transform_5, window_bounds = array<i64: 16, 32>}, {pipeline_mode = #tpu.pipeline_mode<synchronous>, transform_indices = @transform_6, window_bounds = array<i64: 1, 32>}, {pipeline_mode = #tpu.pipeline_mode<synchronous>, transform_indices = @transform_7, window_bounds = array<i64: 2, 32, 384>}, {pipeline_mode = #tpu.pipeline_mode<synchronous>, transform_indices = @transform_8, window_bounds = array<i64: 2, 1, 384>}, {pipeline_mode = #tpu.pipeline_mode<synchronous>, transform_indices = @transform_9, window_bounds = array<i64: 2, 32, 32>}, {pipeline_mode = #tpu.pipeline_mode<synchronous>, transform_indices = @transform_10, window_bounds = array<i64: 2, 1, 32>}, {pipeline_mode = #tpu.pipeline_mode<synchronous>, transform_indices = @transform_11, window_bounds = array<i64: 2, 1, 32>}, {pipeline_mode = #tpu.pipeline_mode<synchronous>, transform_indices = @transform_12, window_bounds = array<i64: 2, 1, 32>}, {pipeline_mode = #tpu.pipeline_mode<synchronous>, transform_indices = @transform_13, window_bounds = array<i64: 2, 32, 32>}, {pipeline_mode = #tpu.pipeline_mode<synchronous>, transform_indices = @transform_14, window_bounds = array<i64: 2, 1, 32>}, {pipeline_mode = #tpu.pipeline_mode<synchronous>, transform_indices = @transform_15, window_bounds = array<i64: 2, 32, 32>}, {pipeline_mode = #tpu.pipeline_mode<synchronous>, transform_indices = @transform_16, window_bounds = array<i64: 2, 1, 32>}, {pipeline_mode = #tpu.pipeline_mode<synchronous>, transform_indices = @transform_17, window_bounds = array<i64: 2, 1, 32>}, {pipeline_mode = #tpu.pipeline_mode<synchronous>, transform_indices = @transform_18, window_bounds = array<i64: 2, 1, 32>}, {pipeline_mode = #tpu.pipeline_mode<synchronous>, transform_indices = @transform_19, window_bounds = array<i64: 1, 32>}, {pipeline_mode = #tpu.pipeline_mode<synchronous>, transform_indices = @transform_20, window_bounds = array<i64: 1, 32>}, {pipeline_mode = #tpu.pipeline_mode<synchronous>, transform_indices = @transform_21, window_bounds = array<i64: 32, 128>}, {pipeline_mode = #tpu.pipeline_mode<synchronous>, transform_indices = @transform_22, window_bounds = array<i64: 1, 128>}, {pipeline_mode = #tpu.pipeline_mode<synchronous>, transform_indices = @transform_23, window_bounds = array<i64: 128, 128>}, {pipeline_mode = #tpu.pipeline_mode<synchronous>, transform_indices = @transform_24, window_bounds = array<i64: 1, 128>}, {pipeline_mode = #tpu.pipeline_mode<synchronous>, transform_indices = @transform_25, window_bounds = array<i64: 128, 128>}, {pipeline_mode = #tpu.pipeline_mode<synchronous>, transform_indices = @transform_26, window_bounds = array<i64: 1, 128>}, {pipeline_mode = #tpu.pipeline_mode<synchronous>, transform_indices = @transform_27, window_bounds = array<i64: 1, 128>}, {pipeline_mode = #tpu.pipeline_mode<synchronous>, transform_indices = @transform_28, window_bounds = array<i64: 1, 1>}, {transform_indices = @transform_29, window_bounds = array<i64: 1, 1, 128>}, {transform_indices = @transform_30, window_bounds = array<i64: 1, 1, 128>}]} {
    %c0 = arith.constant 0 : index
    %c0_0 = arith.constant 0 : index
    %0 = vector.load %arg1[%c0, %c0_0] : memref<16x16xf32, #tpu.memory_space<vmem>>, vector<16x16xf32>
    %1 = arith.truncf %0 : vector<16x16xf32> to vector<16x16xbf16>
    %c0_1 = arith.constant 0 : index
    %c0_2 = arith.constant 0 : index
    %2 = vector.load %arg6[%c0_1, %c0_2] : memref<16x32xbf16, #tpu.memory_space<vmem>>, vector<16x32xbf16>
    %cst = arith.constant dense<0.000000e+00> : vector<16x32xf32>
    %3 = tpu.matmul %1, %2, %cst {dimension_numbers = #tpu.dot_dimension_numbers<[1], [0], [0], [1], [0, 0, 1, 1], [], []>} : vector<16x16xbf16>, vector<16x32xbf16>, vector<16x32xf32> -> vector<16x32xf32>
    %c0_3 = arith.constant 0 : index
    %c0_4 = arith.constant 0 : index
    %4 = vector.load %arg7[%c0_3, %c0_4] : memref<1x32xf32, #tpu.memory_space<vmem>>, vector<1x32xf32>
    %5 = vector.broadcast %4 : vector<1x32xf32> to vector<16x32xf32>
    %6 = arith.addf %3, %5 : vector<16x32xf32>
    %c0_5 = arith.constant 0 : index
    %c0_6 = arith.constant 0 : index
    %7 = vector.load %arg2[%c0_5, %c0_6] : memref<16x1xf32, #tpu.memory_space<vmem>>, vector<16x1xf32>
    %8 = vector.broadcast %7 : vector<16x1xf32> to vector<16x32xf32>
    %9 = arith.mulf %6, %8 : vector<16x32xf32>
    %c0_7 = arith.constant 0 : index
    %c0_8 = arith.constant 0 : index
    %10 = vector.load %arg3[%c0_7, %c0_8] : memref<16x32xf32, #tpu.memory_space<vmem>>, vector<16x32xf32>
    %11 = arith.addf %9, %10 : vector<16x32xf32>
    %c0_9 = arith.constant 0 : index
    %c0_10 = arith.constant 0 : index
    %c0_11 = arith.constant 0 : index
    %12 = vector.load %arg4[%c0_9, %c0_10, %c0_11] : memref<1x1x16xf32, #tpu.memory_space<vmem>>, vector<1x1x16xf32>
    %13 = arith.truncf %11 : vector<16x32xf32> to vector<16x32xbf16>
    %c0_12 = arith.constant 0 : index
    %c0_13 = arith.constant 0 : index
    %c0_14 = arith.constant 0 : index
    %14 = vector.load %arg8[%c0_12, %c0_13, %c0_14] : memref<2x32x384xbf16, #tpu.memory_space<vmem>>, vector<1x32x384xbf16>
    %15 = vector.shape_cast %14 : vector<1x32x384xbf16> to vector<32x384xbf16>
    %cst_15 = arith.constant dense<0.000000e+00> : vector<16x384xf32>
    %16 = tpu.matmul %13, %15, %cst_15 {dimension_numbers = #tpu.dot_dimension_numbers<[1], [0], [0], [1], [0, 0, 1, 1], [], []>} : vector<16x32xbf16>, vector<32x384xbf16>, vector<16x384xf32> -> vector<16x384xf32>
    %c0_16 = arith.constant 0 : index
    %c0_17 = arith.constant 0 : index
    %c0_18 = arith.constant 0 : index
    %17 = vector.load %arg9[%c0_16, %c0_17, %c0_18] : memref<2x1x384xf32, #tpu.memory_space<vmem>>, vector<1x1x384xf32>
    %18 = vector.shape_cast %17 : vector<1x1x384xf32> to vector<1x384xf32>
    %19 = vector.broadcast %18 : vector<1x384xf32> to vector<16x384xf32>
    %20 = arith.addf %16, %19 : vector<16x384xf32>
    %21 = vector.extract_strided_slice %20 {offsets = [0, 0], sizes = [16, 32], strides = [1, 1]} : vector<16x384xf32> to vector<16x32xf32>
    %22 = vector.extract_strided_slice %20 {offsets = [0, 128], sizes = [16, 32], strides = [1, 1]} : vector<16x384xf32> to vector<16x32xf32>
    %23 = vector.extract_strided_slice %20 {offsets = [0, 256], sizes = [16, 32], strides = [1, 1]} : vector<16x384xf32> to vector<16x32xf32>
    %24 = vector.extract_strided_slice %21 {offsets = [0, 0], sizes = [16, 8], strides = [1, 1]} : vector<16x32xf32> to vector<16x8xf32>
    %25 = vector.extract_strided_slice %21 {offsets = [0, 8], sizes = [16, 8], strides = [1, 1]} : vector<16x32xf32> to vector<16x8xf32>
    %26 = vector.extract_strided_slice %21 {offsets = [0, 16], sizes = [16, 8], strides = [1, 1]} : vector<16x32xf32> to vector<16x8xf32>
    %27 = vector.extract_strided_slice %21 {offsets = [0, 24], sizes = [16, 8], strides = [1, 1]} : vector<16x32xf32> to vector<16x8xf32>
    %28 = vector.shape_cast %24 : vector<16x8xf32> to vector<1x16x8xf32>
    %29 = vector.shape_cast %25 : vector<16x8xf32> to vector<1x16x8xf32>
    %30 = vector.shape_cast %26 : vector<16x8xf32> to vector<1x16x8xf32>
    %31 = vector.shape_cast %27 : vector<16x8xf32> to vector<1x16x8xf32>
    %32 = tpu.concatenate %28, %29, %30, %31 in 0 : vector<1x16x8xf32>, vector<1x16x8xf32>, vector<1x16x8xf32>, vector<1x16x8xf32> -> vector<4x16x8xf32>
    %33 = arith.truncf %32 : vector<4x16x8xf32> to vector<4x16x8xbf16>
    %34 = vector.extract_strided_slice %22 {offsets = [0, 0], sizes = [16, 8], strides = [1, 1]} : vector<16x32xf32> to vector<16x8xf32>
    %35 = vector.extract_strided_slice %22 {offsets = [0, 8], sizes = [16, 8], strides = [1, 1]} : vector<16x32xf32> to vector<16x8xf32>
    %36 = vector.extract_strided_slice %22 {offsets = [0, 16], sizes = [16, 8], strides = [1, 1]} : vector<16x32xf32> to vector<16x8xf32>
    %37 = vector.extract_strided_slice %22 {offsets = [0, 24], sizes = [16, 8], strides = [1, 1]} : vector<16x32xf32> to vector<16x8xf32>
    %38 = vector.shape_cast %34 : vector<16x8xf32> to vector<1x16x8xf32>
    %39 = vector.shape_cast %35 : vector<16x8xf32> to vector<1x16x8xf32>
    %40 = vector.shape_cast %36 : vector<16x8xf32> to vector<1x16x8xf32>
    %41 = vector.shape_cast %37 : vector<16x8xf32> to vector<1x16x8xf32>
    %42 = tpu.concatenate %38, %39, %40, %41 in 0 : vector<1x16x8xf32>, vector<1x16x8xf32>, vector<1x16x8xf32>, vector<1x16x8xf32> -> vector<4x16x8xf32>
    %43 = arith.truncf %42 : vector<4x16x8xf32> to vector<4x16x8xbf16>
    %44 = vector.extract_strided_slice %23 {offsets = [0, 0], sizes = [16, 8], strides = [1, 1]} : vector<16x32xf32> to vector<16x8xf32>
    %45 = vector.extract_strided_slice %23 {offsets = [0, 8], sizes = [16, 8], strides = [1, 1]} : vector<16x32xf32> to vector<16x8xf32>
    %46 = vector.extract_strided_slice %23 {offsets = [0, 16], sizes = [16, 8], strides = [1, 1]} : vector<16x32xf32> to vector<16x8xf32>
    %47 = vector.extract_strided_slice %23 {offsets = [0, 24], sizes = [16, 8], strides = [1, 1]} : vector<16x32xf32> to vector<16x8xf32>
    %48 = vector.shape_cast %44 : vector<16x8xf32> to vector<1x16x8xf32>
    %49 = vector.shape_cast %45 : vector<16x8xf32> to vector<1x16x8xf32>
    %50 = vector.shape_cast %46 : vector<16x8xf32> to vector<1x16x8xf32>
    %51 = vector.shape_cast %47 : vector<16x8xf32> to vector<1x16x8xf32>
    %52 = tpu.concatenate %48, %49, %50, %51 in 0 : vector<1x16x8xf32>, vector<1x16x8xf32>, vector<1x16x8xf32>, vector<1x16x8xf32> -> vector<4x16x8xf32>
    %53 = arith.truncf %52 : vector<4x16x8xf32> to vector<4x16x8xbf16>
    "tpu.trace_start"() <{level = 10 : i32, message = "hqd,hkd->hqk"}> : () -> ()
    %cst_19 = arith.constant dense<0.000000e+00> : vector<4x16x16xf32>
    %54 = tpu.matmul %33, %43, %cst_19 {dimension_numbers = #tpu.dot_dimension_numbers<[2], [2], [1], [1], [0, 0, 0, 1, 1, 1], [0], [0]>} : vector<4x16x8xbf16>, vector<4x16x8xbf16>, vector<4x16x16xf32> -> vector<4x16x16xf32>
    "tpu.trace_stop"() : () -> ()
    %cst_20 = arith.constant 0.353553385 : f32
    %55 = vector.broadcast %cst_20 : f32 to vector<4x16x16xf32>
    %56 = arith.mulf %54, %55 : vector<4x16x16xf32>
    %57 = vector.broadcast %12 : vector<1x1x16xf32> to vector<4x16x16xf32>
    %58 = arith.addf %56, %57 : vector<4x16x16xf32>
    %cst_21 = arith.constant dense<0xFF800000> : vector<4x16xf32>
    %59 = vector.multi_reduction <maximumf>, %58, %cst_21 [2] : vector<4x16x16xf32> to vector<4x16xf32>
    %60 = vector.shape_cast %59 : vector<4x16xf32> to vector<4x16x1xf32>
    %61 = vector.broadcast %60 : vector<4x16x1xf32> to vector<4x16x16xf32>
    %62 = arith.subf %58, %61 : vector<4x16x16xf32>
    %63 = math.exp %62 : vector<4x16x16xf32>
    %cst_22 = arith.constant dense<0.000000e+00> : vector<4x16xf32>
    %64 = vector.multi_reduction <add>, %63, %cst_22 [2] : vector<4x16x16xf32> to vector<4x16xf32>
    %65 = vector.shape_cast %64 : vector<4x16xf32> to vector<4x16x1xf32>
    %66 = tpu.reciprocal %65 {approx = true} : vector<4x16x1xf32> -> vector<4x16x1xf32>
    %67 = vector.broadcast %66 : vector<4x16x1xf32> to vector<4x16x16xf32>
    %68 = arith.mulf %63, %67 : vector<4x16x16xf32>
    %69 = arith.truncf %68 : vector<4x16x16xf32> to vector<4x16x16xbf16>
    "tpu.trace_start"() <{level = 10 : i32, message = "hqk,hkd->hqd"}> : () -> ()
    %cst_23 = arith.constant dense<0.000000e+00> : vector<4x16x8xf32>
    %70 = tpu.matmul %69, %53, %cst_23 {dimension_numbers = #tpu.dot_dimension_numbers<[2], [1], [1], [2], [0, 0, 0, 1, 1, 2], [0], [0]>} : vector<4x16x16xbf16>, vector<4x16x8xbf16>, vector<4x16x8xf32> -> vector<4x16x8xf32>
    "tpu.trace_stop"() : () -> ()
    %71 = vector.extract_strided_slice %70 {offsets = [0, 0, 0], sizes = [1, 16, 8], strides = [1, 1, 1]} : vector<4x16x8xf32> to vector<1x16x8xf32>
    %72 = vector.shape_cast %71 : vector<1x16x8xf32> to vector<16x8xf32>
    %73 = vector.extract_strided_slice %70 {offsets = [1, 0, 0], sizes = [1, 16, 8], strides = [1, 1, 1]} : vector<4x16x8xf32> to vector<1x16x8xf32>
    %74 = vector.shape_cast %73 : vector<1x16x8xf32> to vector<16x8xf32>
    %75 = vector.extract_strided_slice %70 {offsets = [2, 0, 0], sizes = [1, 16, 8], strides = [1, 1, 1]} : vector<4x16x8xf32> to vector<1x16x8xf32>
    %76 = vector.shape_cast %75 : vector<1x16x8xf32> to vector<16x8xf32>
    %77 = vector.extract_strided_slice %70 {offsets = [3, 0, 0], sizes = [1, 16, 8], strides = [1, 1, 1]} : vector<4x16x8xf32> to vector<1x16x8xf32>
    %78 = vector.shape_cast %77 : vector<1x16x8xf32> to vector<16x8xf32>
    %79 = tpu.concatenate %72, %74, %76, %78 in 1 : vector<16x8xf32>, vector<16x8xf32>, vector<16x8xf32>, vector<16x8xf32> -> vector<16x32xf32>
    %80 = arith.truncf %79 : vector<16x32xf32> to vector<16x32xbf16>
    %c0_24 = arith.constant 0 : index
    %c0_25 = arith.constant 0 : index
    %c0_26 = arith.constant 0 : index
    %81 = vector.load %arg10[%c0_24, %c0_25, %c0_26] : memref<2x32x32xbf16, #tpu.memory_space<vmem>>, vector<1x32x32xbf16>
    %82 = vector.shape_cast %81 : vector<1x32x32xbf16> to vector<32x32xbf16>
    %cst_27 = arith.constant dense<0.000000e+00> : vector<16x32xf32>
    %83 = tpu.matmul %80, %82, %cst_27 {dimension_numbers = #tpu.dot_dimension_numbers<[1], [0], [0], [1], [0, 0, 1, 1], [], []>} : vector<16x32xbf16>, vector<32x32xbf16>, vector<16x32xf32> -> vector<16x32xf32>
    %c0_28 = arith.constant 0 : index
    %c0_29 = arith.constant 0 : index
    %c0_30 = arith.constant 0 : index
    %84 = vector.load %arg11[%c0_28, %c0_29, %c0_30] : memref<2x1x32xf32, #tpu.memory_space<vmem>>, vector<1x1x32xf32>
    %85 = vector.shape_cast %84 : vector<1x1x32xf32> to vector<1x32xf32>
    %86 = vector.broadcast %85 : vector<1x32xf32> to vector<16x32xf32>
    %87 = arith.addf %83, %86 : vector<16x32xf32>
    %88 = arith.addf %11, %87 : vector<16x32xf32>
    %c0_31 = arith.constant 0 : index
    %c0_32 = arith.constant 0 : index
    %c0_33 = arith.constant 0 : index
    %89 = vector.load %arg12[%c0_31, %c0_32, %c0_33] : memref<2x1x32xf32, #tpu.memory_space<vmem>>, vector<1x1x32xf32>
    %90 = vector.shape_cast %89 : vector<1x1x32xf32> to vector<1x32xf32>
    %c0_34 = arith.constant 0 : index
    %c0_35 = arith.constant 0 : index
    %c0_36 = arith.constant 0 : index
    %91 = vector.load %arg13[%c0_34, %c0_35, %c0_36] : memref<2x1x32xf32, #tpu.memory_space<vmem>>, vector<1x1x32xf32>
    %92 = vector.shape_cast %91 : vector<1x1x32xf32> to vector<1x32xf32>
    %cst_37 = arith.constant dense<0.000000e+00> : vector<16xf32>
    %93 = vector.multi_reduction <add>, %88, %cst_37 [1] : vector<16x32xf32> to vector<16xf32>
    %94 = vector.shape_cast %93 : vector<16xf32> to vector<16x1xf32>
    %cst_38 = arith.constant 3.200000e+01 : f32
    %95 = vector.broadcast %cst_38 : f32 to vector<16x1xf32>
    %96 = arith.divf %94, %95 : vector<16x1xf32>
    %97 = vector.broadcast %96 : vector<16x1xf32> to vector<16x32xf32>
    %98 = arith.subf %88, %97 : vector<16x32xf32>
    %99 = arith.mulf %98, %98 : vector<16x32xf32>
    %cst_39 = arith.constant dense<0.000000e+00> : vector<16xf32>
    %100 = vector.multi_reduction <add>, %99, %cst_39 [1] : vector<16x32xf32> to vector<16xf32>
    %101 = vector.shape_cast %100 : vector<16xf32> to vector<16x1xf32>
    %cst_40 = arith.constant 3.200000e+01 : f32
    %102 = vector.broadcast %cst_40 : f32 to vector<16x1xf32>
    %103 = arith.divf %101, %102 : vector<16x1xf32>
    %104 = vector.broadcast %96 : vector<16x1xf32> to vector<16x32xf32>
    %105 = arith.subf %88, %104 : vector<16x32xf32>
    %cst_41 = arith.constant 9.99999974E-6 : f32
    %106 = vector.broadcast %cst_41 : f32 to vector<16x1xf32>
    %107 = arith.addf %103, %106 : vector<16x1xf32>
    %108 = math.rsqrt %107 : vector<16x1xf32>
    %109 = vector.broadcast %108 : vector<16x1xf32> to vector<16x32xf32>
    %110 = arith.mulf %105, %109 : vector<16x32xf32>
    %111 = vector.broadcast %90 : vector<1x32xf32> to vector<16x32xf32>
    %112 = arith.mulf %110, %111 : vector<16x32xf32>
    %113 = vector.broadcast %92 : vector<1x32xf32> to vector<16x32xf32>
    %114 = arith.addf %112, %113 : vector<16x32xf32>
    %115 = arith.truncf %114 : vector<16x32xf32> to vector<16x32xbf16>
    %c0_42 = arith.constant 0 : index
    %c0_43 = arith.constant 0 : index
    %c0_44 = arith.constant 0 : index
    %116 = vector.load %arg14[%c0_42, %c0_43, %c0_44] : memref<2x32x32xbf16, #tpu.memory_space<vmem>>, vector<1x32x32xbf16>
    %117 = vector.shape_cast %116 : vector<1x32x32xbf16> to vector<32x32xbf16>
    %cst_45 = arith.constant dense<0.000000e+00> : vector<16x32xf32>
    %118 = tpu.matmul %115, %117, %cst_45 {dimension_numbers = #tpu.dot_dimension_numbers<[1], [0], [0], [1], [0, 0, 1, 1], [], []>} : vector<16x32xbf16>, vector<32x32xbf16>, vector<16x32xf32> -> vector<16x32xf32>
    %c0_46 = arith.constant 0 : index
    %c0_47 = arith.constant 0 : index
    %c0_48 = arith.constant 0 : index
    %119 = vector.load %arg15[%c0_46, %c0_47, %c0_48] : memref<2x1x32xf32, #tpu.memory_space<vmem>>, vector<1x1x32xf32>
    %120 = vector.shape_cast %119 : vector<1x1x32xf32> to vector<1x32xf32>
    %121 = vector.broadcast %120 : vector<1x32xf32> to vector<16x32xf32>
    %122 = arith.addf %118, %121 : vector<16x32xf32>
    %cst_49 = arith.constant 5.000000e-01 : f32
    %123 = vector.broadcast %cst_49 : f32 to vector<16x32xf32>
    %124 = arith.mulf %123, %122 : vector<16x32xf32>
    %cst_50 = arith.constant 4.471500e-02 : f32
    %125 = vector.broadcast %cst_50 : f32 to vector<16x32xf32>
    %126 = arith.mulf %125, %122 : vector<16x32xf32>
    %127 = arith.mulf %126, %122 : vector<16x32xf32>
    %128 = arith.mulf %127, %122 : vector<16x32xf32>
    %129 = arith.addf %122, %128 : vector<16x32xf32>
    %cst_51 = arith.constant 0.797884583 : f32
    %130 = vector.broadcast %cst_51 : f32 to vector<16x32xf32>
    %131 = arith.mulf %130, %129 : vector<16x32xf32>
    %132 = math.tanh %131 : vector<16x32xf32>
    %cst_52 = arith.constant 1.000000e+00 : f32
    %133 = vector.broadcast %cst_52 : f32 to vector<16x32xf32>
    %134 = arith.addf %133, %132 : vector<16x32xf32>
    %135 = arith.mulf %124, %134 : vector<16x32xf32>
    %136 = arith.truncf %135 : vector<16x32xf32> to vector<16x32xbf16>
    %c0_53 = arith.constant 0 : index
    %c0_54 = arith.constant 0 : index
    %c0_55 = arith.constant 0 : index
    %137 = vector.load %arg16[%c0_53, %c0_54, %c0_55] : memref<2x32x32xbf16, #tpu.memory_space<vmem>>, vector<1x32x32xbf16>
    %138 = vector.shape_cast %137 : vector<1x32x32xbf16> to vector<32x32xbf16>
    %cst_56 = arith.constant dense<0.000000e+00> : vector<16x32xf32>
    %139 = tpu.matmul %136, %138, %cst_56 {dimension_numbers = #tpu.dot_dimension_numbers<[1], [0], [0], [1], [0, 0, 1, 1], [], []>} : vector<16x32xbf16>, vector<32x32xbf16>, vector<16x32xf32> -> vector<16x32xf32>
    %c0_57 = arith.constant 0 : index
    %c0_58 = arith.constant 0 : index
    %c0_59 = arith.constant 0 : index
    %140 = vector.load %arg17[%c0_57, %c0_58, %c0_59] : memref<2x1x32xf32, #tpu.memory_space<vmem>>, vector<1x1x32xf32>
    %141 = vector.shape_cast %140 : vector<1x1x32xf32> to vector<1x32xf32>
    %142 = vector.broadcast %141 : vector<1x32xf32> to vector<16x32xf32>
    %143 = arith.addf %139, %142 : vector<16x32xf32>
    %144 = arith.addf %114, %143 : vector<16x32xf32>
    %c0_60 = arith.constant 0 : index
    %c0_61 = arith.constant 0 : index
    %c0_62 = arith.constant 0 : index
    %145 = vector.load %arg18[%c0_60, %c0_61, %c0_62] : memref<2x1x32xf32, #tpu.memory_space<vmem>>, vector<1x1x32xf32>
    %146 = vector.shape_cast %145 : vector<1x1x32xf32> to vector<1x32xf32>
    %c0_63 = arith.constant 0 : index
    %c0_64 = arith.constant 0 : index
    %c0_65 = arith.constant 0 : index
    %147 = vector.load %arg19[%c0_63, %c0_64, %c0_65] : memref<2x1x32xf32, #tpu.memory_space<vmem>>, vector<1x1x32xf32>
    %148 = vector.shape_cast %147 : vector<1x1x32xf32> to vector<1x32xf32>
    %cst_66 = arith.constant dense<0.000000e+00> : vector<16xf32>
    %149 = vector.multi_reduction <add>, %144, %cst_66 [1] : vector<16x32xf32> to vector<16xf32>
    %150 = vector.shape_cast %149 : vector<16xf32> to vector<16x1xf32>
    %cst_67 = arith.constant 3.200000e+01 : f32
    %151 = vector.broadcast %cst_67 : f32 to vector<16x1xf32>
    %152 = arith.divf %150, %151 : vector<16x1xf32>
    %153 = vector.broadcast %152 : vector<16x1xf32> to vector<16x32xf32>
    %154 = arith.subf %144, %153 : vector<16x32xf32>
    %155 = arith.mulf %154, %154 : vector<16x32xf32>
    %cst_68 = arith.constant dense<0.000000e+00> : vector<16xf32>
    %156 = vector.multi_reduction <add>, %155, %cst_68 [1] : vector<16x32xf32> to vector<16xf32>
    %157 = vector.shape_cast %156 : vector<16xf32> to vector<16x1xf32>
    %cst_69 = arith.constant 3.200000e+01 : f32
    %158 = vector.broadcast %cst_69 : f32 to vector<16x1xf32>
    %159 = arith.divf %157, %158 : vector<16x1xf32>
    %160 = vector.broadcast %152 : vector<16x1xf32> to vector<16x32xf32>
    %161 = arith.subf %144, %160 : vector<16x32xf32>
    %cst_70 = arith.constant 9.99999974E-6 : f32
    %162 = vector.broadcast %cst_70 : f32 to vector<16x1xf32>
    %163 = arith.addf %159, %162 : vector<16x1xf32>
    %164 = math.rsqrt %163 : vector<16x1xf32>
    %165 = vector.broadcast %164 : vector<16x1xf32> to vector<16x32xf32>
    %166 = arith.mulf %161, %165 : vector<16x32xf32>
    %167 = vector.broadcast %146 : vector<1x32xf32> to vector<16x32xf32>
    %168 = arith.mulf %166, %167 : vector<16x32xf32>
    %169 = vector.broadcast %148 : vector<1x32xf32> to vector<16x32xf32>
    %170 = arith.addf %168, %169 : vector<16x32xf32>
    %171 = arith.truncf %170 : vector<16x32xf32> to vector<16x32xbf16>
    %c1 = arith.constant 1 : index
    %c0_71 = arith.constant 0 : index
    %c0_72 = arith.constant 0 : index
    %172 = vector.load %arg8[%c1, %c0_71, %c0_72] : memref<2x32x384xbf16, #tpu.memory_space<vmem>>, vector<1x32x384xbf16>
    %173 = vector.shape_cast %172 : vector<1x32x384xbf16> to vector<32x384xbf16>
    %cst_73 = arith.constant dense<0.000000e+00> : vector<16x384xf32>
    %174 = tpu.matmul %171, %173, %cst_73 {dimension_numbers = #tpu.dot_dimension_numbers<[1], [0], [0], [1], [0, 0, 1, 1], [], []>} : vector<16x32xbf16>, vector<32x384xbf16>, vector<16x384xf32> -> vector<16x384xf32>
    %c1_74 = arith.constant 1 : index
    %c0_75 = arith.constant 0 : index
    %c0_76 = arith.constant 0 : index
    %175 = vector.load %arg9[%c1_74, %c0_75, %c0_76] : memref<2x1x384xf32, #tpu.memory_space<vmem>>, vector<1x1x384xf32>
    %176 = vector.shape_cast %175 : vector<1x1x384xf32> to vector<1x384xf32>
    %177 = vector.broadcast %176 : vector<1x384xf32> to vector<16x384xf32>
    %178 = arith.addf %174, %177 : vector<16x384xf32>
    %179 = vector.extract_strided_slice %178 {offsets = [0, 0], sizes = [16, 32], strides = [1, 1]} : vector<16x384xf32> to vector<16x32xf32>
    %180 = vector.extract_strided_slice %178 {offsets = [0, 128], sizes = [16, 32], strides = [1, 1]} : vector<16x384xf32> to vector<16x32xf32>
    %181 = vector.extract_strided_slice %178 {offsets = [0, 256], sizes = [16, 32], strides = [1, 1]} : vector<16x384xf32> to vector<16x32xf32>
    %182 = vector.extract_strided_slice %179 {offsets = [0, 0], sizes = [16, 8], strides = [1, 1]} : vector<16x32xf32> to vector<16x8xf32>
    %183 = vector.extract_strided_slice %179 {offsets = [0, 8], sizes = [16, 8], strides = [1, 1]} : vector<16x32xf32> to vector<16x8xf32>
    %184 = vector.extract_strided_slice %179 {offsets = [0, 16], sizes = [16, 8], strides = [1, 1]} : vector<16x32xf32> to vector<16x8xf32>
    %185 = vector.extract_strided_slice %179 {offsets = [0, 24], sizes = [16, 8], strides = [1, 1]} : vector<16x32xf32> to vector<16x8xf32>
    %186 = vector.shape_cast %182 : vector<16x8xf32> to vector<1x16x8xf32>
    %187 = vector.shape_cast %183 : vector<16x8xf32> to vector<1x16x8xf32>
    %188 = vector.shape_cast %184 : vector<16x8xf32> to vector<1x16x8xf32>
    %189 = vector.shape_cast %185 : vector<16x8xf32> to vector<1x16x8xf32>
    %190 = tpu.concatenate %186, %187, %188, %189 in 0 : vector<1x16x8xf32>, vector<1x16x8xf32>, vector<1x16x8xf32>, vector<1x16x8xf32> -> vector<4x16x8xf32>
    %191 = arith.truncf %190 : vector<4x16x8xf32> to vector<4x16x8xbf16>
    %192 = vector.extract_strided_slice %180 {offsets = [0, 0], sizes = [16, 8], strides = [1, 1]} : vector<16x32xf32> to vector<16x8xf32>
    %193 = vector.extract_strided_slice %180 {offsets = [0, 8], sizes = [16, 8], strides = [1, 1]} : vector<16x32xf32> to vector<16x8xf32>
    %194 = vector.extract_strided_slice %180 {offsets = [0, 16], sizes = [16, 8], strides = [1, 1]} : vector<16x32xf32> to vector<16x8xf32>
    %195 = vector.extract_strided_slice %180 {offsets = [0, 24], sizes = [16, 8], strides = [1, 1]} : vector<16x32xf32> to vector<16x8xf32>
    %196 = vector.shape_cast %192 : vector<16x8xf32> to vector<1x16x8xf32>
    %197 = vector.shape_cast %193 : vector<16x8xf32> to vector<1x16x8xf32>
    %198 = vector.shape_cast %194 : vector<16x8xf32> to vector<1x16x8xf32>
    %199 = vector.shape_cast %195 : vector<16x8xf32> to vector<1x16x8xf32>
    %200 = tpu.concatenate %196, %197, %198, %199 in 0 : vector<1x16x8xf32>, vector<1x16x8xf32>, vector<1x16x8xf32>, vector<1x16x8xf32> -> vector<4x16x8xf32>
    %201 = arith.truncf %200 : vector<4x16x8xf32> to vector<4x16x8xbf16>
    %202 = vector.extract_strided_slice %181 {offsets = [0, 0], sizes = [16, 8], strides = [1, 1]} : vector<16x32xf32> to vector<16x8xf32>
    %203 = vector.extract_strided_slice %181 {offsets = [0, 8], sizes = [16, 8], strides = [1, 1]} : vector<16x32xf32> to vector<16x8xf32>
    %204 = vector.extract_strided_slice %181 {offsets = [0, 16], sizes = [16, 8], strides = [1, 1]} : vector<16x32xf32> to vector<16x8xf32>
    %205 = vector.extract_strided_slice %181 {offsets = [0, 24], sizes = [16, 8], strides = [1, 1]} : vector<16x32xf32> to vector<16x8xf32>
    %206 = vector.shape_cast %202 : vector<16x8xf32> to vector<1x16x8xf32>
    %207 = vector.shape_cast %203 : vector<16x8xf32> to vector<1x16x8xf32>
    %208 = vector.shape_cast %204 : vector<16x8xf32> to vector<1x16x8xf32>
    %209 = vector.shape_cast %205 : vector<16x8xf32> to vector<1x16x8xf32>
    %210 = tpu.concatenate %206, %207, %208, %209 in 0 : vector<1x16x8xf32>, vector<1x16x8xf32>, vector<1x16x8xf32>, vector<1x16x8xf32> -> vector<4x16x8xf32>
    %211 = arith.truncf %210 : vector<4x16x8xf32> to vector<4x16x8xbf16>
    "tpu.trace_start"() <{level = 10 : i32, message = "hqd,hkd->hqk"}> : () -> ()
    %cst_77 = arith.constant dense<0.000000e+00> : vector<4x16x16xf32>
    %212 = tpu.matmul %191, %201, %cst_77 {dimension_numbers = #tpu.dot_dimension_numbers<[2], [2], [1], [1], [0, 0, 0, 1, 1, 1], [0], [0]>} : vector<4x16x8xbf16>, vector<4x16x8xbf16>, vector<4x16x16xf32> -> vector<4x16x16xf32>
    "tpu.trace_stop"() : () -> ()
    %cst_78 = arith.constant 0.353553385 : f32
    %213 = vector.broadcast %cst_78 : f32 to vector<4x16x16xf32>
    %214 = arith.mulf %212, %213 : vector<4x16x16xf32>
    %215 = vector.broadcast %12 : vector<1x1x16xf32> to vector<4x16x16xf32>
    %216 = arith.addf %214, %215 : vector<4x16x16xf32>
    %cst_79 = arith.constant dense<0xFF800000> : vector<4x16xf32>
    %217 = vector.multi_reduction <maximumf>, %216, %cst_79 [2] : vector<4x16x16xf32> to vector<4x16xf32>
    %218 = vector.shape_cast %217 : vector<4x16xf32> to vector<4x16x1xf32>
    %219 = vector.broadcast %218 : vector<4x16x1xf32> to vector<4x16x16xf32>
    %220 = arith.subf %216, %219 : vector<4x16x16xf32>
    %221 = math.exp %220 : vector<4x16x16xf32>
    %cst_80 = arith.constant dense<0.000000e+00> : vector<4x16xf32>
    %222 = vector.multi_reduction <add>, %221, %cst_80 [2] : vector<4x16x16xf32> to vector<4x16xf32>
    %223 = vector.shape_cast %222 : vector<4x16xf32> to vector<4x16x1xf32>
    %224 = tpu.reciprocal %223 {approx = true} : vector<4x16x1xf32> -> vector<4x16x1xf32>
    %225 = vector.broadcast %224 : vector<4x16x1xf32> to vector<4x16x16xf32>
    %226 = arith.mulf %221, %225 : vector<4x16x16xf32>
    %227 = arith.truncf %226 : vector<4x16x16xf32> to vector<4x16x16xbf16>
    "tpu.trace_start"() <{level = 10 : i32, message = "hqk,hkd->hqd"}> : () -> ()
    %cst_81 = arith.constant dense<0.000000e+00> : vector<4x16x8xf32>
    %228 = tpu.matmul %227, %211, %cst_81 {dimension_numbers = #tpu.dot_dimension_numbers<[2], [1], [1], [2], [0, 0, 0, 1, 1, 2], [0], [0]>} : vector<4x16x16xbf16>, vector<4x16x8xbf16>, vector<4x16x8xf32> -> vector<4x16x8xf32>
    "tpu.trace_stop"() : () -> ()
    %229 = vector.extract_strided_slice %228 {offsets = [0, 0, 0], sizes = [1, 16, 8], strides = [1, 1, 1]} : vector<4x16x8xf32> to vector<1x16x8xf32>
    %230 = vector.shape_cast %229 : vector<1x16x8xf32> to vector<16x8xf32>
    %231 = vector.extract_strided_slice %228 {offsets = [1, 0, 0], sizes = [1, 16, 8], strides = [1, 1, 1]} : vector<4x16x8xf32> to vector<1x16x8xf32>
    %232 = vector.shape_cast %231 : vector<1x16x8xf32> to vector<16x8xf32>
    %233 = vector.extract_strided_slice %228 {offsets = [2, 0, 0], sizes = [1, 16, 8], strides = [1, 1, 1]} : vector<4x16x8xf32> to vector<1x16x8xf32>
    %234 = vector.shape_cast %233 : vector<1x16x8xf32> to vector<16x8xf32>
    %235 = vector.extract_strided_slice %228 {offsets = [3, 0, 0], sizes = [1, 16, 8], strides = [1, 1, 1]} : vector<4x16x8xf32> to vector<1x16x8xf32>
    %236 = vector.shape_cast %235 : vector<1x16x8xf32> to vector<16x8xf32>
    %237 = tpu.concatenate %230, %232, %234, %236 in 1 : vector<16x8xf32>, vector<16x8xf32>, vector<16x8xf32>, vector<16x8xf32> -> vector<16x32xf32>
    %238 = arith.truncf %237 : vector<16x32xf32> to vector<16x32xbf16>
    %c1_82 = arith.constant 1 : index
    %c0_83 = arith.constant 0 : index
    %c0_84 = arith.constant 0 : index
    %239 = vector.load %arg10[%c1_82, %c0_83, %c0_84] : memref<2x32x32xbf16, #tpu.memory_space<vmem>>, vector<1x32x32xbf16>
    %240 = vector.shape_cast %239 : vector<1x32x32xbf16> to vector<32x32xbf16>
    %cst_85 = arith.constant dense<0.000000e+00> : vector<16x32xf32>
    %241 = tpu.matmul %238, %240, %cst_85 {dimension_numbers = #tpu.dot_dimension_numbers<[1], [0], [0], [1], [0, 0, 1, 1], [], []>} : vector<16x32xbf16>, vector<32x32xbf16>, vector<16x32xf32> -> vector<16x32xf32>
    %c1_86 = arith.constant 1 : index
    %c0_87 = arith.constant 0 : index
    %c0_88 = arith.constant 0 : index
    %242 = vector.load %arg11[%c1_86, %c0_87, %c0_88] : memref<2x1x32xf32, #tpu.memory_space<vmem>>, vector<1x1x32xf32>
    %243 = vector.shape_cast %242 : vector<1x1x32xf32> to vector<1x32xf32>
    %244 = vector.broadcast %243 : vector<1x32xf32> to vector<16x32xf32>
    %245 = arith.addf %241, %244 : vector<16x32xf32>
    %246 = arith.addf %170, %245 : vector<16x32xf32>
    %c1_89 = arith.constant 1 : index
    %c0_90 = arith.constant 0 : index
    %c0_91 = arith.constant 0 : index
    %247 = vector.load %arg12[%c1_89, %c0_90, %c0_91] : memref<2x1x32xf32, #tpu.memory_space<vmem>>, vector<1x1x32xf32>
    %248 = vector.shape_cast %247 : vector<1x1x32xf32> to vector<1x32xf32>
    %c1_92 = arith.constant 1 : index
    %c0_93 = arith.constant 0 : index
    %c0_94 = arith.constant 0 : index
    %249 = vector.load %arg13[%c1_92, %c0_93, %c0_94] : memref<2x1x32xf32, #tpu.memory_space<vmem>>, vector<1x1x32xf32>
    %250 = vector.shape_cast %249 : vector<1x1x32xf32> to vector<1x32xf32>
    %cst_95 = arith.constant dense<0.000000e+00> : vector<16xf32>
    %251 = vector.multi_reduction <add>, %246, %cst_95 [1] : vector<16x32xf32> to vector<16xf32>
    %252 = vector.shape_cast %251 : vector<16xf32> to vector<16x1xf32>
    %cst_96 = arith.constant 3.200000e+01 : f32
    %253 = vector.broadcast %cst_96 : f32 to vector<16x1xf32>
    %254 = arith.divf %252, %253 : vector<16x1xf32>
    %255 = vector.broadcast %254 : vector<16x1xf32> to vector<16x32xf32>
    %256 = arith.subf %246, %255 : vector<16x32xf32>
    %257 = arith.mulf %256, %256 : vector<16x32xf32>
    %cst_97 = arith.constant dense<0.000000e+00> : vector<16xf32>
    %258 = vector.multi_reduction <add>, %257, %cst_97 [1] : vector<16x32xf32> to vector<16xf32>
    %259 = vector.shape_cast %258 : vector<16xf32> to vector<16x1xf32>
    %cst_98 = arith.constant 3.200000e+01 : f32
    %260 = vector.broadcast %cst_98 : f32 to vector<16x1xf32>
    %261 = arith.divf %259, %260 : vector<16x1xf32>
    %262 = vector.broadcast %254 : vector<16x1xf32> to vector<16x32xf32>
    %263 = arith.subf %246, %262 : vector<16x32xf32>
    %cst_99 = arith.constant 9.99999974E-6 : f32
    %264 = vector.broadcast %cst_99 : f32 to vector<16x1xf32>
    %265 = arith.addf %261, %264 : vector<16x1xf32>
    %266 = math.rsqrt %265 : vector<16x1xf32>
    %267 = vector.broadcast %266 : vector<16x1xf32> to vector<16x32xf32>
    %268 = arith.mulf %263, %267 : vector<16x32xf32>
    %269 = vector.broadcast %248 : vector<1x32xf32> to vector<16x32xf32>
    %270 = arith.mulf %268, %269 : vector<16x32xf32>
    %271 = vector.broadcast %250 : vector<1x32xf32> to vector<16x32xf32>
    %272 = arith.addf %270, %271 : vector<16x32xf32>
    %273 = arith.truncf %272 : vector<16x32xf32> to vector<16x32xbf16>
    %c1_100 = arith.constant 1 : index
    %c0_101 = arith.constant 0 : index
    %c0_102 = arith.constant 0 : index
    %274 = vector.load %arg14[%c1_100, %c0_101, %c0_102] : memref<2x32x32xbf16, #tpu.memory_space<vmem>>, vector<1x32x32xbf16>
    %275 = vector.shape_cast %274 : vector<1x32x32xbf16> to vector<32x32xbf16>
    %cst_103 = arith.constant dense<0.000000e+00> : vector<16x32xf32>
    %276 = tpu.matmul %273, %275, %cst_103 {dimension_numbers = #tpu.dot_dimension_numbers<[1], [0], [0], [1], [0, 0, 1, 1], [], []>} : vector<16x32xbf16>, vector<32x32xbf16>, vector<16x32xf32> -> vector<16x32xf32>
    %c1_104 = arith.constant 1 : index
    %c0_105 = arith.constant 0 : index
    %c0_106 = arith.constant 0 : index
    %277 = vector.load %arg15[%c1_104, %c0_105, %c0_106] : memref<2x1x32xf32, #tpu.memory_space<vmem>>, vector<1x1x32xf32>
    %278 = vector.shape_cast %277 : vector<1x1x32xf32> to vector<1x32xf32>
    %279 = vector.broadcast %278 : vector<1x32xf32> to vector<16x32xf32>
    %280 = arith.addf %276, %279 : vector<16x32xf32>
    %cst_107 = arith.constant 5.000000e-01 : f32
    %281 = vector.broadcast %cst_107 : f32 to vector<16x32xf32>
    %282 = arith.mulf %281, %280 : vector<16x32xf32>
    %cst_108 = arith.constant 4.471500e-02 : f32
    %283 = vector.broadcast %cst_108 : f32 to vector<16x32xf32>
    %284 = arith.mulf %283, %280 : vector<16x32xf32>
    %285 = arith.mulf %284, %280 : vector<16x32xf32>
    %286 = arith.mulf %285, %280 : vector<16x32xf32>
    %287 = arith.addf %280, %286 : vector<16x32xf32>
    %cst_109 = arith.constant 0.797884583 : f32
    %288 = vector.broadcast %cst_109 : f32 to vector<16x32xf32>
    %289 = arith.mulf %288, %287 : vector<16x32xf32>
    %290 = math.tanh %289 : vector<16x32xf32>
    %cst_110 = arith.constant 1.000000e+00 : f32
    %291 = vector.broadcast %cst_110 : f32 to vector<16x32xf32>
    %292 = arith.addf %291, %290 : vector<16x32xf32>
    %293 = arith.mulf %282, %292 : vector<16x32xf32>
    %294 = arith.truncf %293 : vector<16x32xf32> to vector<16x32xbf16>
    %c1_111 = arith.constant 1 : index
    %c0_112 = arith.constant 0 : index
    %c0_113 = arith.constant 0 : index
    %295 = vector.load %arg16[%c1_111, %c0_112, %c0_113] : memref<2x32x32xbf16, #tpu.memory_space<vmem>>, vector<1x32x32xbf16>
    %296 = vector.shape_cast %295 : vector<1x32x32xbf16> to vector<32x32xbf16>
    %cst_114 = arith.constant dense<0.000000e+00> : vector<16x32xf32>
    %297 = tpu.matmul %294, %296, %cst_114 {dimension_numbers = #tpu.dot_dimension_numbers<[1], [0], [0], [1], [0, 0, 1, 1], [], []>} : vector<16x32xbf16>, vector<32x32xbf16>, vector<16x32xf32> -> vector<16x32xf32>
    %c1_115 = arith.constant 1 : index
    %c0_116 = arith.constant 0 : index
    %c0_117 = arith.constant 0 : index
    %298 = vector.load %arg17[%c1_115, %c0_116, %c0_117] : memref<2x1x32xf32, #tpu.memory_space<vmem>>, vector<1x1x32xf32>
    %299 = vector.shape_cast %298 : vector<1x1x32xf32> to vector<1x32xf32>
    %300 = vector.broadcast %299 : vector<1x32xf32> to vector<16x32xf32>
    %301 = arith.addf %297, %300 : vector<16x32xf32>
    %302 = arith.addf %272, %301 : vector<16x32xf32>
    %c1_118 = arith.constant 1 : index
    %c0_119 = arith.constant 0 : index
    %c0_120 = arith.constant 0 : index
    %303 = vector.load %arg18[%c1_118, %c0_119, %c0_120] : memref<2x1x32xf32, #tpu.memory_space<vmem>>, vector<1x1x32xf32>
    %304 = vector.shape_cast %303 : vector<1x1x32xf32> to vector<1x32xf32>
    %c1_121 = arith.constant 1 : index
    %c0_122 = arith.constant 0 : index
    %c0_123 = arith.constant 0 : index
    %305 = vector.load %arg19[%c1_121, %c0_122, %c0_123] : memref<2x1x32xf32, #tpu.memory_space<vmem>>, vector<1x1x32xf32>
    %306 = vector.shape_cast %305 : vector<1x1x32xf32> to vector<1x32xf32>
    %cst_124 = arith.constant dense<0.000000e+00> : vector<16xf32>
    %307 = vector.multi_reduction <add>, %302, %cst_124 [1] : vector<16x32xf32> to vector<16xf32>
    %308 = vector.shape_cast %307 : vector<16xf32> to vector<16x1xf32>
    %cst_125 = arith.constant 3.200000e+01 : f32
    %309 = vector.broadcast %cst_125 : f32 to vector<16x1xf32>
    %310 = arith.divf %308, %309 : vector<16x1xf32>
    %311 = vector.broadcast %310 : vector<16x1xf32> to vector<16x32xf32>
    %312 = arith.subf %302, %311 : vector<16x32xf32>
    %313 = arith.mulf %312, %312 : vector<16x32xf32>
    %cst_126 = arith.constant dense<0.000000e+00> : vector<16xf32>
    %314 = vector.multi_reduction <add>, %313, %cst_126 [1] : vector<16x32xf32> to vector<16xf32>
    %315 = vector.shape_cast %314 : vector<16xf32> to vector<16x1xf32>
    %cst_127 = arith.constant 3.200000e+01 : f32
    %316 = vector.broadcast %cst_127 : f32 to vector<16x1xf32>
    %317 = arith.divf %315, %316 : vector<16x1xf32>
    %318 = vector.broadcast %310 : vector<16x1xf32> to vector<16x32xf32>
    %319 = arith.subf %302, %318 : vector<16x32xf32>
    %cst_128 = arith.constant 9.99999974E-6 : f32
    %320 = vector.broadcast %cst_128 : f32 to vector<16x1xf32>
    %321 = arith.addf %317, %320 : vector<16x1xf32>
    %322 = math.rsqrt %321 : vector<16x1xf32>
    %323 = vector.broadcast %322 : vector<16x1xf32> to vector<16x32xf32>
    %324 = arith.mulf %319, %323 : vector<16x32xf32>
    %325 = vector.broadcast %304 : vector<1x32xf32> to vector<16x32xf32>
    %326 = arith.mulf %324, %325 : vector<16x32xf32>
    %327 = vector.broadcast %306 : vector<1x32xf32> to vector<16x32xf32>
    %328 = arith.addf %326, %327 : vector<16x32xf32>
    %c0_129 = arith.constant 0 : index
    %c0_130 = arith.constant 0 : index
    %329 = vector.load %arg20[%c0_129, %c0_130] : memref<1x32xf32, #tpu.memory_space<vmem>>, vector<1x32xf32>
    %c0_131 = arith.constant 0 : index
    %c0_132 = arith.constant 0 : index
    %330 = vector.load %arg21[%c0_131, %c0_132] : memref<1x32xf32, #tpu.memory_space<vmem>>, vector<1x32xf32>
    %cst_133 = arith.constant dense<0.000000e+00> : vector<16xf32>
    %331 = vector.multi_reduction <add>, %328, %cst_133 [1] : vector<16x32xf32> to vector<16xf32>
    %332 = vector.shape_cast %331 : vector<16xf32> to vector<16x1xf32>
    %cst_134 = arith.constant 3.200000e+01 : f32
    %333 = vector.broadcast %cst_134 : f32 to vector<16x1xf32>
    %334 = arith.divf %332, %333 : vector<16x1xf32>
    %335 = vector.broadcast %334 : vector<16x1xf32> to vector<16x32xf32>
    %336 = arith.subf %328, %335 : vector<16x32xf32>
    %337 = arith.mulf %336, %336 : vector<16x32xf32>
    %cst_135 = arith.constant dense<0.000000e+00> : vector<16xf32>
    %338 = vector.multi_reduction <add>, %337, %cst_135 [1] : vector<16x32xf32> to vector<16xf32>
    %339 = vector.shape_cast %338 : vector<16xf32> to vector<16x1xf32>
    %cst_136 = arith.constant 3.200000e+01 : f32
    %340 = vector.broadcast %cst_136 : f32 to vector<16x1xf32>
    %341 = arith.divf %339, %340 : vector<16x1xf32>
    %342 = vector.broadcast %334 : vector<16x1xf32> to vector<16x32xf32>
    %343 = arith.subf %328, %342 : vector<16x32xf32>
    %cst_137 = arith.constant 9.99999974E-6 : f32
    %344 = vector.broadcast %cst_137 : f32 to vector<16x1xf32>
    %345 = arith.addf %341, %344 : vector<16x1xf32>
    %346 = math.rsqrt %345 : vector<16x1xf32>
    %347 = vector.broadcast %346 : vector<16x1xf32> to vector<16x32xf32>
    %348 = arith.mulf %343, %347 : vector<16x32xf32>
    %349 = vector.broadcast %329 : vector<1x32xf32> to vector<16x32xf32>
    %350 = arith.mulf %348, %349 : vector<16x32xf32>
    %351 = vector.broadcast %330 : vector<1x32xf32> to vector<16x32xf32>
    %352 = arith.addf %350, %351 : vector<16x32xf32>
    %c0_138 = arith.constant 0 : index
    %c0_139 = arith.constant 0 : index
    %353 = vector.load %arg5[%c0_138, %c0_139] : memref<1x16xf32, #tpu.memory_space<vmem>>, vector<1x16xf32>
    %cst_140 = arith.constant dense<0.000000e+00> : vector<1x32xf32>
    %354 = tpu.matmul %353, %352, %cst_140 {dimension_numbers = #tpu.dot_dimension_numbers<[1], [0], [0], [1], [0, 0, 1, 1], [], []>} : vector<1x16xf32>, vector<16x32xf32>, vector<1x32xf32> -> vector<1x32xf32>
    %cst_141 = arith.constant 0.000000e+00 : f32
    %355 = vector.broadcast %cst_141 : f32 to vector<1x96xf32>
    %356 = tpu.concatenate %354, %355 in 1 : vector<1x32xf32>, vector<1x96xf32> -> vector<1x128xf32>
    %357 = vector.shape_cast %356 : vector<1x128xf32> to vector<1x1x128xf32>
    %c0_142 = arith.constant 0 : index
    %c0_143 = arith.constant 0 : index
    %c0_144 = arith.constant 0 : index
    %358 = vector.load %arg30[%c0_142, %c0_143, %c0_144] : memref<1x1x128xf32, #tpu.memory_space<vmem>>, vector<1x1x128xf32>
    tpu.vector_store %arg30[%c0_142, %c0_143, %c0_144], %357 {strides = array<i32>} : memref<1x1x128xf32, #tpu.memory_space<vmem>>, vector<1x1x128xf32>,
    %c0_145 = arith.constant 0 : index
    %c0_146 = arith.constant 0 : index
    %359 = vector.load %arg22[%c0_145, %c0_146] : memref<32x128xf32, #tpu.memory_space<vmem>>, vector<32x128xf32>
    %cst_147 = arith.constant dense<0.000000e+00> : vector<1x128xf32>
    %360 = tpu.matmul %354, %359, %cst_147 {dimension_numbers = #tpu.dot_dimension_numbers<[1], [0], [0], [1], [0, 0, 1, 1], [], []>} : vector<1x32xf32>, vector<32x128xf32>, vector<1x128xf32> -> vector<1x128xf32>
    %c0_148 = arith.constant 0 : index
    %c0_149 = arith.constant 0 : index
    %361 = vector.load %arg23[%c0_148, %c0_149] : memref<1x128xf32, #tpu.memory_space<vmem>>, vector<1x128xf32>
    %362 = arith.addf %360, %361 : vector<1x128xf32>
    %cst_150 = arith.constant 0.000000e+00 : f32
    %363 = vector.broadcast %cst_150 : f32 to vector<1x128xf32>
    %364 = arith.maximumf %362, %363 : vector<1x128xf32>
    %c0_151 = arith.constant 0 : index
    %c0_152 = arith.constant 0 : index
    %365 = vector.load %arg24[%c0_151, %c0_152] : memref<128x128xf32, #tpu.memory_space<vmem>>, vector<128x128xf32>
    %cst_153 = arith.constant dense<0.000000e+00> : vector<1x128xf32>
    %366 = tpu.matmul %364, %365, %cst_153 {dimension_numbers = #tpu.dot_dimension_numbers<[1], [0], [0], [1], [0, 0, 1, 1], [], []>} : vector<1x128xf32>, vector<128x128xf32>, vector<1x128xf32> -> vector<1x128xf32>
    %c0_154 = arith.constant 0 : index
    %c0_155 = arith.constant 0 : index
    %367 = vector.load %arg25[%c0_154, %c0_155] : memref<1x128xf32, #tpu.memory_space<vmem>>, vector<1x128xf32>
    %368 = arith.addf %366, %367 : vector<1x128xf32>
    %cst_156 = arith.constant 0.000000e+00 : f32
    %369 = vector.broadcast %cst_156 : f32 to vector<1x128xf32>
    %370 = arith.maximumf %368, %369 : vector<1x128xf32>
    %c0_157 = arith.constant 0 : index
    %c0_158 = arith.constant 0 : index
    %371 = vector.load %arg26[%c0_157, %c0_158] : memref<128x128xf32, #tpu.memory_space<vmem>>, vector<128x128xf32>
    %cst_159 = arith.constant dense<0.000000e+00> : vector<1x128xf32>
    %372 = tpu.matmul %370, %371, %cst_159 {dimension_numbers = #tpu.dot_dimension_numbers<[1], [0], [0], [1], [0, 0, 1, 1], [], []>} : vector<1x128xf32>, vector<128x128xf32>, vector<1x128xf32> -> vector<1x128xf32>
    %c0_160 = arith.constant 0 : index
    %c0_161 = arith.constant 0 : index
    %373 = vector.load %arg27[%c0_160, %c0_161] : memref<1x128xf32, #tpu.memory_space<vmem>>, vector<1x128xf32>
    %374 = arith.addf %372, %373 : vector<1x128xf32>
    %cst_162 = arith.constant 0.000000e+00 : f32
    %375 = vector.broadcast %cst_162 : f32 to vector<1x128xf32>
    %376 = arith.maximumf %374, %375 : vector<1x128xf32>
    %c0_163 = arith.constant 0 : index
    %c0_164 = arith.constant 0 : index
    %377 = vector.load %arg28[%c0_163, %c0_164] : memref<1x128xf32, #tpu.memory_space<vmem>>, vector<1x128xf32>
    %378 = arith.mulf %376, %377 : vector<1x128xf32>
    %cst_165 = arith.constant dense<0.000000e+00> : vector<1xf32>
    %379 = vector.multi_reduction <add>, %378, %cst_165 [1] : vector<1x128xf32> to vector<1xf32>
    %380 = vector.shape_cast %379 : vector<1xf32> to vector<1x1xf32>
    %c0_166 = arith.constant 0 : index
    %c0_167 = arith.constant 0 : index
    %381 = vector.load %arg29[%c0_166, %c0_167] : memref<1x1xf32, #tpu.memory_space<vmem>>, vector<1x1xf32>
    %382 = arith.addf %380, %381 : vector<1x1xf32>
    %383 = vector.shape_cast %382 : vector<1x1xf32> to vector<1x1x1xf32>
    %384 = vector.broadcast %383 : vector<1x1x1xf32> to vector<1x1x128xf32>
    %c0_168 = arith.constant 0 : index
    %c0_169 = arith.constant 0 : index
    %c0_170 = arith.constant 0 : index
    %385 = vector.load %arg31[%c0_168, %c0_169, %c0_170] : memref<1x1x128xf32, #tpu.memory_space<vmem>>, vector<1x1x128xf32>
    tpu.vector_store %arg31[%c0_168, %c0_169, %c0_170], %384 {strides = array<i32>} : memref<1x1x128xf32, #tpu.memory_space<vmem>>, vector<1x1x128xf32>,
    return
  }
  func.func @transform_0(%arg0: i32) -> (i32, i32) {
    %c0_i32 = arith.constant 0 : i32
    %c0_i32_0 = arith.constant 0 : i32
    return %arg0, %c0_i32 : i32, i32
  }
  func.func @transform_1(%arg0: i32) -> (i32, i32) {
    %c0_i32 = arith.constant 0 : i32
    %c0_i32_0 = arith.constant 0 : i32
    %c0_i32_1 = arith.constant 0 : i32
    return %c0_i32, %c0_i32_0 : i32, i32
  }
  func.func @transform_2(%arg0: i32) -> (i32, i32) {
    %c0_i32 = arith.constant 0 : i32
    %c0_i32_0 = arith.constant 0 : i32
    %c0_i32_1 = arith.constant 0 : i32
    return %c0_i32, %c0_i32_0 : i32, i32
  }
  func.func @transform_3(%arg0: i32) -> (i32, i32, i32) {
    %c0_i32 = arith.constant 0 : i32
    %c0_i32_0 = arith.constant 0 : i32
    %c0_i32_1 = arith.constant 0 : i32
    return %arg0, %c0_i32, %c0_i32_0 : i32, i32, i32
  }
  func.func @transform_4(%arg0: i32) -> (i32, i32) {
    %c0_i32 = arith.constant 0 : i32
    %c0_i32_0 = arith.constant 0 : i32
    %c0_i32_1 = arith.constant 0 : i32
    return %c0_i32, %c0_i32_0 : i32, i32
  }
  func.func @transform_5(%arg0: i32) -> (i32, i32) {
    %c0_i32 = arith.constant 0 : i32
    %c0_i32_0 = arith.constant 0 : i32
    %c0_i32_1 = arith.constant 0 : i32
    return %c0_i32, %c0_i32_0 : i32, i32
  }
  func.func @transform_6(%arg0: i32) -> (i32, i32) {
    %c0_i32 = arith.constant 0 : i32
    %c0_i32_0 = arith.constant 0 : i32
    %c0_i32_1 = arith.constant 0 : i32
    return %c0_i32, %c0_i32_0 : i32, i32
  }
  func.func @transform_7(%arg0: i32) -> (i32, i32, i32) {
    %c0_i32 = arith.constant 0 : i32
    %c0_i32_0 = arith.constant 0 : i32
    %c0_i32_1 = arith.constant 0 : i32
    %c0_i32_2 = arith.constant 0 : i32
    return %c0_i32, %c0_i32_0, %c0_i32_1 : i32, i32, i32
  }
  func.func @transform_8(%arg0: i32) -> (i32, i32, i32) {
    %c0_i32 = arith.constant 0 : i32
    %c0_i32_0 = arith.constant 0 : i32
    %c0_i32_1 = arith.constant 0 : i32
    %c0_i32_2 = arith.constant 0 : i32
    return %c0_i32, %c0_i32_0, %c0_i32_1 : i32, i32, i32
  }
  func.func @transform_9(%arg0: i32) -> (i32, i32, i32) {
    %c0_i32 = arith.constant 0 : i32
    %c0_i32_0 = arith.constant 0 : i32
    %c0_i32_1 = arith.constant 0 : i32
    %c0_i32_2 = arith.constant 0 : i32
    return %c0_i32, %c0_i32_0, %c0_i32_1 : i32, i32, i32
  }
  func.func @transform_10(%arg0: i32) -> (i32, i32, i32) {
    %c0_i32 = arith.constant 0 : i32
    %c0_i32_0 = arith.constant 0 : i32
    %c0_i32_1 = arith.constant 0 : i32
    %c0_i32_2 = arith.constant 0 : i32
    return %c0_i32, %c0_i32_0, %c0_i32_1 : i32, i32, i32
  }
  func.func @transform_11(%arg0: i32) -> (i32, i32, i32) {
    %c0_i32 = arith.constant 0 : i32
    %c0_i32_0 = arith.constant 0 : i32
    %c0_i32_1 = arith.constant 0 : i32
    %c0_i32_2 = arith.constant 0 : i32
    return %c0_i32, %c0_i32_0, %c0_i32_1 : i32, i32, i32
  }
  func.func @transform_12(%arg0: i32) -> (i32, i32, i32) {
    %c0_i32 = arith.constant 0 : i32
    %c0_i32_0 = arith.constant 0 : i32
    %c0_i32_1 = arith.constant 0 : i32
    %c0_i32_2 = arith.constant 0 : i32
    return %c0_i32, %c0_i32_0, %c0_i32_1 : i32, i32, i32
  }
  func.func @transform_13(%arg0: i32) -> (i32, i32, i32) {
    %c0_i32 = arith.constant 0 : i32
    %c0_i32_0 = arith.constant 0 : i32
    %c0_i32_1 = arith.constant 0 : i32
    %c0_i32_2 = arith.constant 0 : i32
    return %c0_i32, %c0_i32_0, %c0_i32_1 : i32, i32, i32
  }
  func.func @transform_14(%arg0: i32) -> (i32, i32, i32) {
    %c0_i32 = arith.constant 0 : i32
    %c0_i32_0 = arith.constant 0 : i32
    %c0_i32_1 = arith.constant 0 : i32
    %c0_i32_2 = arith.constant 0 : i32
    return %c0_i32, %c0_i32_0, %c0_i32_1 : i32, i32, i32
  }
  func.func @transform_15(%arg0: i32) -> (i32, i32, i32) {
    %c0_i32 = arith.constant 0 : i32
    %c0_i32_0 = arith.constant 0 : i32
    %c0_i32_1 = arith.constant 0 : i32
    %c0_i32_2 = arith.constant 0 : i32
    return %c0_i32, %c0_i32_0, %c0_i32_1 : i32, i32, i32
  }
  func.func @transform_16(%arg0: i32) -> (i32, i32, i32) {
    %c0_i32 = arith.constant 0 : i32
    %c0_i32_0 = arith.constant 0 : i32
    %c0_i32_1 = arith.constant 0 : i32
    %c0_i32_2 = arith.constant 0 : i32
    return %c0_i32, %c0_i32_0, %c0_i32_1 : i32, i32, i32
  }
  func.func @transform_17(%arg0: i32) -> (i32, i32, i32) {
    %c0_i32 = arith.constant 0 : i32
    %c0_i32_0 = arith.constant 0 : i32
    %c0_i32_1 = arith.constant 0 : i32
    %c0_i32_2 = arith.constant 0 : i32
    return %c0_i32, %c0_i32_0, %c0_i32_1 : i32, i32, i32
  }
  func.func @transform_18(%arg0: i32) -> (i32, i32, i32) {
    %c0_i32 = arith.constant 0 : i32
    %c0_i32_0 = arith.constant 0 : i32
    %c0_i32_1 = arith.constant 0 : i32
    %c0_i32_2 = arith.constant 0 : i32
    return %c0_i32, %c0_i32_0, %c0_i32_1 : i32, i32, i32
  }
  func.func @transform_19(%arg0: i32) -> (i32, i32) {
    %c0_i32 = arith.constant 0 : i32
    %c0_i32_0 = arith.constant 0 : i32
    %c0_i32_1 = arith.constant 0 : i32
    return %c0_i32, %c0_i32_0 : i32, i32
  }
  func.func @transform_20(%arg0: i32) -> (i32, i32) {
    %c0_i32 = arith.constant 0 : i32
    %c0_i32_0 = arith.constant 0 : i32
    %c0_i32_1 = arith.constant 0 : i32
    return %c0_i32, %c0_i32_0 : i32, i32
  }
  func.func @transform_21(%arg0: i32) -> (i32, i32) {
    %c0_i32 = arith.constant 0 : i32
    %c0_i32_0 = arith.constant 0 : i32
    %c0_i32_1 = arith.constant 0 : i32
    return %c0_i32, %c0_i32_0 : i32, i32
  }
  func.func @transform_22(%arg0: i32) -> (i32, i32) {
    %c0_i32 = arith.constant 0 : i32
    %c0_i32_0 = arith.constant 0 : i32
    %c0_i32_1 = arith.constant 0 : i32
    return %c0_i32, %c0_i32_0 : i32, i32
  }
  func.func @transform_23(%arg0: i32) -> (i32, i32) {
    %c0_i32 = arith.constant 0 : i32
    %c0_i32_0 = arith.constant 0 : i32
    %c0_i32_1 = arith.constant 0 : i32
    return %c0_i32, %c0_i32_0 : i32, i32
  }
  func.func @transform_24(%arg0: i32) -> (i32, i32) {
    %c0_i32 = arith.constant 0 : i32
    %c0_i32_0 = arith.constant 0 : i32
    %c0_i32_1 = arith.constant 0 : i32
    return %c0_i32, %c0_i32_0 : i32, i32
  }
  func.func @transform_25(%arg0: i32) -> (i32, i32) {
    %c0_i32 = arith.constant 0 : i32
    %c0_i32_0 = arith.constant 0 : i32
    %c0_i32_1 = arith.constant 0 : i32
    return %c0_i32, %c0_i32_0 : i32, i32
  }
  func.func @transform_26(%arg0: i32) -> (i32, i32) {
    %c0_i32 = arith.constant 0 : i32
    %c0_i32_0 = arith.constant 0 : i32
    %c0_i32_1 = arith.constant 0 : i32
    return %c0_i32, %c0_i32_0 : i32, i32
  }
  func.func @transform_27(%arg0: i32) -> (i32, i32) {
    %c0_i32 = arith.constant 0 : i32
    %c0_i32_0 = arith.constant 0 : i32
    %c0_i32_1 = arith.constant 0 : i32
    return %c0_i32, %c0_i32_0 : i32, i32
  }
  func.func @transform_28(%arg0: i32) -> (i32, i32) {
    %c0_i32 = arith.constant 0 : i32
    %c0_i32_0 = arith.constant 0 : i32
    %c0_i32_1 = arith.constant 0 : i32
    return %c0_i32, %c0_i32_0 : i32, i32
  }
  func.func @transform_29(%arg0: i32) -> (i32, i32, i32) {
    %c0_i32 = arith.constant 0 : i32
    %c0_i32_0 = arith.constant 0 : i32
    %c0_i32_1 = arith.constant 0 : i32
    return %arg0, %c0_i32, %c0_i32_0 : i32, i32, i32
  }
  func.func @transform_30(%arg0: i32) -> (i32, i32, i32) {
    %c0_i32 = arith.constant 0 : i32
    %c0_i32_0 = arith.constant 0 : i32
    %c0_i32_1 = arith.constant 0 : i32
    return %arg0, %c0_i32, %c0_i32_0 : i32, i32, i32
  }
}

</mosaic_0001>

<llo_original>
// kernel: _lambda_.1
$region0: #{_lambda_.1}
  #allocation0 [shape = 'u32[]', space=smem, size = 0x4, offset = 0x4, fixed_abs, tag = 'smem constant byte address 0x4 - core index']
  #allocation1 [shape = 'u32[144,128]{1,0:T(1,128)}', space=vmem, size = 0x12000, scoped, tag = 'internal scratch']
  #allocation2 [shape = 'f32[1,1]{1,0:T(1,128)S(1)}', space=vmem, size = 0x200, scoped, tag = 'scoped memory for _lambda_.1']
  %s0 = inlined_call_operand.smem [shape: u32[31], index: -1, kind: input, shape index: {}]
  %s1 = sld [smem:[%s0]]
  %s2 = scalar_lea.smem %s0, 1
  %s3 = sld [smem:[%s2]]
  %s4 = scalar_lea.smem %s0, 2
  %s5 = sld [smem:[%s4]]
  %s6 = scalar_lea.smem %s0, 3
  %s7 = sld [smem:[%s6]]
  %s8 = scalar_lea.smem %s0, 4
  %s9 = sld [smem:[%s8]]
  %s10 = scalar_lea.smem %s0, 5
  %s11 = sld [smem:[%s10]]
  %s12 = scalar_lea.smem %s0, 6
  %s13 = sld [smem:[%s12]]
  %s14 = scalar_lea.smem %s0, 7
  %s15 = sld [smem:[%s14]]
  %s16 = scalar_lea.smem %s0, 8
  %s17 = sld [smem:[%s16]]
  %s18 = scalar_lea.smem %s0, 9
  %s19 = sld [smem:[%s18]]
  %s20 = scalar_lea.smem %s0, 10
  %s21 = sld [smem:[%s20]]
  %s22 = scalar_lea.smem %s0, 11
  %s23 = sld [smem:[%s22]]
  %s24 = scalar_lea.smem %s0, 12
  %s25 = sld [smem:[%s24]]
  %s26 = scalar_lea.smem %s0, 13
  %s27 = sld [smem:[%s26]]
  %s28 = scalar_lea.smem %s0, 14
  %s29 = sld [smem:[%s28]]
  %s30 = scalar_lea.smem %s0, 15
  %s31 = sld [smem:[%s30]]
  %s32 = scalar_lea.smem %s0, 16
  %s33 = sld [smem:[%s32]]
  %s34 = scalar_lea.smem %s0, 17
  %s35 = sld [smem:[%s34]]
  %s36 = scalar_lea.smem %s0, 18
  %s37 = sld [smem:[%s36]]
  %s38 = scalar_lea.smem %s0, 19
  %s39 = sld [smem:[%s38]]
  %s40 = scalar_lea.smem %s0, 20
  %s41 = sld [smem:[%s40]]
  %s42 = scalar_lea.smem %s0, 21
  %s43 = sld [smem:[%s42]]
  %s44 = scalar_lea.smem %s0, 22
  %s45 = sld [smem:[%s44]]
  %s46 = scalar_lea.smem %s0, 23
  %s47 = sld [smem:[%s46]]
  %s48 = scalar_lea.smem %s0, 24
  %s49 = sld [smem:[%s48]]
  %s50 = scalar_lea.smem %s0, 25
  %s51 = sld [smem:[%s50]]
  %s52 = scalar_lea.smem %s0, 26
  %s53 = sld [smem:[%s52]]
  %s54 = scalar_lea.smem %s0, 27
  %s55 = sld [smem:[%s54]]
  %s56 = scalar_lea.smem %s0, 28
  %s57 = sld [smem:[%s56]]
  %s58 = scalar_lea.smem %s0, 29
  %s59 = sld [smem:[%s58]]
  %s60 = scalar_lea.smem %s0, 30
  %s61 = sld [smem:[%s60]]
  %62 = xla_tuple %s59, %s61
  %s63 = sld [smem:[#allocation0]]
  $region205: #{_lambda_.1} parent=0
    _
  %s65 = ssub.s32 1, %s63
  %s66 = scalar_select 0, %s65, %s63
  %v67 = vstv %s57
  %68 = vst [vmem:[#allocation2] sm:$0x1] %v67
  $region1: #{_lambda_.1} parent=0
    #allocation3 [shape = 'u8[8192]{0}', space=vmem, size = 0x2000, scoped, tag = 'input window, operand 1, single buffered']
    #allocation4 [shape = 's32[2]{0}', space=sflag, size = 0x8, scoped, tag = 'scoped memory for _lambda_.1']
    #allocation5 [shape = 's32[2]{0}', space=sflag, size = 0x8, scoped, tag = 'scoped memory for _lambda_.1']
    #allocation6 [shape = 'u8[8192]{0}', space=vmem, size = 0x2000, scoped, tag = 'input window, operand 2, single buffered']
    #allocation7 [shape = 's32[1]{0}', space=sflag, size = 0x4, scoped, tag = 'scoped memory for _lambda_.1']
    #allocation8 [shape = 'u8[512]{0}', space=vmem, size = 0x400, scoped, tag = 'input window, operand 4, single buffered']
    #allocation9 [shape = 'u8[4096]{0}', space=vmem, size = 0x1000, scoped, tag = 'input window, operand 5, single buffered']
    #allocation10 [shape = 's32[1]{0}', space=sflag, size = 0x4, scoped, tag = 'scoped memory for _lambda_.1']
    #allocation11 [shape = 'u8[512]{0}', space=vmem, size = 0x400, scoped, tag = 'input window, operand 6, single buffered']
    #allocation12 [shape = 'u8[16384]{0}', space=vmem, size = 0x4000, scoped, tag = 'input window, operand 9, single buffered']
    #allocation13 [shape = 's32[1]{0}', space=sflag, size = 0x4, scoped, tag = 'scoped memory for _lambda_.1']
    #allocation14 [shape = 'u8[1024]{0}', space=vmem, size = 0x400, scoped, tag = 'input window, operand 10, single buffered']
    #allocation15 [shape = 'u8[16384]{0}', space=vmem, size = 0x4000, scoped, tag = 'input window, operand 13, single buffered']
    #allocation16 [shape = 's32[1]{0}', space=sflag, size = 0x4, scoped, tag = 'scoped memory for _lambda_.1']
    #allocation17 [shape = 'u8[16384]{0}', space=vmem, size = 0x4000, scoped, tag = 'input window, operand 15, single buffered']
    #allocation18 [shape = 'u8[16384]{0}', space=vmem, size = 0x4000, scoped, tag = 'input window, operand 21, single buffered']
    #allocation19 [shape = 's32[1]{0}', space=sflag, size = 0x4, scoped, tag = 'scoped memory for _lambda_.1']
    #allocation20 [shape = 'u8[65536]{0}', space=vmem, size = 0x10000, scoped, tag = 'input window, operand 23, single buffered']
    #allocation21 [shape = 'u8[65536]{0}', space=vmem, size = 0x10000, scoped, tag = 'input window, operand 25, single buffered']
    #allocation22 [shape = 's32[1]{0}', space=sflag, size = 0x4, scoped, tag = 'scoped memory for _lambda_.1']
    #allocation23 [shape = 'u8[1024]{0}', space=vmem, size = 0x400, scoped, tag = 'output window, operand 0']
    %69 = vsyncpa [#allocation4], 0
    %70 = vsyncpa [#allocation7], 0
    %71 = vsyncpa [#allocation10], 0
    %72 = vsyncpa [#allocation13], 0
    %73 = vsyncpa [#allocation16], 0
    %74 = vsyncpa [#allocation19], 0
    %75 = vsyncpa [#allocation22], 0
    %76 = vsyncpa [#allocation5], 0
    %s77 = scalar_lea.sflag [#allocation5], 1
    %78 = vsyncpa %s77, 0
    loop: start=0, step=1, limit=4
    $region2: #{_lambda_.1} parent=1 // loop_pre_header
      _
    $region3: #{_lambda_.1} parent=1 // loop_header
      %s80 = sphi 0, %s84
      %p81 = scmp.ge.s32.totalorder %s80, 4
      %s90 = sphi 0, %s92
      %s93 = sphi 0, %s90
      %s94 = sphi 0, %s93
      %s110 = sphi 0, %s94
      %s114 = sphi 0, %s114
      %s116 = sphi 0, %s114
      %s117 = sphi 0, %s116
      %s131 = sphi 0, %s117
      %s135 = sphi 0, %s135
      %s137 = sphi 0, %s135
      %s138 = sphi 0, %s137
      %s152 = sphi 0, %s138
      %s158 = sphi 0, %s160
      %s161 = sphi 0, %s158
      %s162 = sphi 0, %s161
      %s178 = sphi 0, %s162
      %s182 = sphi 0, %s182
      %s184 = sphi 0, %s182
      %s185 = sphi 0, %s184
      %s199 = sphi 0, %s185
      %s203 = sphi 0, %s203
      %s205 = sphi 0, %s203
      %s206 = sphi 0, %s205
      %s220 = sphi 0, %s206
      %s224 = sphi 0, %s224
      %s226 = sphi 0, %s224
      %s227 = sphi 0, %s226
      %s241 = sphi 0, %s227
      %s245 = sphi 0, %s245
      %s247 = sphi 0, %s245
      %s248 = sphi 0, %s247
      %s262 = sphi 0, %s248
      %s266 = sphi 0, %s266
      %s268 = sphi 0, %s266
      %s269 = sphi 0, %s268
      %s283 = sphi 0, %s269
      %s287 = sphi 0, %s287
      %s289 = sphi 0, %s287
      %s290 = sphi 0, %s289
      %s304 = sphi 0, %s290
      %s308 = sphi 0, %s308
      %s310 = sphi 0, %s308
      %s311 = sphi 0, %s310
      %s325 = sphi 0, %s311
      %s329 = sphi 0, %s329
      %s331 = sphi 0, %s329
      %s332 = sphi 0, %s331
      %s346 = sphi 0, %s332
      %s350 = sphi 0, %s350
      %s352 = sphi 0, %s350
      %s353 = sphi 0, %s352
      %s367 = sphi 0, %s353
      %s371 = sphi 0, %s371
      %s373 = sphi 0, %s371
      %s374 = sphi 0, %s373
      %s388 = sphi 0, %s374
      %s392 = sphi 0, %s392
      %s394 = sphi 0, %s392
      %s395 = sphi 0, %s394
      %s409 = sphi 0, %s395
      %s413 = sphi 0, %s413
      %s415 = sphi 0, %s413
      %s416 = sphi 0, %s415
      %s430 = sphi 0, %s416
      %s434 = sphi 0, %s434
      %s436 = sphi 0, %s434
      %s437 = sphi 0, %s436
      %s451 = sphi 0, %s437
      %s455 = sphi 0, %s455
      %s457 = sphi 0, %s455
      %s458 = sphi 0, %s457
      %s472 = sphi 0, %s458
      %s476 = sphi 0, %s476
      %s478 = sphi 0, %s476
      %s479 = sphi 0, %s478
      %s493 = sphi 0, %s479
      %s497 = sphi 0, %s497
      %s499 = sphi 0, %s497
      %s500 = sphi 0, %s499
      %s514 = sphi 0, %s500
      %s518 = sphi 0, %s518
      %s520 = sphi 0, %s518
      %s521 = sphi 0, %s520
      %s535 = sphi 0, %s521
      %s539 = sphi 0, %s539
      %s541 = sphi 0, %s539
      %s542 = sphi 0, %s541
      %s556 = sphi 0, %s542
      %s560 = sphi 0, %s560
      %s562 = sphi 0, %s560
      %s563 = sphi 0, %s562
      %s577 = sphi 0, %s563
      %s581 = sphi 0, %s581
      %s583 = sphi 0, %s581
      %s584 = sphi 0, %s583
      %s598 = sphi 0, %s584
      %s602 = sphi 0, %s602
      %s604 = sphi 0, %s602
      %s605 = sphi 0, %s604
      %s619 = sphi 0, %s605
      %s623 = sphi 0, %s623
      %s625 = sphi 0, %s623
      %s626 = sphi 0, %s625
      %s640 = sphi 0, %s626
      %s644 = sphi 0, %s644
      %s646 = sphi 0, %s644
      %s647 = sphi 0, %s646
      %s661 = sphi 0, %s647
      %s665 = sphi 0, %s665
      %s667 = sphi 0, %s665
      %s668 = sphi 0, %s667
      %s682 = sphi 0, %s668
      %s686 = sphi 0, %s686
      %s688 = sphi 0, %s686
      %s689 = sphi 0, %s688
      %s703 = sphi 0, %s689
      %s709 = sphi 0, %s711
      %s712 = sphi 0, %s709
      %s713 = sphi 0, %s712
      %s729 = sphi 0, %s713
      %s735 = sphi 0, %s737
      %s738 = sphi 0, %s735
      %s739 = sphi 0, %s738
      %s755 = sphi 0, %s739
    $region4: #{_lambda_.1} parent=1 // loop_header_branch
      %83 = sbr.rel (%p81) target = $region8
    $region5: #{_lambda_.1} parent=1 // loop_body
      %s85 = ssub.s32 %s80, 1
      %s86 = ssub.s32 %s80, 2
      %s87 = sadd.s32 %s80, 1
      %s88 = ssub.s32 %s80, %s87
      %p89 = scmp.eq.s32.totalorder %s88, 0
      %s91 = sadd.s32 %s90, 1
      %s92 = scalar_select %p89, %s90, %s91
      %p95 = pneg %p89
      %p96 = scmp.eq.s32.totalorder %s80, 1
      %p97 = por %p95, %p96
      %p98 = scmp.ne.s32.totalorder %s90, %s93
      %p99 = scmp.eq.s32.totalorder %s80, 0
      %p100 = por %p98, %p99
      %p101 = scmp.ne.s32.totalorder %s90, %s93
      %p102 = scmp.eq.s32.totalorder %s85, 1
      %p103 = por %p101, %p102
      %p104 = scmp.ne.s32.totalorder %s93, %s94
      %p105 = scmp.eq.s32.totalorder %s85, 0
      %p106 = por %p104, %p105
      %p107 = scmp.ne.s32.totalorder %s93, %s94
      %p108 = scmp.eq.s32.totalorder %s86, 1
      %p109 = por %p107, %p108
      %p111 = scmp.ne.s32.totalorder %s94, %s110
      %p112 = scmp.eq.s32.totalorder %s86, 0
      %p113 = por %p111, %p112
      %s115 = sadd.s32 %s114, 1
      %p118 = scmp.eq.s32.totalorder %s80, 1
      %p119 = scmp.ne.s32.totalorder %s114, %s116
      %p120 = scmp.eq.s32.totalorder %s80, 0
      %p121 = por %p119, %p120
      %p122 = scmp.ne.s32.totalorder %s114, %s116
      %p123 = scmp.eq.s32.totalorder %s85, 1
      %p124 = por %p122, %p123
      %p125 = scmp.ne.s32.totalorder %s116, %s117
      %p126 = scmp.eq.s32.totalorder %s85, 0
      %p127 = por %p125, %p126
      %p128 = scmp.ne.s32.totalorder %s116, %s117
      %p129 = scmp.eq.s32.totalorder %s86, 1
      %p130 = por %p128, %p129
      %p132 = scmp.ne.s32.totalorder %s117, %s131
      %p133 = scmp.eq.s32.totalorder %s86, 0
      %p134 = por %p132, %p133
      %s136 = sadd.s32 %s135, 1
      %p139 = scmp.eq.s32.totalorder %s80, 1
      %p140 = scmp.ne.s32.totalorder %s135, %s137
      %p141 = scmp.eq.s32.totalorder %s80, 0
      %p142 = por %p140, %p141
      %p143 = scmp.ne.s32.totalorder %s135, %s137
      %p144 = scmp.eq.s32.totalorder %s85, 1
      %p145 = por %p143, %p144
      %p146 = scmp.ne.s32.totalorder %s137, %s138
      %p147 = scmp.eq.s32.totalorder %s85, 0
      %p148 = por %p146, %p147
      %p149 = scmp.ne.s32.totalorder %s137, %s138
      %p150 = scmp.eq.s32.totalorder %s86, 1
      %p151 = por %p149, %p150
      %p153 = scmp.ne.s32.totalorder %s138, %s152
      %p154 = scmp.eq.s32.totalorder %s86, 0
      %p155 = por %p153, %p154
      %s156 = ssub.s32 %s80, %s87
      %p157 = scmp.eq.s32.totalorder %s156, 0
      %s159 = sadd.s32 %s158, 1
      %s160 = scalar_select %p157, %s158, %s159
      %p163 = pneg %p157
      %p164 = scmp.eq.s32.totalorder %s80, 1
      %p165 = por %p163, %p164
      %p166 = scmp.ne.s32.totalorder %s158, %s161
      %p167 = scmp.eq.s32.totalorder %s80, 0
      %p168 = por %p166, %p167
      %p169 = scmp.ne.s32.totalorder %s158, %s161
      %p170 = scmp.eq.s32.totalorder %s85, 1
      %p171 = por %p169, %p170
      %p172 = scmp.ne.s32.totalorder %s161, %s162
      %p173 = scmp.eq.s32.totalorder %s85, 0
      %p174 = por %p172, %p173
      %p175 = scmp.ne.s32.totalorder %s161, %s162
      %p176 = scmp.eq.s32.totalorder %s86, 1
      %p177 = por %p175, %p176
      %p179 = scmp.ne.s32.totalorder %s162, %s178
      %p180 = scmp.eq.s32.totalorder %s86, 0
      %p181 = por %p179, %p180
      %s183 = sadd.s32 %s182, 1
      %p186 = scmp.eq.s32.totalorder %s80, 1
      %p187 = scmp.ne.s32.totalorder %s182, %s184
      %p188 = scmp.eq.s32.totalorder %s80, 0
      %p189 = por %p187, %p188
      %p190 = scmp.ne.s32.totalorder %s182, %s184
      %p191 = scmp.eq.s32.totalorder %s85, 1
      %p192 = por %p190, %p191
      %p193 = scmp.ne.s32.totalorder %s184, %s185
      %p194 = scmp.eq.s32.totalorder %s85, 0
      %p195 = por %p193, %p194
      %p196 = scmp.ne.s32.totalorder %s184, %s185
      %p197 = scmp.eq.s32.totalorder %s86, 1
      %p198 = por %p196, %p197
      %p200 = scmp.ne.s32.totalorder %s185, %s199
      %p201 = scmp.eq.s32.totalorder %s86, 0
      %p202 = por %p200, %p201
      %s204 = sadd.s32 %s203, 1
      %p207 = scmp.eq.s32.totalorder %s80, 1
      %p208 = scmp.ne.s32.totalorder %s203, %s205
      %p209 = scmp.eq.s32.totalorder %s80, 0
      %p210 = por %p208, %p209
      %p211 = scmp.ne.s32.totalorder %s203, %s205
      %p212 = scmp.eq.s32.totalorder %s85, 1
      %p213 = por %p211, %p212
      %p214 = scmp.ne.s32.totalorder %s205, %s206
      %p215 = scmp.eq.s32.totalorder %s85, 0
      %p216 = por %p214, %p215
      %p217 = scmp.ne.s32.totalorder %s205, %s206
      %p218 = scmp.eq.s32.totalorder %s86, 1
      %p219 = por %p217, %p218
      %p221 = scmp.ne.s32.totalorder %s206, %s220
      %p222 = scmp.eq.s32.totalorder %s86, 0
      %p223 = por %p221, %p222
      %s225 = sadd.s32 %s224, 1
      %p228 = scmp.eq.s32.totalorder %s80, 1
      %p229 = scmp.ne.s32.totalorder %s224, %s226
      %p230 = scmp.eq.s32.totalorder %s80, 0
      %p231 = por %p229, %p230
      %p232 = scmp.ne.s32.totalorder %s224, %s226
      %p233 = scmp.eq.s32.totalorder %s85, 1
      %p234 = por %p232, %p233
      %p235 = scmp.ne.s32.totalorder %s226, %s227
      %p236 = scmp.eq.s32.totalorder %s85, 0
      %p237 = por %p235, %p236
      %p238 = scmp.ne.s32.totalorder %s226, %s227
      %p239 = scmp.eq.s32.totalorder %s86, 1
      %p240 = por %p238, %p239
      %p242 = scmp.ne.s32.totalorder %s227, %s241
      %p243 = scmp.eq.s32.totalorder %s86, 0
      %p244 = por %p242, %p243
      %s246 = sadd.s32 %s245, 1
      %p249 = scmp.eq.s32.totalorder %s80, 1
      %p250 = scmp.ne.s32.totalorder %s245, %s247
      %p251 = scmp.eq.s32.totalorder %s80, 0
      %p252 = por %p250, %p251
      %p253 = scmp.ne.s32.totalorder %s245, %s247
      %p254 = scmp.eq.s32.totalorder %s85, 1
      %p255 = por %p253, %p254
      %p256 = scmp.ne.s32.totalorder %s247, %s248
      %p257 = scmp.eq.s32.totalorder %s85, 0
      %p258 = por %p256, %p257
      %p259 = scmp.ne.s32.totalorder %s247, %s248
      %p260 = scmp.eq.s32.totalorder %s86, 1
      %p261 = por %p259, %p260
      %p263 = scmp.ne.s32.totalorder %s248, %s262
      %p264 = scmp.eq.s32.totalorder %s86, 0
      %p265 = por %p263, %p264
      %s267 = sadd.s32 %s266, 1
      %p270 = scmp.eq.s32.totalorder %s80, 1
      %p271 = scmp.ne.s32.totalorder %s266, %s268
      %p272 = scmp.eq.s32.totalorder %s80, 0
      %p273 = por %p271, %p272
      %p274 = scmp.ne.s32.totalorder %s266, %s268
      %p275 = scmp.eq.s32.totalorder %s85, 1
      %p276 = por %p274, %p275
      %p277 = scmp.ne.s32.totalorder %s268, %s269
      %p278 = scmp.eq.s32.totalorder %s85, 0
      %p279 = por %p277, %p278
      %p280 = scmp.ne.s32.totalorder %s268, %s269
      %p281 = scmp.eq.s32.totalorder %s86, 1
      %p282 = por %p280, %p281
      %p284 = scmp.ne.s32.totalorder %s269, %s283
      %p285 = scmp.eq.s32.totalorder %s86, 0
      %p286 = por %p284, %p285
      %s288 = sadd.s32 %s287, 1
      %p291 = scmp.eq.s32.totalorder %s80, 1
      %p292 = scmp.ne.s32.totalorder %s287, %s289
      %p293 = scmp.eq.s32.totalorder %s80, 0
      %p294 = por %p292, %p293
      %p295 = scmp.ne.s32.totalorder %s287, %s289
      %p296 = scmp.eq.s32.totalorder %s85, 1
      %p297 = por %p295, %p296
      %p298 = scmp.ne.s32.totalorder %s289, %s290
      %p299 = scmp.eq.s32.totalorder %s85, 0
      %p300 = por %p298, %p299
      %p301 = scmp.ne.s32.totalorder %s289, %s290
      %p302 = scmp.eq.s32.totalorder %s86, 1
      %p303 = por %p301, %p302
      %p305 = scmp.ne.s32.totalorder %s290, %s304
      %p306 = scmp.eq.s32.totalorder %s86, 0
      %p307 = por %p305, %p306
      %s309 = sadd.s32 %s308, 1
      %p312 = scmp.eq.s32.totalorder %s80, 1
      %p313 = scmp.ne.s32.totalorder %s308, %s310
      %p314 = scmp.eq.s32.totalorder %s80, 0
      %p315 = por %p313, %p314
      %p316 = scmp.ne.s32.totalorder %s308, %s310
      %p317 = scmp.eq.s32.totalorder %s85, 1
      %p318 = por %p316, %p317
      %p319 = scmp.ne.s32.totalorder %s310, %s311
      %p320 = scmp.eq.s32.totalorder %s85, 0
      %p321 = por %p319, %p320
      %p322 = scmp.ne.s32.totalorder %s310, %s311
      %p323 = scmp.eq.s32.totalorder %s86, 1
      %p324 = por %p322, %p323
      %p326 = scmp.ne.s32.totalorder %s311, %s325
      %p327 = scmp.eq.s32.totalorder %s86, 0
      %p328 = por %p326, %p327
      %s330 = sadd.s32 %s329, 1
      %p333 = scmp.eq.s32.totalorder %s80, 1
      %p334 = scmp.ne.s32.totalorder %s329, %s331
      %p335 = scmp.eq.s32.totalorder %s80, 0
      %p336 = por %p334, %p335
      %p337 = scmp.ne.s32.totalorder %s329, %s331
      %p338 = scmp.eq.s32.totalorder %s85, 1
      %p339 = por %p337, %p338
      %p340 = scmp.ne.s32.totalorder %s331, %s332
      %p341 = scmp.eq.s32.totalorder %s85, 0
      %p342 = por %p340, %p341
      %p343 = scmp.ne.s32.totalorder %s331, %s332
      %p344 = scmp.eq.s32.totalorder %s86, 1
      %p345 = por %p343, %p344
      %p347 = scmp.ne.s32.totalorder %s332, %s346
      %p348 = scmp.eq.s32.totalorder %s86, 0
      %p349 = por %p347, %p348
      %s351 = sadd.s32 %s350, 1
      %p354 = scmp.eq.s32.totalorder %s80, 1
      %p355 = scmp.ne.s32.totalorder %s350, %s352
      %p356 = scmp.eq.s32.totalorder %s80, 0
      %p357 = por %p355, %p356
      %p358 = scmp.ne.s32.totalorder %s350, %s352
      %p359 = scmp.eq.s32.totalorder %s85, 1
      %p360 = por %p358, %p359
      %p361 = scmp.ne.s32.totalorder %s352, %s353
      %p362 = scmp.eq.s32.totalorder %s85, 0
      %p363 = por %p361, %p362
      %p364 = scmp.ne.s32.totalorder %s352, %s353
      %p365 = scmp.eq.s32.totalorder %s86, 1
      %p366 = por %p364, %p365
      %p368 = scmp.ne.s32.totalorder %s353, %s367
      %p369 = scmp.eq.s32.totalorder %s86, 0
      %p370 = por %p368, %p369
      %s372 = sadd.s32 %s371, 1
      %p375 = scmp.eq.s32.totalorder %s80, 1
      %p376 = scmp.ne.s32.totalorder %s371, %s373
      %p377 = scmp.eq.s32.totalorder %s80, 0
      %p378 = por %p376, %p377
      %p379 = scmp.ne.s32.totalorder %s371, %s373
      %p380 = scmp.eq.s32.totalorder %s85, 1
      %p381 = por %p379, %p380
      %p382 = scmp.ne.s32.totalorder %s373, %s374
      %p383 = scmp.eq.s32.totalorder %s85, 0
      %p384 = por %p382, %p383
      %p385 = scmp.ne.s32.totalorder %s373, %s374
      %p386 = scmp.eq.s32.totalorder %s86, 1
      %p387 = por %p385, %p386
      %p389 = scmp.ne.s32.totalorder %s374, %s388
      %p390 = scmp.eq.s32.totalorder %s86, 0
      %p391 = por %p389, %p390
      %s393 = sadd.s32 %s392, 1
      %p396 = scmp.eq.s32.totalorder %s80, 1
      %p397 = scmp.ne.s32.totalorder %s392, %s394
      %p398 = scmp.eq.s32.totalorder %s80, 0
      %p399 = por %p397, %p398
      %p400 = scmp.ne.s32.totalorder %s392, %s394
      %p401 = scmp.eq.s32.totalorder %s85, 1
      %p402 = por %p400, %p401
      %p403 = scmp.ne.s32.totalorder %s394, %s395
      %p404 = scmp.eq.s32.totalorder %s85, 0
      %p405 = por %p403, %p404
      %p406 = scmp.ne.s32.totalorder %s394, %s395
      %p407 = scmp.eq.s32.totalorder %s86, 1
      %p408 = por %p406, %p407
      %p410 = scmp.ne.s32.totalorder %s395, %s409
      %p411 = scmp.eq.s32.totalorder %s86, 0
      %p412 = por %p410, %p411
      %s414 = sadd.s32 %s413, 1
      %p417 = scmp.eq.s32.totalorder %s80, 1
      %p418 = scmp.ne.s32.totalorder %s413, %s415
      %p419 = scmp.eq.s32.totalorder %s80, 0
      %p420 = por %p418, %p419
      %p421 = scmp.ne.s32.totalorder %s413, %s415
      %p422 = scmp.eq.s32.totalorder %s85, 1
      %p423 = por %p421, %p422
      %p424 = scmp.ne.s32.totalorder %s415, %s416
      %p425 = scmp.eq.s32.totalorder %s85, 0
      %p426 = por %p424, %p425
      %p427 = scmp.ne.s32.totalorder %s415, %s416
      %p428 = scmp.eq.s32.totalorder %s86, 1
      %p429 = por %p427, %p428
      %p431 = scmp.ne.s32.totalorder %s416, %s430
      %p432 = scmp.eq.s32.totalorder %s86, 0
      %p433 = por %p431, %p432
      %s435 = sadd.s32 %s434, 1
      %p438 = scmp.eq.s32.totalorder %s80, 1
      %p439 = scmp.ne.s32.totalorder %s434, %s436
      %p440 = scmp.eq.s32.totalorder %s80, 0
      %p441 = por %p439, %p440
      %p442 = scmp.ne.s32.totalorder %s434, %s436
      %p443 = scmp.eq.s32.totalorder %s85, 1
      %p444 = por %p442, %p443
      %p445 = scmp.ne.s32.totalorder %s436, %s437
      %p446 = scmp.eq.s32.totalorder %s85, 0
      %p447 = por %p445, %p446
      %p448 = scmp.ne.s32.totalorder %s436, %s437
      %p449 = scmp.eq.s32.totalorder %s86, 1
      %p450 = por %p448, %p449
      %p452 = scmp.ne.s32.totalorder %s437, %s451
      %p453 = scmp.eq.s32.totalorder %s86, 0
      %p454 = por %p452, %p453
      %s456 = sadd.s32 %s455, 1
      %p459 = scmp.eq.s32.totalorder %s80, 1
      %p460 = scmp.ne.s32.totalorder %s455, %s457
      %p461 = scmp.eq.s32.totalorder %s80, 0
      %p462 = por %p460, %p461
      %p463 = scmp.ne.s32.totalorder %s455, %s457
      %p464 = scmp.eq.s32.totalorder %s85, 1
      %p465 = por %p463, %p464
      %p466 = scmp.ne.s32.totalorder %s457, %s458
      %p467 = scmp.eq.s32.totalorder %s85, 0
      %p468 = por %p466, %p467
      %p469 = scmp.ne.s32.totalorder %s457, %s458
      %p470 = scmp.eq.s32.totalorder %s86, 1
      %p471 = por %p469, %p470
      %p473 = scmp.ne.s32.totalorder %s458, %s472
      %p474 = scmp.eq.s32.totalorder %s86, 0
      %p475 = por %p473, %p474
      %s477 = sadd.s32 %s476, 1
      %p480 = scmp.eq.s32.totalorder %s80, 1
      %p481 = scmp.ne.s32.totalorder %s476, %s478
      %p482 = scmp.eq.s32.totalorder %s80, 0
      %p483 = por %p481, %p482
      %p484 = scmp.ne.s32.totalorder %s476, %s478
      %p485 = scmp.eq.s32.totalorder %s85, 1
      %p486 = por %p484, %p485
      %p487 = scmp.ne.s32.totalorder %s478, %s479
      %p488 = scmp.eq.s32.totalorder %s85, 0
      %p489 = por %p487, %p488
      %p490 = scmp.ne.s32.totalorder %s478, %s479
      %p491 = scmp.eq.s32.totalorder %s86, 1
      %p492 = por %p490, %p491
      %p494 = scmp.ne.s32.totalorder %s479, %s493
      %p495 = scmp.eq.s32.totalorder %s86, 0
      %p496 = por %p494, %p495
      %s498 = sadd.s32 %s497, 1
      %p501 = scmp.eq.s32.totalorder %s80, 1
      %p502 = scmp.ne.s32.totalorder %s497, %s499
      %p503 = scmp.eq.s32.totalorder %s80, 0
      %p504 = por %p502, %p503
      %p505 = scmp.ne.s32.totalorder %s497, %s499
      %p506 = scmp.eq.s32.totalorder %s85, 1
      %p507 = por %p505, %p506
      %p508 = scmp.ne.s32.totalorder %s499, %s500
      %p509 = scmp.eq.s32.totalorder %s85, 0
      %p510 = por %p508, %p509
      %p511 = scmp.ne.s32.totalorder %s499, %s500
      %p512 = scmp.eq.s32.totalorder %s86, 1
      %p513 = por %p511, %p512
      %p515 = scmp.ne.s32.totalorder %s500, %s514
      %p516 = scmp.eq.s32.totalorder %s86, 0
      %p517 = por %p515, %p516
      %s519 = sadd.s32 %s518, 1
      %p522 = scmp.eq.s32.totalorder %s80, 1
      %p523 = scmp.ne.s32.totalorder %s518, %s520
      %p524 = scmp.eq.s32.totalorder %s80, 0
      %p525 = por %p523, %p524
      %p526 = scmp.ne.s32.totalorder %s518, %s520
      %p527 = scmp.eq.s32.totalorder %s85, 1
      %p528 = por %p526, %p527
      %p529 = scmp.ne.s32.totalorder %s520, %s521
      %p530 = scmp.eq.s32.totalorder %s85, 0
      %p531 = por %p529, %p530
      %p532 = scmp.ne.s32.totalorder %s520, %s521
      %p533 = scmp.eq.s32.totalorder %s86, 1
      %p534 = por %p532, %p533
      %p536 = scmp.ne.s32.totalorder %s521, %s535
      %p537 = scmp.eq.s32.totalorder %s86, 0
      %p538 = por %p536, %p537
      %s540 = sadd.s32 %s539, 1
      %p543 = scmp.eq.s32.totalorder %s80, 1
      %p544 = scmp.ne.s32.totalorder %s539, %s541
      %p545 = scmp.eq.s32.totalorder %s80, 0
      %p546 = por %p544, %p545
      %p547 = scmp.ne.s32.totalorder %s539, %s541
      %p548 = scmp.eq.s32.totalorder %s85, 1
      %p549 = por %p547, %p548
      %p550 = scmp.ne.s32.totalorder %s541, %s542
      %p551 = scmp.eq.s32.totalorder %s85, 0
      %p552 = por %p550, %p551
      %p553 = scmp.ne.s32.totalorder %s541, %s542
      %p554 = scmp.eq.s32.totalorder %s86, 1
      %p555 = por %p553, %p554
      %p557 = scmp.ne.s32.totalorder %s542, %s556
      %p558 = scmp.eq.s32.totalorder %s86, 0
      %p559 = por %p557, %p558
      %s561 = sadd.s32 %s560, 1
      %p564 = scmp.eq.s32.totalorder %s80, 1
      %p565 = scmp.ne.s32.totalorder %s560, %s562
      %p566 = scmp.eq.s32.totalorder %s80, 0
      %p567 = por %p565, %p566
      %p568 = scmp.ne.s32.totalorder %s560, %s562
      %p569 = scmp.eq.s32.totalorder %s85, 1
      %p570 = por %p568, %p569
      %p571 = scmp.ne.s32.totalorder %s562, %s563
      %p572 = scmp.eq.s32.totalorder %s85, 0
      %p573 = por %p571, %p572
      %p574 = scmp.ne.s32.totalorder %s562, %s563
      %p575 = scmp.eq.s32.totalorder %s86, 1
      %p576 = por %p574, %p575
      %p578 = scmp.ne.s32.totalorder %s563, %s577
      %p579 = scmp.eq.s32.totalorder %s86, 0
      %p580 = por %p578, %p579
      %s582 = sadd.s32 %s581, 1
      %p585 = scmp.eq.s32.totalorder %s80, 1
      %p586 = scmp.ne.s32.totalorder %s581, %s583
      %p587 = scmp.eq.s32.totalorder %s80, 0
      %p588 = por %p586, %p587
      %p589 = scmp.ne.s32.totalorder %s581, %s583
      %p590 = scmp.eq.s32.totalorder %s85, 1
      %p591 = por %p589, %p590
      %p592 = scmp.ne.s32.totalorder %s583, %s584
      %p593 = scmp.eq.s32.totalorder %s85, 0
      %p594 = por %p592, %p593
      %p595 = scmp.ne.s32.totalorder %s583, %s584
      %p596 = scmp.eq.s32.totalorder %s86, 1
      %p597 = por %p595, %p596
      %p599 = scmp.ne.s32.totalorder %s584, %s598
      %p600 = scmp.eq.s32.totalorder %s86, 0
      %p601 = por %p599, %p600
      %s603 = sadd.s32 %s602, 1
      %p606 = scmp.eq.s32.totalorder %s80, 1
      %p607 = scmp.ne.s32.totalorder %s602, %s604
      %p608 = scmp.eq.s32.totalorder %s80, 0
      %p609 = por %p607, %p608
      %p610 = scmp.ne.s32.totalorder %s602, %s604
      %p611 = scmp.eq.s32.totalorder %s85, 1
      %p612 = por %p610, %p611
      %p613 = scmp.ne.s32.totalorder %s604, %s605
      %p614 = scmp.eq.s32.totalorder %s85, 0
      %p615 = por %p613, %p614
      %p616 = scmp.ne.s32.totalorder %s604, %s605
      %p617 = scmp.eq.s32.totalorder %s86, 1
      %p618 = por %p616, %p617
      %p620 = scmp.ne.s32.totalorder %s605, %s619
      %p621 = scmp.eq.s32.totalorder %s86, 0
      %p622 = por %p620, %p621
      %s624 = sadd.s32 %s623, 1
      %p627 = scmp.eq.s32.totalorder %s80, 1
      %p628 = scmp.ne.s32.totalorder %s623, %s625
      %p629 = scmp.eq.s32.totalorder %s80, 0
      %p630 = por %p628, %p629
      %p631 = scmp.ne.s32.totalorder %s623, %s625
      %p632 = scmp.eq.s32.totalorder %s85, 1
      %p633 = por %p631, %p632
      %p634 = scmp.ne.s32.totalorder %s625, %s626
      %p635 = scmp.eq.s32.totalorder %s85, 0
      %p636 = por %p634, %p635
      %p637 = scmp.ne.s32.totalorder %s625, %s626
      %p638 = scmp.eq.s32.totalorder %s86, 1
      %p639 = por %p637, %p638
      %p641 = scmp.ne.s32.totalorder %s626, %s640
      %p642 = scmp.eq.s32.totalorder %s86, 0
      %p643 = por %p641, %p642
      %s645 = sadd.s32 %s644, 1
      %p648 = scmp.eq.s32.totalorder %s80, 1
      %p649 = scmp.ne.s32.totalorder %s644, %s646
      %p650 = scmp.eq.s32.totalorder %s80, 0
      %p651 = por %p649, %p650
      %p652 = scmp.ne.s32.totalorder %s644, %s646
      %p653 = scmp.eq.s32.totalorder %s85, 1
      %p654 = por %p652, %p653
      %p655 = scmp.ne.s32.totalorder %s646, %s647
      %p656 = scmp.eq.s32.totalorder %s85, 0
      %p657 = por %p655, %p656
      %p658 = scmp.ne.s32.totalorder %s646, %s647
      %p659 = scmp.eq.s32.totalorder %s86, 1
      %p660 = por %p658, %p659
      %p662 = scmp.ne.s32.totalorder %s647, %s661
      %p663 = scmp.eq.s32.totalorder %s86, 0
      %p664 = por %p662, %p663
      %s666 = sadd.s32 %s665, 1
      %p669 = scmp.eq.s32.totalorder %s80, 1
      %p670 = scmp.ne.s32.totalorder %s665, %s667
      %p671 = scmp.eq.s32.totalorder %s80, 0
      %p672 = por %p670, %p671
      %p673 = scmp.ne.s32.totalorder %s665, %s667
      %p674 = scmp.eq.s32.totalorder %s85, 1
      %p675 = por %p673, %p674
      %p676 = scmp.ne.s32.totalorder %s667, %s668
      %p677 = scmp.eq.s32.totalorder %s85, 0
      %p678 = por %p676, %p677
      %p679 = scmp.ne.s32.totalorder %s667, %s668
      %p680 = scmp.eq.s32.totalorder %s86, 1
      %p681 = por %p679, %p680
      %p683 = scmp.ne.s32.totalorder %s668, %s682
      %p684 = scmp.eq.s32.totalorder %s86, 0
      %p685 = por %p683, %p684
      %s687 = sadd.s32 %s686, 1
      %p690 = scmp.eq.s32.totalorder %s80, 1
      %p691 = scmp.ne.s32.totalorder %s686, %s688
      %p692 = scmp.eq.s32.totalorder %s80, 0
      %p693 = por %p691, %p692
      %p694 = scmp.ne.s32.totalorder %s686, %s688
      %p695 = scmp.eq.s32.totalorder %s85, 1
      %p696 = por %p694, %p695
      %p697 = scmp.ne.s32.totalorder %s688, %s689
      %p698 = scmp.eq.s32.totalorder %s85, 0
      %p699 = por %p697, %p698
      %p700 = scmp.ne.s32.totalorder %s688, %s689
      %p701 = scmp.eq.s32.totalorder %s86, 1
      %p702 = por %p700, %p701
      %p704 = scmp.ne.s32.totalorder %s689, %s703
      %p705 = scmp.eq.s32.totalorder %s86, 0
      %p706 = por %p704, %p705
      %s707 = ssub.s32 %s80, %s87
      %p708 = scmp.eq.s32.totalorder %s707, 0
      %s710 = sadd.s32 %s709, 1
      %s711 = scalar_select %p708, %s709, %s710
      %p714 = pneg %p708
      %p715 = scmp.eq.s32.totalorder %s80, 1
      %p716 = por %p714, %p715
      %p717 = scmp.ne.s32.totalorder %s709, %s712
      %p718 = scmp.eq.s32.totalorder %s80, 0
      %p719 = por %p717, %p718
      %p720 = scmp.ne.s32.totalorder %s709, %s712
      %p721 = scmp.eq.s32.totalorder %s85, 1
      %p722 = por %p720, %p721
      %p723 = scmp.ne.s32.totalorder %s712, %s713
      %p724 = scmp.eq.s32.totalorder %s85, 0
      %p725 = por %p723, %p724
      %p726 = scmp.ne.s32.totalorder %s712, %s713
      %p727 = scmp.eq.s32.totalorder %s86, 1
      %p728 = por %p726, %p727
      %p730 = scmp.ne.s32.totalorder %s713, %s729
      %p731 = scmp.eq.s32.totalorder %s86, 0
      %p732 = por %p730, %p731
      %s733 = ssub.s32 %s80, %s87
      %p734 = scmp.eq.s32.totalorder %s733, 0
      %s736 = sadd.s32 %s735, 1
      %s737 = scalar_select %p734, %s735, %s736
      %p740 = pneg %p734
      %p741 = scmp.eq.s32.totalorder %s80, 1
      %p742 = por %p740, %p741
      %p743 = scmp.ne.s32.totalorder %s735, %s738
      %p744 = scmp.eq.s32.totalorder %s80, 0
      %p745 = por %p743, %p744
      %p746 = scmp.ne.s32.totalorder %s735, %s738
      %p747 = scmp.eq.s32.totalorder %s85, 1
      %p748 = por %p746, %p747
      %p749 = scmp.ne.s32.totalorder %s738, %s739
      %p750 = scmp.eq.s32.totalorder %s85, 0
      %p751 = por %p749, %p750
      %p752 = scmp.ne.s32.totalorder %s738, %s739
      %p753 = scmp.eq.s32.totalorder %s86, 1
      %p754 = por %p752, %p753
      %p756 = scmp.ne.s32.totalorder %s739, %s755
      %p757 = scmp.eq.s32.totalorder %s86, 0
      %p758 = por %p756, %p757
      %p759 = scmp.le.s32.totalorder 1, %s80
      %p760 = scmp.lt.s32.totalorder %s80, 3
      %p761 = pnand %p759, %p760
      %p762 = pneg %p761
      // Predicated region
      $region9: #{_lambda_.1} parent=5 // pred_check
        _
      $region10: #{_lambda_.1} parent=5 // pred_check_branch
        %764 = sbr.rel (%p761) target = $region12
      $region11: #{_lambda_.1} parent=5 // pred_region
        %s765 = ssub.s32 %s80, 1
        // Predicated region
        $region13: #{_lambda_.1} parent=11 // pred_check
          %p766 = pneg %p127
        $region14: #{_lambda_.1} parent=11 // pred_check_branch
          %768 = sbr.rel (%p766) target = $region16
        $region15: #{_lambda_.1} parent=11 // pred_region
          %s770 = ssub.s32 256, 256
          %771 = vsyncadd [#allocation4], %s770
          %s772 = sshll.u32 [#allocation3], 4
          %s773 = int_to_ptr.vmem [resolvable:$true] %s772
          %778 = dma.hbm_to_vmem [thread:$0]  %s3, 256, %s773, [#allocation4], 128, 128, 8
        $region16: #{_lambda_.1} parent=11 // pred_fallthru
          _
        // Predicated region
        $region17: #{_lambda_.1} parent=11 // pred_check
          %p779 = pneg %p148
        $region18: #{_lambda_.1} parent=11 // pred_check_branch
          %781 = sbr.rel (%p779) target = $region20
        $region19: #{_lambda_.1} parent=11 // pred_region
          %s783 = ssub.s32 256, 256
          %784 = vsyncadd [#allocation7], %s783
          %s785 = sshll.u32 [#allocation6], 4
          %s786 = int_to_ptr.vmem [resolvable:$true] %s785
          %791 = dma.hbm_to_vmem [thread:$0]  %s5, 256, %s786, [#allocation7], 128, 128, 8
        $region20: #{_lambda_.1} parent=11 // pred_fallthru
          _
        // Predicated region
        $region21: #{_lambda_.1} parent=11 // pred_check
          %p792 = pneg %p195
        $region22: #{_lambda_.1} parent=11 // pred_check_branch
          %794 = sbr.rel (%p792) target = $region24
        $region23: #{_lambda_.1} parent=11 // pred_region
          %s796 = ssub.s32 16, 16
          %797 = vsyncadd [#allocation7], %s796
          %s799 = sshll.u32 [#allocation8], 4
          %s800 = int_to_ptr.vmem [resolvable:$true] %s799
          %802 = dma.hbm_to_vmem [thread:$0]  %s9, 16, %s800, [#allocation7]
        $region24: #{_lambda_.1} parent=11 // pred_fallthru
          _
        // Predicated region
        $region25: #{_lambda_.1} parent=11 // pred_check
          %p803 = pneg %p216
        $region26: #{_lambda_.1} parent=11 // pred_check_branch
          %805 = sbr.rel (%p803) target = $region28
        $region27: #{_lambda_.1} parent=11 // pred_region
          %s807 = ssub.s32 128, 128
          %808 = vsyncadd [#allocation10], %s807
          %s809 = sshll.u32 [#allocation9], 4
          %s810 = int_to_ptr.vmem [resolvable:$true] %s809
          %815 = dma.hbm_to_vmem [thread:$0]  %s11, 128, %s810, [#allocation10], 64, 64, 4
        $region28: #{_lambda_.1} parent=11 // pred_fallthru
          _
        // Predicated region
        $region29: #{_lambda_.1} parent=11 // pred_check
          %p816 = pneg %p237
        $region30: #{_lambda_.1} parent=11 // pred_check_branch
          %818 = sbr.rel (%p816) target = $region32
        $region31: #{_lambda_.1} parent=11 // pred_region
          %s820 = ssub.s32 16, 16
          %821 = vsyncadd [#allocation10], %s820
          %s823 = sshll.u32 [#allocation11], 4
          %s824 = int_to_ptr.vmem [resolvable:$true] %s823
          %826 = dma.hbm_to_vmem [thread:$0]  %s13, 16, %s824, [#allocation10]
        $region32: #{_lambda_.1} parent=11 // pred_fallthru
          _
        // Predicated region
        $region33: #{_lambda_.1} parent=11 // pred_check
          %p827 = pneg %p258
        $region34: #{_lambda_.1} parent=11 // pred_check_branch
          %829 = sbr.rel (%p827) target = $region36
        $region35: #{_lambda_.1} parent=11 // pred_region
          _
        $region36: #{_lambda_.1} parent=11 // pred_fallthru
          _
        // Predicated region
        $region37: #{_lambda_.1} parent=11 // pred_check
          %p830 = pneg %p279
        $region38: #{_lambda_.1} parent=11 // pred_check_branch
          %832 = sbr.rel (%p830) target = $region40
        $region39: #{_lambda_.1} parent=11 // pred_region
          _
        $region40: #{_lambda_.1} parent=11 // pred_fallthru
          _
        // Predicated region
        $region41: #{_lambda_.1} parent=11 // pred_check
          %p833 = pneg %p300
        $region42: #{_lambda_.1} parent=11 // pred_check_branch
          %835 = sbr.rel (%p833) target = $region44
        $region43: #{_lambda_.1} parent=11 // pred_region
          %s837 = ssub.s32 512, 512
          %838 = vsyncadd [#allocation13], %s837
          %s839 = sshll.u32 [#allocation12], 4
          %s840 = int_to_ptr.vmem [resolvable:$true] %s839
          %845 = dma.hbm_to_vmem [thread:$0]  %s19, 512, %s840, [#allocation13], 64, 64, 4
        $region44: #{_lambda_.1} parent=11 // pred_fallthru
          _
        // Predicated region
        $region45: #{_lambda_.1} parent=11 // pred_check
          %p846 = pneg %p321
        $region46: #{_lambda_.1} parent=11 // pred_check_branch
          %848 = sbr.rel (%p846) target = $region48
        $region47: #{_lambda_.1} parent=11 // pred_region
          %s850 = ssub.s32 32, 32
          %851 = vsyncadd [#allocation13], %s850
          %s852 = sshll.u32 [#allocation14], 4
          %s853 = int_to_ptr.vmem [resolvable:$true] %s852
          %858 = dma.hbm_to_vmem [thread:$0]  %s21, 32, %s853, [#allocation13], 16, 16, 1
        $region48: #{_lambda_.1} parent=11 // pred_fallthru
          _
        // Predicated region
        $region49: #{_lambda_.1} parent=11 // pred_check
          %p859 = pneg %p342
        $region50: #{_lambda_.1} parent=11 // pred_check_branch
          %861 = sbr.rel (%p859) target = $region52
        $region51: #{_lambda_.1} parent=11 // pred_region
          _
        $region52: #{_lambda_.1} parent=11 // pred_fallthru
          _
        // Predicated region
        $region53: #{_lambda_.1} parent=11 // pred_check
          %p862 = pneg %p363
        $region54: #{_lambda_.1} parent=11 // pred_check_branch
          %864 = sbr.rel (%p862) target = $region56
        $region55: #{_lambda_.1} parent=11 // pred_region
          _
        $region56: #{_lambda_.1} parent=11 // pred_fallthru
          _
        // Predicated region
        $region57: #{_lambda_.1} parent=11 // pred_check
          %p865 = pneg %p384
        $region58: #{_lambda_.1} parent=11 // pred_check_branch
          %867 = sbr.rel (%p865) target = $region60
        $region59: #{_lambda_.1} parent=11 // pred_region
          %s869 = ssub.s32 512, 512
          %870 = vsyncadd [#allocation16], %s869
          %s871 = sshll.u32 [#allocation15], 4
          %s872 = int_to_ptr.vmem [resolvable:$true] %s871
          %877 = dma.hbm_to_vmem [thread:$0]  %s27, 512, %s872, [#allocation16], 64, 64, 4
        $region60: #{_lambda_.1} parent=11 // pred_fallthru
          _
        // Predicated region
        $region61: #{_lambda_.1} parent=11 // pred_check
          %p878 = pneg %p405
        $region62: #{_lambda_.1} parent=11 // pred_check_branch
          %880 = sbr.rel (%p878) target = $region64
        $region63: #{_lambda_.1} parent=11 // pred_region
          _
        $region64: #{_lambda_.1} parent=11 // pred_fallthru
          _
        // Predicated region
        $region65: #{_lambda_.1} parent=11 // pred_check
          %p881 = pneg %p426
        $region66: #{_lambda_.1} parent=11 // pred_check_branch
          %883 = sbr.rel (%p881) target = $region68
        $region67: #{_lambda_.1} parent=11 // pred_region
          %s885 = ssub.s32 512, 512
          %886 = vsyncadd [#allocation16], %s885
          %s887 = sshll.u32 [#allocation17], 4
          %s888 = int_to_ptr.vmem [resolvable:$true] %s887
          %893 = dma.hbm_to_vmem [thread:$0]  %s31, 512, %s888, [#allocation16], 64, 64, 4
        $region68: #{_lambda_.1} parent=11 // pred_fallthru
          _
        // Predicated region
        $region69: #{_lambda_.1} parent=11 // pred_check
          %p894 = pneg %p447
        $region70: #{_lambda_.1} parent=11 // pred_check_branch
          %896 = sbr.rel (%p894) target = $region72
        $region71: #{_lambda_.1} parent=11 // pred_region
          _
        $region72: #{_lambda_.1} parent=11 // pred_fallthru
          _
        // Predicated region
        $region73: #{_lambda_.1} parent=11 // pred_check
          %p897 = pneg %p468
        $region74: #{_lambda_.1} parent=11 // pred_check_branch
          %899 = sbr.rel (%p897) target = $region76
        $region75: #{_lambda_.1} parent=11 // pred_region
          _
        $region76: #{_lambda_.1} parent=11 // pred_fallthru
          _
        // Predicated region
        $region77: #{_lambda_.1} parent=11 // pred_check
          %p900 = pneg %p489
        $region78: #{_lambda_.1} parent=11 // pred_check_branch
          %902 = sbr.rel (%p900) target = $region80
        $region79: #{_lambda_.1} parent=11 // pred_region
          _
        $region80: #{_lambda_.1} parent=11 // pred_fallthru
          _
        // Predicated region
        $region81: #{_lambda_.1} parent=11 // pred_check
          %p903 = pneg %p510
        $region82: #{_lambda_.1} parent=11 // pred_check_branch
          %905 = sbr.rel (%p903) target = $region84
        $region83: #{_lambda_.1} parent=11 // pred_region
          _
        $region84: #{_lambda_.1} parent=11 // pred_fallthru
          _
        // Predicated region
        $region85: #{_lambda_.1} parent=11 // pred_check
          %p906 = pneg %p531
        $region86: #{_lambda_.1} parent=11 // pred_check_branch
          %908 = sbr.rel (%p906) target = $region88
        $region87: #{_lambda_.1} parent=11 // pred_region
          _
        $region88: #{_lambda_.1} parent=11 // pred_fallthru
          _
        // Predicated region
        $region89: #{_lambda_.1} parent=11 // pred_check
          %p909 = pneg %p552
        $region90: #{_lambda_.1} parent=11 // pred_check_branch
          %911 = sbr.rel (%p909) target = $region92
        $region91: #{_lambda_.1} parent=11 // pred_region
          %s913 = ssub.s32 512, 512
          %914 = vsyncadd [#allocation19], %s913
          %s915 = sshll.u32 [#allocation18], 4
          %s916 = int_to_ptr.vmem [resolvable:$true] %s915
          %921 = dma.hbm_to_vmem [thread:$0]  %s43, 512, %s916, [#allocation19], 128, 128, 8
        $region92: #{_lambda_.1} parent=11 // pred_fallthru
          _
        // Predicated region
        $region93: #{_lambda_.1} parent=11 // pred_check
          %p922 = pneg %p573
        $region94: #{_lambda_.1} parent=11 // pred_check_branch
          %924 = sbr.rel (%p922) target = $region96
        $region95: #{_lambda_.1} parent=11 // pred_region
          _
        $region96: #{_lambda_.1} parent=11 // pred_fallthru
          _
        // Predicated region
        $region97: #{_lambda_.1} parent=11 // pred_check
          %p925 = pneg %p594
        $region98: #{_lambda_.1} parent=11 // pred_check_branch
          %927 = sbr.rel (%p925) target = $region100
        $region99: #{_lambda_.1} parent=11 // pred_region
          %s929 = ssub.s32 2048, 2048
          %930 = vsyncadd [#allocation19], %s929
          %s931 = sshll.u32 [#allocation20], 4
          %s932 = int_to_ptr.vmem [resolvable:$true] %s931
          %937 = dma.hbm_to_vmem [thread:$0]  %s47, 2048, %s932, [#allocation19], 128, 128, 8
        $region100: #{_lambda_.1} parent=11 // pred_fallthru
          _
        // Predicated region
        $region101: #{_lambda_.1} parent=11 // pred_check
          %p938 = pneg %p615
        $region102: #{_lambda_.1} parent=11 // pred_check_branch
          %940 = sbr.rel (%p938) target = $region104
        $region103: #{_lambda_.1} parent=11 // pred_region
          _
        $region104: #{_lambda_.1} parent=11 // pred_fallthru
          _
        // Predicated region
        $region105: #{_lambda_.1} parent=11 // pred_check
          %p941 = pneg %p636
        $region106: #{_lambda_.1} parent=11 // pred_check_branch
          %943 = sbr.rel (%p941) target = $region108
        $region107: #{_lambda_.1} parent=11 // pred_region
          %s945 = ssub.s32 2048, 2048
          %946 = vsyncadd [#allocation22], %s945
          %s947 = sshll.u32 [#allocation21], 4
          %s948 = int_to_ptr.vmem [resolvable:$true] %s947
          %953 = dma.hbm_to_vmem [thread:$0]  %s51, 2048, %s948, [#allocation22], 128, 128, 8
        $region108: #{_lambda_.1} parent=11 // pred_fallthru
          _
        // Predicated region
        $region109: #{_lambda_.1} parent=11 // pred_check
          %p954 = pneg %p657
        $region110: #{_lambda_.1} parent=11 // pred_check_branch
          %956 = sbr.rel (%p954) target = $region112
        $region111: #{_lambda_.1} parent=11 // pred_region
          _
        $region112: #{_lambda_.1} parent=11 // pred_fallthru
          _
        // Predicated region
        $region113: #{_lambda_.1} parent=11 // pred_check
          %p957 = pneg %p678
        $region114: #{_lambda_.1} parent=11 // pred_check_branch
          %959 = sbr.rel (%p957) target = $region116
        $region115: #{_lambda_.1} parent=11 // pred_region
          _
        $region116: #{_lambda_.1} parent=11 // pred_fallthru
          _
        // Predicated region
        $region117: #{_lambda_.1} parent=11 // pred_check
          %p960 = pneg %p699
        $region118: #{_lambda_.1} parent=11 // pred_check_branch
          %962 = sbr.rel (%p960) target = $region120
        $region119: #{_lambda_.1} parent=11 // pred_region
          _
        $region120: #{_lambda_.1} parent=11 // pred_fallthru
          _
      $region12: #{_lambda_.1} parent=5 // pred_fallthru
        _
      %p963 = scmp.lt.s32.totalorder %s80, 2
      // Predicated region
      $region121: #{_lambda_.1} parent=5 // pred_check
        %p964 = pneg %p963
      $region122: #{_lambda_.1} parent=5 // pred_check_branch
        %966 = sbr.rel (%p964) target = $region124
      $region123: #{_lambda_.1} parent=5 // pred_region
        // Predicated region
        $region125: #{_lambda_.1} parent=123 // pred_check
          %p967 = pneg %p100
        $region126: #{_lambda_.1} parent=123 // pred_check_branch
          %969 = sbr.rel (%p967) target = $region128
        $region127: #{_lambda_.1} parent=123 // pred_region
          %s970 = smul.u32 2, %s80
          %p971 = scmp.lt.s32.totalorder %s970, 3
          %s972 = scalar_select %p971, %s970, 3
          %s973 = smul.addr %s972, 8
          %s974 = scalar_lea.vmem %s1, %s973
          %s975 = smul.u32 2, %s80
        $region128: #{_lambda_.1} parent=123 // pred_fallthru
          _
        // Predicated region
        $region129: #{_lambda_.1} parent=123 // pred_check
          %p976 = pneg %p168
        $region130: #{_lambda_.1} parent=123 // pred_check_branch
          %978 = sbr.rel (%p976) target = $region132
        $region131: #{_lambda_.1} parent=123 // pred_region
          %p979 = scmp.lt.s32.totalorder %s80, 1
          %s980 = scalar_select %p979, %s80, 1
          %s981 = scalar_lea.vmem %s7, %s980
        $region132: #{_lambda_.1} parent=123 // pred_fallthru
          _
      $region124: #{_lambda_.1} parent=5 // pred_fallthru
        _
      %p982 = scmp.le.s32.totalorder 1, %s80
      %p983 = scmp.lt.s32.totalorder %s80, 3
      %p984 = pnand %p982, %p983
      %p985 = pneg %p984
      // Predicated region
      $region133: #{_lambda_.1} parent=5 // pred_check
        _
      $region134: #{_lambda_.1} parent=5 // pred_check_branch
        %987 = sbr.rel (%p984) target = $region136
      $region135: #{_lambda_.1} parent=5 // pred_region
        %s988 = ssub.s32 %s80, 1
        // Predicated region
        $region137: #{_lambda_.1} parent=135 // pred_check
          %p989 = pneg %p127
        $region138: #{_lambda_.1} parent=135 // pred_check_branch
          %991 = sbr.rel (%p989) target = $region140
        $region139: #{_lambda_.1} parent=135 // pred_region
          %992 = dma.done [#allocation4], 256
        $region140: #{_lambda_.1} parent=135 // pred_fallthru
          _
        // Predicated region
        $region141: #{_lambda_.1} parent=135 // pred_check
          %p993 = pneg %p148
        $region142: #{_lambda_.1} parent=135 // pred_check_branch
          %995 = sbr.rel (%p993) target = $region144
        $region143: #{_lambda_.1} parent=135 // pred_region
          %996 = dma.done [#allocation7], 256
        $region144: #{_lambda_.1} parent=135 // pred_fallthru
          _
        // Predicated region
        $region145: #{_lambda_.1} parent=135 // pred_check
          %p997 = pneg %p195
        $region146: #{_lambda_.1} parent=135 // pred_check_branch
          %999 = sbr.rel (%p997) target = $region148
        $region147: #{_lambda_.1} parent=135 // pred_region
          %1000 = dma.done [#allocation7], 16
        $region148: #{_lambda_.1} parent=135 // pred_fallthru
          _
        // Predicated region
        $region149: #{_lambda_.1} parent=135 // pred_check
          %p1001 = pneg %p216
        $region150: #{_lambda_.1} parent=135 // pred_check_branch
          %1003 = sbr.rel (%p1001) target = $region152
        $region151: #{_lambda_.1} parent=135 // pred_region
          %1004 = dma.done [#allocation10], 128
        $region152: #{_lambda_.1} parent=135 // pred_fallthru
          _
        // Predicated region
        $region153: #{_lambda_.1} parent=135 // pred_check
          %p1005 = pneg %p237
        $region154: #{_lambda_.1} parent=135 // pred_check_branch
          %1007 = sbr.rel (%p1005) target = $region156
        $region155: #{_lambda_.1} parent=135 // pred_region
          %1008 = dma.done [#allocation10], 16
        $region156: #{_lambda_.1} parent=135 // pred_fallthru
          _
        // Predicated region
        $region157: #{_lambda_.1} parent=135 // pred_check
          %p1009 = pneg %p300
        $region158: #{_lambda_.1} parent=135 // pred_check_branch
          %1011 = sbr.rel (%p1009) target = $region160
        $region159: #{_lambda_.1} parent=135 // pred_region
          %1012 = dma.done [#allocation13], 512
        $region160: #{_lambda_.1} parent=135 // pred_fallthru
          _
        // Predicated region
        $region161: #{_lambda_.1} parent=135 // pred_check
          %p1013 = pneg %p321
        $region162: #{_lambda_.1} parent=135 // pred_check_branch
          %1015 = sbr.rel (%p1013) target = $region164
        $region163: #{_lambda_.1} parent=135 // pred_region
          %1016 = dma.done [#allocation13], 32
        $region164: #{_lambda_.1} parent=135 // pred_fallthru
          _
        // Predicated region
        $region165: #{_lambda_.1} parent=135 // pred_check
          %p1017 = pneg %p384
        $region166: #{_lambda_.1} parent=135 // pred_check_branch
          %1019 = sbr.rel (%p1017) target = $region168
        $region167: #{_lambda_.1} parent=135 // pred_region
          %1020 = dma.done [#allocation16], 512
        $region168: #{_lambda_.1} parent=135 // pred_fallthru
          _
        // Predicated region
        $region169: #{_lambda_.1} parent=135 // pred_check
          %p1021 = pneg %p426
        $region170: #{_lambda_.1} parent=135 // pred_check_branch
          %1023 = sbr.rel (%p1021) target = $region172
        $region171: #{_lambda_.1} parent=135 // pred_region
          %1024 = dma.done [#allocation16], 512
        $region172: #{_lambda_.1} parent=135 // pred_fallthru
          _
        // Predicated region
        $region173: #{_lambda_.1} parent=135 // pred_check
          %p1025 = pneg %p552
        $region174: #{_lambda_.1} parent=135 // pred_check_branch
          %1027 = sbr.rel (%p1025) target = $region176
        $region175: #{_lambda_.1} parent=135 // pred_region
          %1028 = dma.done [#allocation19], 512
        $region176: #{_lambda_.1} parent=135 // pred_fallthru
          _
        // Predicated region
        $region177: #{_lambda_.1} parent=135 // pred_check
          %p1029 = pneg %p594
        $region178: #{_lambda_.1} parent=135 // pred_check_branch
          %1031 = sbr.rel (%p1029) target = $region180
        $region179: #{_lambda_.1} parent=135 // pred_region
          %1032 = dma.done [#allocation19], 2048
        $region180: #{_lambda_.1} parent=135 // pred_fallthru
          _
        // Predicated region
        $region181: #{_lambda_.1} parent=135 // pred_check
          %p1033 = pneg %p636
        $region182: #{_lambda_.1} parent=135 // pred_check_branch
          %1035 = sbr.rel (%p1033) target = $region184
        $region183: #{_lambda_.1} parent=135 // pred_region
          %1036 = dma.done [#allocation22], 2048
        $region184: #{_lambda_.1} parent=135 // pred_fallthru
          _
        %s1037 = smul.u32 2, %s85
        %p1038 = scmp.lt.s32.totalorder %s1037, 3
        %s1039 = scalar_select %p1038, %s1037, 3
        %s1040 = smul.addr %s1039, 8
        %s1041 = scalar_lea.vmem %s1, %s1040
        %p1042 = pneg %p106
        %p1043 = pneg %p103
        %p1044 = pneg %p127
        %p1045 = pneg %p124
        %p1046 = pneg %p148
        %p1047 = pneg %p145
        %p1048 = scmp.lt.s32.totalorder %s85, 1
        %s1049 = scalar_select %p1048, %s85, 1
        %s1050 = scalar_lea.vmem %s7, %s1049
        %p1051 = pneg %p174
        %p1052 = pneg %p171
        %p1053 = pneg %p195
        %p1054 = pneg %p192
        %p1055 = pneg %p216
        %p1056 = pneg %p213
        %p1057 = pneg %p237
        %p1058 = pneg %p234
        %p1059 = pneg %p258
        %p1060 = pneg %p255
        %p1061 = pneg %p279
        %p1062 = pneg %p276
        %p1063 = pneg %p300
        %p1064 = pneg %p297
        %p1065 = pneg %p321
        %p1066 = pneg %p318
        %p1067 = pneg %p342
        %p1068 = pneg %p339
        %p1069 = pneg %p363
        %p1070 = pneg %p360
        %p1071 = pneg %p384
        %p1072 = pneg %p381
        %p1073 = pneg %p405
        %p1074 = pneg %p402
        %p1075 = pneg %p426
        %p1076 = pneg %p423
        %p1077 = pneg %p447
        %p1078 = pneg %p444
        %p1079 = pneg %p468
        %p1080 = pneg %p465
        %p1081 = pneg %p489
        %p1082 = pneg %p486
        %p1083 = pneg %p510
        %p1084 = pneg %p507
        %p1085 = pneg %p531
        %p1086 = pneg %p528
        %p1087 = pneg %p552
        %p1088 = pneg %p549
        %p1089 = pneg %p573
        %p1090 = pneg %p570
        %p1091 = pneg %p594
        %p1092 = pneg %p591
        %p1093 = pneg %p615
        %p1094 = pneg %p612
        %p1095 = pneg %p636
        %p1096 = pneg %p633
        %p1097 = pneg %p657
        %p1098 = pneg %p654
        %p1099 = pneg %p678
        %p1100 = pneg %p675
        %p1101 = pneg %p699
        %p1102 = pneg %p696
        %p1103 = pneg %p725
        %p1104 = pneg %p722
        %s1105 = sand.u32 %s712, 1
        %s1106 = scalar_lea.sflag [#allocation5], %s1105
        %s1107 = sand.u32 %s712, 1
        %s1108 = scalar_lea.vmem [#allocation23], %s1107
        %p1109 = pneg %p751
        %p1110 = pneg %p748
        %p1111 = scmp.lt.s32.totalorder %s85, 1
        %s1112 = scalar_select %p1111, %s85, 1
        %s1113 = scalar_lea.vmem %s61, %s1112
        %s1114 = smul.u32 2, %s85
        %p1115 = scmp.lt.s32.totalorder %s1114, 3
        %s1116 = scalar_select %p1115, %s1114, 3
        %s1117 = smul.addr %s1116, 8
        %s1118 = scalar_lea.vmem %s1, %s1117
        %s1119 = smul.u32 2, %s85
        %p1120 = scmp.lt.s32.totalorder %s85, 1
        %s1121 = scalar_select %p1120, %s85, 1
        %s1122 = scalar_lea.vmem %s7, %s1121
        %p1123 = scmp.lt.s32.totalorder %s85, 1
        %s1124 = scalar_select %p1123, %s85, 1
        %s1125 = scalar_lea.vmem %s61, %s1124
        %v1127 = vld [vmem:[%s1118] sm:$0xff]
        %v1128 = vld [vmem:[%s1118 + $0x8] sm:$0xff]
        %v1129 = vpack.c.bf16 %v1128, %v1127
        %v1130 = vld [vmem:[#allocation9] sm:$0xf]
        %v1131 = vld [vmem:[#allocation9 + $0x4] sm:$0xf]
        %v1132 = vld [vmem:[#allocation11] sm:$0x1]
        %v1134 = vlaneseq
        %v1135 = vshrl.u32 %v1134, 7
        %v1136 = vsub.s32 0, %v1135
        %v1137 = vrot.slane %v1132, %v1136
        %v1141 = vunpack.c.l.b16 %v1130
        %v1142 = vunpack.c.l.b16 %v1131
        %v1143 = vpack.c.b16 %v1142, %v1141
        %vm1145 = vcmask 130048
        %v1147 = vsel %vm1145, %v1129, 0
        %1149 = vmatprep.subr.bf16.mxu0 0
        %1150 = vmatpush1.bf16.msra.mxu0 0
        %1151 = vmatprep.subr.bf16.mxu0 0
        %1152 = vmatpush1.bf16.msra.mxu0 0
        %1153 = vmatprep.subr.bf16.mxu0 0
        %1154 = vmatpush1.bf16.msra.mxu0 0
        %1155 = vmatprep.subr.bf16.mxu0 0
        %1156 = vmatpush1.bf16.msra.mxu0 0
        %1157 = vmatprep.subr.bf16.mxu0 0
        %1158 = vmatpush1.bf16.msra.mxu0 0
        %1159 = vmatprep.subr.bf16.mxu0 0
        %1160 = vmatpush1.bf16.msra.mxu0 0
        %1161 = vmatprep.subr.bf16.mxu0 0
        %1162 = vmatpush1.bf16.msra.mxu0 0
        %1163 = vmatprep.subr.bf16.mxu0 0
        %1164 = vmatpush1.bf16.msra.mxu0 %v1143
        %1165 = vmatprep.subr.bf16.mxu0 0
        %1166 = vmatpush2.bf16.msra.mxu0 0
        %1167 = vmatprep.subr.bf16.mxu0 0
        %1168 = vmatpush2.bf16.msra.mxu0 0
        %1169 = vmatprep.subr.bf16.mxu0 0
        %1170 = vmatpush2.bf16.msra.mxu0 0
        %1171 = vmatprep.subr.bf16.mxu0 0
        %1172 = vmatpush2.bf16.msra.mxu0 0
        %1173 = vmatprep.subr.bf16.mxu0 0
        %1174 = vmatpush2.bf16.msra.mxu0 0
        %1175 = vmatprep.subr.bf16.mxu0 0
        %1176 = vmatpush2.bf16.msra.mxu0 0
        %1177 = vmatprep.subr.bf16.mxu0 0
        %1178 = vmatpush2.bf16.msra.mxu0 0
        %1179 = vmatprep.subr.bf16.mxu0 0
        %1180 = vmatpush2.bf16.msra.mxu0 0
        %1181 = vmatprep.mubr.bf16.mxu0 0
        %1182 = vmatmul.mubr.bf16.gmra.mxu0 %v1147
        %v1183 = vpop.f32.mrf.mxu0
        %v1184 = vadd.f32 %v1137, %v1183
        %v1185 = vpop.f32.mrf.mxu0
        %v1186 = vpop.f32.mrf.mxu0
        %v1187 = vadd.f32 %v1137, %v1186
        %v1188 = vpop.f32.mrf.mxu0
        %1189 = vdwg.mxu0
        %v1190 = vld [vmem:[#allocation3] sm:$0xff]
        %v1191 = vld [vmem:[#allocation3 + $0x8] sm:$0xff]
        %1193 = vset.pattern.permute.xlu0 0
        %1194 = vperm.xlu0 %1193, %v1190
        %v1195 = vpop.permute.xlu0 %1194
        %1198 = vset.pattern.permute.xlu0 0
        %1199 = vperm.xlu0 %1198, %v1191
        %v1200 = vpop.permute.xlu0 %1199
        %v1202 = vmul.f32 %v1184, %v1195
        %v1203 = vmul.f32 %v1187, %v1200
        %v1204 = vld [vmem:[#allocation6] sm:$0xff]
        %v1205 = vld [vmem:[#allocation6 + $0x8] sm:$0xff]
        %v1206 = vadd.f32 %v1202, %v1204
        %v1207 = vadd.f32 %v1203, %v1205
        %v1208 = vld [vmem:[%s1122] sm:$0x1]
        %v1209 = vpack.c.bf16 %v1207, %v1206
        %v1210 = vld [vmem:[%s15] sm:$0xff]
        %v1211 = vld [vmem:[%s15 + $0x8] sm:$0xf]
        %v1212 = vld [vmem:[%s15 + $0xc] sm:$0xff]
        %v1213 = vld [vmem:[%s15 + $0x14] sm:$0xf]
        %v1214 = vld [vmem:[%s15 + $0x18] sm:$0xff]
        %v1215 = vld [vmem:[%s15 + $0x20] sm:$0xf]
        %v1216 = vld [vmem:[%s15 + $0x24] sm:$0xff]
        %v1217 = vld [vmem:[%s15 + $0x2c] sm:$0xf]
        %v1218 = vld [vmem:[%s17] sm:$0x7]
        %v1220 = vlaneseq
        %v1221 = vshrl.u32 %v1220, 7
        %v1222 = vsub.s32 0, %v1221
        %v1223 = vrot.slane %v1218, %v1222
        %v1224 = vlaneseq
        %v1225 = vshrl.u32 %v1224, 7
        %v1226 = vsub.s32 1, %v1225
        %v1227 = vrot.slane %v1218, %v1226
        %v1228 = vlaneseq
        %v1229 = vshrl.u32 %v1228, 7
        %v1230 = vsub.s32 2, %v1229
        %v1231 = vrot.slane %v1218, %v1230
        %v1243 = vunpack.c.l.b16 %v1210
        %v1244 = vunpack.c.h.b16 %v1210
        %v1245 = vunpack.c.l.b16 %v1211
        %v1246 = vunpack.c.l.b16 %v1212
        %v1247 = vunpack.c.h.b16 %v1212
        %v1248 = vunpack.c.l.b16 %v1213
        %v1249 = vunpack.c.l.b16 %v1214
        %v1250 = vunpack.c.h.b16 %v1214
        %v1251 = vunpack.c.l.b16 %v1215
        %v1252 = vunpack.c.l.b16 %v1216
        %v1253 = vunpack.c.h.b16 %v1216
        %v1254 = vunpack.c.l.b16 %v1217
        %v1255 = vpack.c.b16 %v1246, %v1243
        %v1256 = vpack.c.b16 %v1247, %v1244
        %v1257 = vpack.c.b16 %v1248, %v1245
        %v1258 = vpack.c.b16 %v1252, %v1249
        %v1259 = vpack.c.b16 %v1253, %v1250
        %v1260 = vpack.c.b16 %v1254, %v1251
        %vm1267 = vcmask 261120
        %v1269 = vsel %vm1267, %v1209, 0
        %1271 = vmatprep.subr.bf16.mxu0 0
        %1272 = vmatpush1.bf16.msra.mxu0 0
        %1273 = vmatprep.subr.bf16.mxu0 0
        %1274 = vmatpush1.bf16.msra.mxu0 0
        %1275 = vmatprep.subr.bf16.mxu0 0
        %1276 = vmatpush1.bf16.msra.mxu0 0
        %1277 = vmatprep.subr.bf16.mxu0 0
        %1278 = vmatpush1.bf16.msra.mxu0 0
        %1279 = vmatprep.subr.bf16.mxu0 0
        %1280 = vmatpush1.bf16.msra.mxu0 0
        %1281 = vmatprep.subr.bf16.mxu0 0
        %1282 = vmatpush1.bf16.msra.mxu0 0
        %1283 = vmatprep.subr.bf16.mxu0 %v1259
        %1284 = vmatpush1.bf16.msra.mxu0 %v1258
        %1285 = vmatprep.subr.bf16.mxu0 %v1256
        %1286 = vmatpush1.bf16.msra.mxu0 %v1255
        %1287 = vmatprep.subr.bf16.mxu0 0
        %1288 = vmatpush2.bf16.msra.mxu0 0
        %1289 = vmatprep.subr.bf16.mxu0 0
        %1290 = vmatpush2.bf16.msra.mxu0 0
        %1291 = vmatprep.subr.bf16.mxu0 0
        %1292 = vmatpush2.bf16.msra.mxu0 0
        %1293 = vmatprep.subr.bf16.mxu0 0
        %1294 = vmatpush2.bf16.msra.mxu0 0
        %1295 = vmatprep.subr.bf16.mxu0 0
        %1296 = vmatpush2.bf16.msra.mxu0 0
        %1297 = vmatprep.subr.bf16.mxu0 0
        %1298 = vmatpush2.bf16.msra.mxu0 0
        %1299 = vmatprep.subr.bf16.mxu0 0
        %1300 = vmatpush2.bf16.msra.mxu0 0
        %1301 = vmatprep.subr.bf16.mxu0 0
        %1302 = vmatpush2.bf16.msra.mxu0 0
        %1303 = vmatprep.mubr.bf16.mxu0 0
        %1304 = vmatmul.mubr.bf16.gmra.mxu0 %v1269
        %v1305 = vpop.f32.mrf.mxu0
        %v1306 = vadd.f32 %v1223, %v1305
        %v1307 = vpop.f32.mrf.mxu0
        %v1308 = vadd.f32 %v1227, %v1307
        %v1309 = vpop.f32.mrf.mxu0
        %v1310 = vadd.f32 %v1223, %v1309
        %v1311 = vpop.f32.mrf.mxu0
        %v1312 = vadd.f32 %v1227, %v1311
        %1313 = vdwg.mxu0
        %1314 = vmatprep.subr.bf16.mxu0 0
        %1315 = vmatpush1.bf16.msra.mxu0 0
        %1316 = vmatprep.subr.bf16.mxu0 0
        %1317 = vmatpush1.bf16.msra.mxu0 0
        %1318 = vmatprep.subr.bf16.mxu0 0
        %1319 = vmatpush1.bf16.msra.mxu0 0
        %1320 = vmatprep.subr.bf16.mxu0 0
        %1321 = vmatpush1.bf16.msra.mxu0 0
        %1322 = vmatprep.subr.bf16.mxu0 0
        %1323 = vmatpush1.bf16.msra.mxu0 0
        %1324 = vmatprep.subr.bf16.mxu0 0
        %1325 = vmatpush1.bf16.msra.mxu0 0
        %1326 = vmatprep.subr.bf16.mxu0 0
        %1327 = vmatpush1.bf16.msra.mxu0 %v1260
        %1328 = vmatprep.subr.bf16.mxu0 0
        %1329 = vmatpush1.bf16.msra.mxu0 %v1257
        %1330 = vmatprep.subr.bf16.mxu0 0
        %1331 = vmatpush2.bf16.msra.mxu0 0
        %1332 = vmatprep.subr.bf16.mxu0 0
        %1333 = vmatpush2.bf16.msra.mxu0 0
        %1334 = vmatprep.subr.bf16.mxu0 0
        %1335 = vmatpush2.bf16.msra.mxu0 0
        %1336 = vmatprep.subr.bf16.mxu0 0
        %1337 = vmatpush2.bf16.msra.mxu0 0
        %1338 = vmatprep.subr.bf16.mxu0 0
        %1339 = vmatpush2.bf16.msra.mxu0 0
        %1340 = vmatprep.subr.bf16.mxu0 0
        %1341 = vmatpush2.bf16.msra.mxu0 0
        %1342 = vmatprep.subr.bf16.mxu0 0
        %1343 = vmatpush2.bf16.msra.mxu0 0
        %1344 = vmatprep.subr.bf16.mxu0 0
        %1345 = vmatpush2.bf16.msra.mxu0 0
        %1346 = vmatprep.mubr.bf16.mxu0 0
        %1347 = vmatmul.mubr.bf16.gmra.mxu0 %v1269
        %v1348 = vpop.f32.mrf.mxu0
        %v1349 = vadd.f32 %v1231, %v1348
        %v1350 = vpop.f32.mrf.mxu0
        %v1351 = vpop.f32.mrf.mxu0
        %v1352 = vadd.f32 %v1231, %v1351
        %v1353 = vpop.f32.mrf.mxu0
        %1354 = vdwg.mxu0
        %1357 = vrot.lane.b32.xlu0 %v1306, 120
        %v1358 = vpop.permute.xlu0 %1357
        %1359 = vrot.lane.b32.xlu0 %v1310, 120
        %v1360 = vpop.permute.xlu0 %1359
        %1363 = vrot.lane.b32.xlu0 %v1306, 112
        %v1364 = vpop.permute.xlu0 %1363
        %1365 = vrot.lane.b32.xlu0 %v1310, 112
        %v1366 = vpop.permute.xlu0 %1365
        %1369 = vrot.lane.b32.xlu0 %v1306, 104
        %v1370 = vpop.permute.xlu0 %1369
        %1371 = vrot.lane.b32.xlu0 %v1310, 104
        %v1372 = vpop.permute.xlu0 %1371
        %v1375 = vpack.c.bf16 %v1310, %v1306
        %v1376 = vpack.c.bf16 %v1360, %v1358
        %v1377 = vpack.c.bf16 %v1366, %v1364
        %v1378 = vpack.c.bf16 %v1372, %v1370
        %1381 = vrot.lane.b32.xlu0 %v1308, 120
        %v1382 = vpop.permute.xlu0 %1381
        %1383 = vrot.lane.b32.xlu0 %v1312, 120
        %v1384 = vpop.permute.xlu0 %1383
        %1387 = vrot.lane.b32.xlu0 %v1308, 112
        %v1388 = vpop.permute.xlu0 %1387
        %1389 = vrot.lane.b32.xlu0 %v1312, 112
        %v1390 = vpop.permute.xlu0 %1389
        %1393 = vrot.lane.b32.xlu0 %v1308, 104
        %v1394 = vpop.permute.xlu0 %1393
        %1395 = vrot.lane.b32.xlu0 %v1312, 104
        %v1396 = vpop.permute.xlu0 %1395
        %v1399 = vpack.c.bf16 %v1312, %v1308
        %v1400 = vpack.c.bf16 %v1384, %v1382
        %v1401 = vpack.c.bf16 %v1390, %v1388
        %v1402 = vpack.c.bf16 %v1396, %v1394
        %1405 = vrot.lane.b32.xlu0 %v1349, 120
        %v1406 = vpop.permute.xlu0 %1405
        %1407 = vrot.lane.b32.xlu0 %v1352, 120
        %v1408 = vpop.permute.xlu0 %1407
        %1411 = vrot.lane.b32.xlu0 %v1349, 112
        %v1412 = vpop.permute.xlu0 %1411
        %1413 = vrot.lane.b32.xlu0 %v1352, 112
        %v1414 = vpop.permute.xlu0 %1413
        %1417 = vrot.lane.b32.xlu0 %v1349, 104
        %v1418 = vpop.permute.xlu0 %1417
        %1419 = vrot.lane.b32.xlu0 %v1352, 104
        %v1420 = vpop.permute.xlu0 %1419
        %v1423 = vpack.c.bf16 %v1352, %v1349
        %v1424 = vpack.c.bf16 %v1408, %v1406
        %v1425 = vpack.c.bf16 %v1414, %v1412
        %v1426 = vpack.c.bf16 %v1420, %v1418
        %vm1427 = vcmask 64512
        %v1429 = vsel %vm1427, %v1375, 0
        %v1432 = vsel %vm1427, %v1399, 0
        %1434 = vmatprep.subr.bf16.mxu0 0
        %1435 = vmatpush1.bf16.xpose.msra.mxu0 0
        %1436 = vmatprep.subr.bf16.mxu0 0
        %1437 = vmatpush1.bf16.xpose.msra.mxu0 0
        %1438 = vmatprep.subr.bf16.mxu0 0
        %1439 = vmatpush1.bf16.xpose.msra.mxu0 0
        %1440 = vmatprep.subr.bf16.mxu0 0
        %1441 = vmatpush1.bf16.xpose.msra.mxu0 0
        %1442 = vmatprep.subr.bf16.mxu0 0
        %1443 = vmatpush1.bf16.xpose.msra.mxu0 0
        %1444 = vmatprep.subr.bf16.mxu0 0
        %1445 = vmatpush1.bf16.xpose.msra.mxu0 0
        %1446 = vmatprep.subr.bf16.mxu0 0
        %1447 = vmatpush1.bf16.xpose.msra.mxu0 0
        %1448 = vmatprep.subr.bf16.mxu0 0
        %1449 = vmatpush1.bf16.xpose.msra.mxu0 %v1432
        %1450 = vmatprep.subr.bf16.mxu0 0
        %1451 = vmatpush2.bf16.xpose.msra.mxu0 0
        %1452 = vmatprep.subr.bf16.mxu0 0
        %1453 = vmatpush2.bf16.xpose.msra.mxu0 0
        %1454 = vmatprep.subr.bf16.mxu0 0
        %1455 = vmatpush2.bf16.xpose.msra.mxu0 0
        %1456 = vmatprep.subr.bf16.mxu0 0
        %1457 = vmatpush2.bf16.xpose.msra.mxu0 0
        %1458 = vmatprep.subr.bf16.mxu0 0
        %1459 = vmatpush2.bf16.xpose.msra.mxu0 0
        %1460 = vmatprep.subr.bf16.mxu0 0
        %1461 = vmatpush2.bf16.xpose.msra.mxu0 0
        %1462 = vmatprep.subr.bf16.mxu0 0
        %1463 = vmatpush2.bf16.xpose.msra.mxu0 0
        %1464 = vmatprep.subr.bf16.mxu0 0
        %1465 = vmatpush2.bf16.xpose.msra.mxu0 0
        %1466 = vmatprep.mubr.bf16.mxu0 0
        %1467 = vmatmul.mubr.bf16.gmra.mxu0 %v1429
        %v1468 = vpop.f32.mrf.mxu0
        %v1469 = vadd.f32 0.0, %v1468
        %v1470 = vpop.f32.mrf.mxu0
        %v1471 = vpop.f32.mrf.mxu0
        %v1472 = vadd.f32 0.0, %v1471
        %v1473 = vpop.f32.mrf.mxu0
        %1474 = vdwg.mxu0
        %v1476 = vsel %vm1427, %v1376, 0
        %v1479 = vsel %vm1427, %v1400, 0
        %1481 = vmatprep.subr.bf16.mxu0 0
        %1482 = vmatpush1.bf16.xpose.msra.mxu0 0
        %1483 = vmatprep.subr.bf16.mxu0 0
        %1484 = vmatpush1.bf16.xpose.msra.mxu0 0
        %1485 = vmatprep.subr.bf16.mxu0 0
        %1486 = vmatpush1.bf16.xpose.msra.mxu0 0
        %1487 = vmatprep.subr.bf16.mxu0 0
        %1488 = vmatpush1.bf16.xpose.msra.mxu0 0
        %1489 = vmatprep.subr.bf16.mxu0 0
        %1490 = vmatpush1.bf16.xpose.msra.mxu0 0
        %1491 = vmatprep.subr.bf16.mxu0 0
        %1492 = vmatpush1.bf16.xpose.msra.mxu0 0
        %1493 = vmatprep.subr.bf16.mxu0 0
        %1494 = vmatpush1.bf16.xpose.msra.mxu0 0
        %1495 = vmatprep.subr.bf16.mxu0 0
        %1496 = vmatpush1.bf16.xpose.msra.mxu0 %v1479
        %1497 = vmatprep.subr.bf16.mxu0 0
        %1498 = vmatpush2.bf16.xpose.msra.mxu0 0
        %1499 = vmatprep.subr.bf16.mxu0 0
        %1500 = vmatpush2.bf16.xpose.msra.mxu0 0
        %1501 = vmatprep.subr.bf16.mxu0 0
        %1502 = vmatpush2.bf16.xpose.msra.mxu0 0
        %1503 = vmatprep.subr.bf16.mxu0 0
        %1504 = vmatpush2.bf16.xpose.msra.mxu0 0
        %1505 = vmatprep.subr.bf16.mxu0 0
        %1506 = vmatpush2.bf16.xpose.msra.mxu0 0
        %1507 = vmatprep.subr.bf16.mxu0 0
        %1508 = vmatpush2.bf16.xpose.msra.mxu0 0
        %1509 = vmatprep.subr.bf16.mxu0 0
        %1510 = vmatpush2.bf16.xpose.msra.mxu0 0
        %1511 = vmatprep.subr.bf16.mxu0 0
        %1512 = vmatpush2.bf16.xpose.msra.mxu0 0
        %1513 = vmatprep.mubr.bf16.mxu0 0
        %1514 = vmatmul.mubr.bf16.gmra.mxu0 %v1476
        %v1515 = vpop.f32.mrf.mxu0
        %v1516 = vadd.f32 0.0, %v1515
        %v1517 = vpop.f32.mrf.mxu0
        %v1518 = vpop.f32.mrf.mxu0
        %v1519 = vadd.f32 0.0, %v1518
        %v1520 = vpop.f32.mrf.mxu0
        %1521 = vdwg.mxu0
        %v1523 = vsel %vm1427, %v1377, 0
        %v1526 = vsel %vm1427, %v1401, 0
        %1528 = vmatprep.subr.bf16.mxu0 0
        %1529 = vmatpush1.bf16.xpose.msra.mxu0 0
        %1530 = vmatprep.subr.bf16.mxu0 0
        %1531 = vmatpush1.bf16.xpose.msra.mxu0 0
        %1532 = vmatprep.subr.bf16.mxu0 0
        %1533 = vmatpush1.bf16.xpose.msra.mxu0 0
        %1534 = vmatprep.subr.bf16.mxu0 0
        %1535 = vmatpush1.bf16.xpose.msra.mxu0 0
        %1536 = vmatprep.subr.bf16.mxu0 0
        %1537 = vmatpush1.bf16.xpose.msra.mxu0 0
        %1538 = vmatprep.subr.bf16.mxu0 0
        %1539 = vmatpush1.bf16.xpose.msra.mxu0 0
        %1540 = vmatprep.subr.bf16.mxu0 0
        %1541 = vmatpush1.bf16.xpose.msra.mxu0 0
        %1542 = vmatprep.subr.bf16.mxu0 0
        %1543 = vmatpush1.bf16.xpose.msra.mxu0 %v1526
        %1544 = vmatprep.subr.bf16.mxu0 0
        %1545 = vmatpush2.bf16.xpose.msra.mxu0 0
        %1546 = vmatprep.subr.bf16.mxu0 0
        %1547 = vmatpush2.bf16.xpose.msra.mxu0 0
        %1548 = vmatprep.subr.bf16.mxu0 0
        %1549 = vmatpush2.bf16.xpose.msra.mxu0 0
        %1550 = vmatprep.subr.bf16.mxu0 0
        %1551 = vmatpush2.bf16.xpose.msra.mxu0 0
        %1552 = vmatprep.subr.bf16.mxu0 0
        %1553 = vmatpush2.bf16.xpose.msra.mxu0 0
        %1554 = vmatprep.subr.bf16.mxu0 0
        %1555 = vmatpush2.bf16.xpose.msra.mxu0 0
        %1556 = vmatprep.subr.bf16.mxu0 0
        %1557 = vmatpush2.bf16.xpose.msra.mxu0 0
        %1558 = vmatprep.subr.bf16.mxu0 0
        %1559 = vmatpush2.bf16.xpose.msra.mxu0 0
        %1560 = vmatprep.mubr.bf16.mxu0 0
        %1561 = vmatmul.mubr.bf16.gmra.mxu0 %v1523
        %v1562 = vpop.f32.mrf.mxu0
        %v1563 = vadd.f32 0.0, %v1562
        %v1564 = vpop.f32.mrf.mxu0
        %v1565 = vpop.f32.mrf.mxu0
        %v1566 = vadd.f32 0.0, %v1565
        %v1567 = vpop.f32.mrf.mxu0
        %1568 = vdwg.mxu0
        %v1570 = vsel %vm1427, %v1378, 0
        %v1573 = vsel %vm1427, %v1402, 0
        %1575 = vmatprep.subr.bf16.mxu0 0
        %1576 = vmatpush1.bf16.xpose.msra.mxu0 0
        %1577 = vmatprep.subr.bf16.mxu0 0
        %1578 = vmatpush1.bf16.xpose.msra.mxu0 0
        %1579 = vmatprep.subr.bf16.mxu0 0
        %1580 = vmatpush1.bf16.xpose.msra.mxu0 0
        %1581 = vmatprep.subr.bf16.mxu0 0
        %1582 = vmatpush1.bf16.xpose.msra.mxu0 0
        %1583 = vmatprep.subr.bf16.mxu0 0
        %1584 = vmatpush1.bf16.xpose.msra.mxu0 0
        %1585 = vmatprep.subr.bf16.mxu0 0
        %1586 = vmatpush1.bf16.xpose.msra.mxu0 0
        %1587 = vmatprep.subr.bf16.mxu0 0
        %1588 = vmatpush1.bf16.xpose.msra.mxu0 0
        %1589 = vmatprep.subr.bf16.mxu0 0
        %1590 = vmatpush1.bf16.xpose.msra.mxu0 %v1573
        %1591 = vmatprep.subr.bf16.mxu0 0
        %1592 = vmatpush2.bf16.xpose.msra.mxu0 0
        %1593 = vmatprep.subr.bf16.mxu0 0
        %1594 = vmatpush2.bf16.xpose.msra.mxu0 0
        %1595 = vmatprep.subr.bf16.mxu0 0
        %1596 = vmatpush2.bf16.xpose.msra.mxu0 0
        %1597 = vmatprep.subr.bf16.mxu0 0
        %1598 = vmatpush2.bf16.xpose.msra.mxu0 0
        %1599 = vmatprep.subr.bf16.mxu0 0
        %1600 = vmatpush2.bf16.xpose.msra.mxu0 0
        %1601 = vmatprep.subr.bf16.mxu0 0
        %1602 = vmatpush2.bf16.xpose.msra.mxu0 0
        %1603 = vmatprep.subr.bf16.mxu0 0
        %1604 = vmatpush2.bf16.xpose.msra.mxu0 0
        %1605 = vmatprep.subr.bf16.mxu0 0
        %1606 = vmatpush2.bf16.xpose.msra.mxu0 0
        %1607 = vmatprep.mubr.bf16.mxu0 0
        %1608 = vmatmul.mubr.bf16.gmra.mxu0 %v1570
        %v1609 = vpop.f32.mrf.mxu0
        %v1610 = vadd.f32 0.0, %v1609
        %v1611 = vpop.f32.mrf.mxu0
        %v1612 = vpop.f32.mrf.mxu0
        %v1613 = vadd.f32 0.0, %v1612
        %v1614 = vpop.f32.mrf.mxu0
        %1615 = vdwg.mxu0
        %v1616 = vmul.f32 %v1469, 0.35355338
        %v1617 = vmul.f32 %v1472, 0.35355338
        %v1618 = vmul.f32 %v1516, 0.35355338
        %v1619 = vmul.f32 %v1519, 0.35355338
        %v1620 = vmul.f32 %v1563, 0.35355338
        %v1621 = vmul.f32 %v1566, 0.35355338
        %v1622 = vmul.f32 %v1610, 0.35355338
        %v1623 = vmul.f32 %v1613, 0.35355338
        %v1625 = vlaneseq
        %v1626 = vshrl.u32 %v1625, 7
        %v1627 = vsub.s32 0, %v1626
        %v1628 = vrot.slane %v1208, %v1627
        %v1630 = vadd.f32 %v1616, %v1628
        %v1631 = vadd.f32 %v1617, %v1628
        %v1632 = vadd.f32 %v1618, %v1628
        %v1633 = vadd.f32 %v1619, %v1628
        %v1634 = vadd.f32 %v1620, %v1628
        %v1635 = vadd.f32 %v1621, %v1628
        %v1636 = vadd.f32 %v1622, %v1628
        %v1637 = vadd.f32 %v1623, %v1628
        %v1638 = vsel %vm1145, %v1630, -inf
        %1639 = vmax.xlane.f32.xlu0 %v1638
        %v1640 = vpop.xlane.xlu0 %1639
        %v1641 = vsel %vm1145, %v1631, -inf
        %1642 = vmax.xlane.f32.xlu0 %v1641
        %v1643 = vpop.xlane.xlu0 %1642
        %v1644 = vsel %vm1145, %v1632, -inf
        %1645 = vmax.xlane.f32.xlu0 %v1644
        %v1646 = vpop.xlane.xlu0 %1645
        %v1647 = vsel %vm1145, %v1633, -inf
        %1648 = vmax.xlane.f32.xlu0 %v1647
        %v1649 = vpop.xlane.xlu0 %1648
        %v1650 = vsel %vm1145, %v1634, -inf
        %1651 = vmax.xlane.f32.xlu0 %v1650
        %v1652 = vpop.xlane.xlu0 %1651
        %v1653 = vsel %vm1145, %v1635, -inf
        %1654 = vmax.xlane.f32.xlu0 %v1653
        %v1655 = vpop.xlane.xlu0 %1654
        %v1656 = vsel %vm1145, %v1636, -inf
        %1657 = vmax.xlane.f32.xlu0 %v1656
        %v1658 = vpop.xlane.xlu0 %1657
        %v1659 = vsel %vm1145, %v1637, -inf
        %1660 = vmax.xlane.f32.xlu0 %v1659
        %v1661 = vpop.xlane.xlu0 %1660
        %v1662 = vsub.f32 %v1630, %v1640
        %v1663 = vsub.f32 %v1631, %v1643
        %v1664 = vsub.f32 %v1632, %v1646
        %v1665 = vsub.f32 %v1633, %v1649
        %v1666 = vsub.f32 %v1634, %v1652
        %v1667 = vsub.f32 %v1635, %v1655
        %v1668 = vsub.f32 %v1636, %v1658
        %v1669 = vsub.f32 %v1637, %v1661
        %v1670 = vmul.f32 %v1662, 1.442695
        %v1671 = vpow.pop %v1670
        %v1672 = vmul.f32 %v1663, 1.442695
        %v1673 = vpow.pop %v1672
        %v1674 = vmul.f32 %v1664, 1.442695
        %v1675 = vpow.pop %v1674
        %v1676 = vmul.f32 %v1665, 1.442695
        %v1677 = vpow.pop %v1676
        %v1678 = vmul.f32 %v1666, 1.442695
        %v1679 = vpow.pop %v1678
        %v1680 = vmul.f32 %v1667, 1.442695
        %v1681 = vpow.pop %v1680
        %v1682 = vmul.f32 %v1668, 1.442695
        %v1683 = vpow.pop %v1682
        %v1684 = vmul.f32 %v1669, 1.442695
        %v1685 = vpow.pop %v1684
        %v1686 = vsel %vm1145, %v1671, 0.0
        %1687 = vadd.xlane.f32.xlu0 %v1686
        %v1688 = vpop.xlane.xlu0 %1687
        %v1689 = vsel %vm1145, %v1673, 0.0
        %1690 = vadd.xlane.f32.xlu0 %v1689
        %v1691 = vpop.xlane.xlu0 %1690
        %v1692 = vsel %vm1145, %v1675, 0.0
        %1693 = vadd.xlane.f32.xlu0 %v1692
        %v1694 = vpop.xlane.xlu0 %1693
        %v1695 = vsel %vm1145, %v1677, 0.0
        %1696 = vadd.xlane.f32.xlu0 %v1695
        %v1697 = vpop.xlane.xlu0 %1696
        %v1698 = vsel %vm1145, %v1679, 0.0
        %1699 = vadd.xlane.f32.xlu0 %v1698
        %v1700 = vpop.xlane.xlu0 %1699
        %v1701 = vsel %vm1145, %v1681, 0.0
        %1702 = vadd.xlane.f32.xlu0 %v1701
        %v1703 = vpop.xlane.xlu0 %1702
        %v1704 = vsel %vm1145, %v1683, 0.0
        %1705 = vadd.xlane.f32.xlu0 %v1704
        %v1706 = vpop.xlane.xlu0 %1705
        %v1707 = vsel %vm1145, %v1685, 0.0
        %1708 = vadd.xlane.f32.xlu0 %v1707
        %v1709 = vpop.xlane.xlu0 %1708
        %v1710 = vrcp.pop %v1688
        %v1711 = vrcp.pop %v1691
        %v1712 = vrcp.pop %v1694
        %v1713 = vrcp.pop %v1697
        %v1714 = vrcp.pop %v1700
        %v1715 = vrcp.pop %v1703
        %v1716 = vrcp.pop %v1706
        %v1717 = vrcp.pop %v1709
        %v1718 = vmul.f32 %v1671, %v1710
        %v1719 = vmul.f32 %v1673, %v1711
        %v1720 = vmul.f32 %v1675, %v1712
        %v1721 = vmul.f32 %v1677, %v1713
        %v1722 = vmul.f32 %v1679, %v1714
        %v1723 = vmul.f32 %v1681, %v1715
        %v1724 = vmul.f32 %v1683, %v1716
        %v1725 = vmul.f32 %v1685, %v1717
        %v1726 = vpack.c.bf16 %v1719, %v1718
        %v1727 = vpack.c.bf16 %v1721, %v1720
        %v1728 = vpack.c.bf16 %v1723, %v1722
        %v1729 = vpack.c.bf16 %v1725, %v1724
        %v1731 = vsel %vm1145, %v1726, 0
        %1733 = vmatprep.subr.bf16.mxu0 0
        %1734 = vmatpush1.bf16.msra.mxu0 0
        %1735 = vmatprep.subr.bf16.mxu0 0
        %1736 = vmatpush1.bf16.msra.mxu0 0
        %1737 = vmatprep.subr.bf16.mxu0 0
        %1738 = vmatpush1.bf16.msra.mxu0 0
        %1739 = vmatprep.subr.bf16.mxu0 0
        %1740 = vmatpush1.bf16.msra.mxu0 0
        %1741 = vmatprep.subr.bf16.mxu0 0
        %1742 = vmatpush1.bf16.msra.mxu0 0
        %1743 = vmatprep.subr.bf16.mxu0 0
        %1744 = vmatpush1.bf16.msra.mxu0 0
        %1745 = vmatprep.subr.bf16.mxu0 0
        %1746 = vmatpush1.bf16.msra.mxu0 0
        %1747 = vmatprep.subr.bf16.mxu0 0
        %1748 = vmatpush1.bf16.msra.mxu0 %v1423
        %1749 = vmatprep.subr.bf16.mxu0 0
        %1750 = vmatpush2.bf16.msra.mxu0 0
        %1751 = vmatprep.subr.bf16.mxu0 0
        %1752 = vmatpush2.bf16.msra.mxu0 0
        %1753 = vmatprep.subr.bf16.mxu0 0
        %1754 = vmatpush2.bf16.msra.mxu0 0
        %1755 = vmatprep.subr.bf16.mxu0 0
        %1756 = vmatpush2.bf16.msra.mxu0 0
        %1757 = vmatprep.subr.bf16.mxu0 0
        %1758 = vmatpush2.bf16.msra.mxu0 0
        %1759 = vmatprep.subr.bf16.mxu0 0
        %1760 = vmatpush2.bf16.msra.mxu0 0
        %1761 = vmatprep.subr.bf16.mxu0 0
        %1762 = vmatpush2.bf16.msra.mxu0 0
        %1763 = vmatprep.subr.bf16.mxu0 0
        %1764 = vmatpush2.bf16.msra.mxu0 0
        %1765 = vmatprep.mubr.bf16.mxu0 0
        %1766 = vmatmul.mubr.bf16.gmra.mxu0 %v1731
        %v1767 = vpop.f32.mrf.mxu0
        %v1768 = vadd.f32 0.0, %v1767
        %v1769 = vpop.f32.mrf.mxu0
        %v1770 = vpop.f32.mrf.mxu0
        %v1771 = vadd.f32 0.0, %v1770
        %v1772 = vpop.f32.mrf.mxu0
        %1773 = vdwg.mxu0
        %v1775 = vsel %vm1145, %v1727, 0
        %1777 = vmatprep.subr.bf16.mxu0 0
        %1778 = vmatpush1.bf16.msra.mxu0 0
        %1779 = vmatprep.subr.bf16.mxu0 0
        %1780 = vmatpush1.bf16.msra.mxu0 0
        %1781 = vmatprep.subr.bf16.mxu0 0
        %1782 = vmatpush1.bf16.msra.mxu0 0
        %1783 = vmatprep.subr.bf16.mxu0 0
        %1784 = vmatpush1.bf16.msra.mxu0 0
        %1785 = vmatprep.subr.bf16.mxu0 0
        %1786 = vmatpush1.bf16.msra.mxu0 0
        %1787 = vmatprep.subr.bf16.mxu0 0
        %1788 = vmatpush1.bf16.msra.mxu0 0
        %1789 = vmatprep.subr.bf16.mxu0 0
        %1790 = vmatpush1.bf16.msra.mxu0 0
        %1791 = vmatprep.subr.bf16.mxu0 0
        %1792 = vmatpush1.bf16.msra.mxu0 %v1424
        %1793 = vmatprep.subr.bf16.mxu0 0
        %1794 = vmatpush2.bf16.msra.mxu0 0
        %1795 = vmatprep.subr.bf16.mxu0 0
        %1796 = vmatpush2.bf16.msra.mxu0 0
        %1797 = vmatprep.subr.bf16.mxu0 0
        %1798 = vmatpush2.bf16.msra.mxu0 0
        %1799 = vmatprep.subr.bf16.mxu0 0
        %1800 = vmatpush2.bf16.msra.mxu0 0
        %1801 = vmatprep.subr.bf16.mxu0 0
        %1802 = vmatpush2.bf16.msra.mxu0 0
        %1803 = vmatprep.subr.bf16.mxu0 0
        %1804 = vmatpush2.bf16.msra.mxu0 0
        %1805 = vmatprep.subr.bf16.mxu0 0
        %1806 = vmatpush2.bf16.msra.mxu0 0
        %1807 = vmatprep.subr.bf16.mxu0 0
        %1808 = vmatpush2.bf16.msra.mxu0 0
        %1809 = vmatprep.mubr.bf16.mxu0 0
        %1810 = vmatmul.mubr.bf16.gmra.mxu0 %v1775
        %v1811 = vpop.f32.mrf.mxu0
        %v1812 = vadd.f32 0.0, %v1811
        %v1813 = vpop.f32.mrf.mxu0
        %v1814 = vpop.f32.mrf.mxu0
        %v1815 = vadd.f32 0.0, %v1814
        %v1816 = vpop.f32.mrf.mxu0
        %1817 = vdwg.mxu0
        %v1819 = vsel %vm1145, %v1728, 0
        %1821 = vmatprep.subr.bf16.mxu0 0
        %1822 = vmatpush1.bf16.msra.mxu0 0
        %1823 = vmatprep.subr.bf16.mxu0 0
        %1824 = vmatpush1.bf16.msra.mxu0 0
        %1825 = vmatprep.subr.bf16.mxu0 0
        %1826 = vmatpush1.bf16.msra.mxu0 0
        %1827 = vmatprep.subr.bf16.mxu0 0
        %1828 = vmatpush1.bf16.msra.mxu0 0
        %1829 = vmatprep.subr.bf16.mxu0 0
        %1830 = vmatpush1.bf16.msra.mxu0 0
        %1831 = vmatprep.subr.bf16.mxu0 0
        %1832 = vmatpush1.bf16.msra.mxu0 0
        %1833 = vmatprep.subr.bf16.mxu0 0
        %1834 = vmatpush1.bf16.msra.mxu0 0
        %1835 = vmatprep.subr.bf16.mxu0 0
        %1836 = vmatpush1.bf16.msra.mxu0 %v1425
        %1837 = vmatprep.subr.bf16.mxu0 0
        %1838 = vmatpush2.bf16.msra.mxu0 0
        %1839 = vmatprep.subr.bf16.mxu0 0
        %1840 = vmatpush2.bf16.msra.mxu0 0
        %1841 = vmatprep.subr.bf16.mxu0 0
        %1842 = vmatpush2.bf16.msra.mxu0 0
        %1843 = vmatprep.subr.bf16.mxu0 0
        %1844 = vmatpush2.bf16.msra.mxu0 0
        %1845 = vmatprep.subr.bf16.mxu0 0
        %1846 = vmatpush2.bf16.msra.mxu0 0
        %1847 = vmatprep.subr.bf16.mxu0 0
        %1848 = vmatpush2.bf16.msra.mxu0 0
        %1849 = vmatprep.subr.bf16.mxu0 0
        %1850 = vmatpush2.bf16.msra.mxu0 0
        %1851 = vmatprep.subr.bf16.mxu0 0
        %1852 = vmatpush2.bf16.msra.mxu0 0
        %1853 = vmatprep.mubr.bf16.mxu0 0
        %1854 = vmatmul.mubr.bf16.gmra.mxu0 %v1819
        %v1855 = vpop.f32.mrf.mxu0
        %v1856 = vadd.f32 0.0, %v1855
        %v1857 = vpop.f32.mrf.mxu0
        %v1858 = vpop.f32.mrf.mxu0
        %v1859 = vadd.f32 0.0, %v1858
        %v1860 = vpop.f32.mrf.mxu0
        %1861 = vdwg.mxu0
        %v1863 = vsel %vm1145, %v1729, 0
        %1865 = vmatprep.subr.bf16.mxu0 0
        %1866 = vmatpush1.bf16.msra.mxu0 0
        %1867 = vmatprep.subr.bf16.mxu0 0
        %1868 = vmatpush1.bf16.msra.mxu0 0
        %1869 = vmatprep.subr.bf16.mxu0 0
        %1870 = vmatpush1.bf16.msra.mxu0 0
        %1871 = vmatprep.subr.bf16.mxu0 0
        %1872 = vmatpush1.bf16.msra.mxu0 0
        %1873 = vmatprep.subr.bf16.mxu0 0
        %1874 = vmatpush1.bf16.msra.mxu0 0
        %1875 = vmatprep.subr.bf16.mxu0 0
        %1876 = vmatpush1.bf16.msra.mxu0 0
        %1877 = vmatprep.subr.bf16.mxu0 0
        %1878 = vmatpush1.bf16.msra.mxu0 0
        %1879 = vmatprep.subr.bf16.mxu0 0
        %1880 = vmatpush1.bf16.msra.mxu0 %v1426
        %1881 = vmatprep.subr.bf16.mxu0 0
        %1882 = vmatpush2.bf16.msra.mxu0 0
        %1883 = vmatprep.subr.bf16.mxu0 0
        %1884 = vmatpush2.bf16.msra.mxu0 0
        %1885 = vmatprep.subr.bf16.mxu0 0
        %1886 = vmatpush2.bf16.msra.mxu0 0
        %1887 = vmatprep.subr.bf16.mxu0 0
        %1888 = vmatpush2.bf16.msra.mxu0 0
        %1889 = vmatprep.subr.bf16.mxu0 0
        %1890 = vmatpush2.bf16.msra.mxu0 0
        %1891 = vmatprep.subr.bf16.mxu0 0
        %1892 = vmatpush2.bf16.msra.mxu0 0
        %1893 = vmatprep.subr.bf16.mxu0 0
        %1894 = vmatpush2.bf16.msra.mxu0 0
        %1895 = vmatprep.subr.bf16.mxu0 0
        %1896 = vmatpush2.bf16.msra.mxu0 0
        %1897 = vmatprep.mubr.bf16.mxu0 0
        %1898 = vmatmul.mubr.bf16.gmra.mxu0 %v1863
        %v1899 = vpop.f32.mrf.mxu0
        %v1900 = vadd.f32 0.0, %v1899
        %v1901 = vpop.f32.mrf.mxu0
        %v1902 = vpop.f32.mrf.mxu0
        %v1903 = vadd.f32 0.0, %v1902
        %v1904 = vpop.f32.mrf.mxu0
        %1905 = vdwg.mxu0
        %1908 = vrot.lane.b32.xlu0 %v1812, 8
        %v1909 = vpop.permute.xlu0 %1908
        %1910 = vrot.lane.b32.xlu0 %v1815, 8
        %v1911 = vpop.permute.xlu0 %1910
        %1916 = vrot.lane.b32.xlu0 %v1856, 16
        %v1917 = vpop.permute.xlu0 %1916
        %1918 = vrot.lane.b32.xlu0 %v1859, 16
        %v1919 = vpop.permute.xlu0 %1918
        %1924 = vrot.lane.b32.xlu0 %v1900, 24
        %v1925 = vpop.permute.xlu0 %1924
        %1926 = vrot.lane.b32.xlu0 %v1903, 24
        %v1927 = vpop.permute.xlu0 %1926
        %v1930 = vsel %vm1427, %v1768, %v1909
        %v1931 = vsel %vm1427, %v1771, %v1911
        %v1932 = vsel %vm1145, %v1930, %v1917
        %v1933 = vsel %vm1145, %v1931, %v1919
        %vm1934 = vcmask 195584
        %v1935 = vsel %vm1934, %v1932, %v1925
        %v1936 = vsel %vm1934, %v1933, %v1927
        %v1937 = vpack.c.bf16 %v1936, %v1935
        %v1938 = vld [vmem:[#allocation12] sm:$0xf]
        %v1939 = vld [vmem:[#allocation12 + $0x4] sm:$0xf]
        %v1940 = vld [vmem:[#allocation12 + $0x8] sm:$0xf]
        %v1941 = vld [vmem:[#allocation12 + $0xc] sm:$0xf]
        %v1942 = vld [vmem:[#allocation14] sm:$0x1]
        %v1944 = vlaneseq
        %v1945 = vshrl.u32 %v1944, 7
        %v1946 = vsub.s32 0, %v1945
        %v1947 = vrot.slane %v1942, %v1946
        %v1953 = vunpack.c.l.b16 %v1938
        %v1954 = vunpack.c.l.b16 %v1939
        %v1955 = vunpack.c.l.b16 %v1940
        %v1956 = vunpack.c.l.b16 %v1941
        %v1957 = vpack.c.b16 %v1954, %v1953
        %v1958 = vpack.c.b16 %v1956, %v1955
        %v1962 = vsel %vm1267, %v1937, 0
        %1964 = vmatprep.subr.bf16.mxu0 0
        %1965 = vmatpush1.bf16.msra.mxu0 0
        %1966 = vmatprep.subr.bf16.mxu0 0
        %1967 = vmatpush1.bf16.msra.mxu0 0
        %1968 = vmatprep.subr.bf16.mxu0 0
        %1969 = vmatpush1.bf16.msra.mxu0 0
        %1970 = vmatprep.subr.bf16.mxu0 0
        %1971 = vmatpush1.bf16.msra.mxu0 0
        %1972 = vmatprep.subr.bf16.mxu0 0
        %1973 = vmatpush1.bf16.msra.mxu0 0
        %1974 = vmatprep.subr.bf16.mxu0 0
        %1975 = vmatpush1.bf16.msra.mxu0 0
        %1976 = vmatprep.subr.bf16.mxu0 0
        %1977 = vmatpush1.bf16.msra.mxu0 %v1958
        %1978 = vmatprep.subr.bf16.mxu0 0
        %1979 = vmatpush1.bf16.msra.mxu0 %v1957
        %1980 = vmatprep.subr.bf16.mxu0 0
        %1981 = vmatpush2.bf16.msra.mxu0 0
        %1982 = vmatprep.subr.bf16.mxu0 0
        %1983 = vmatpush2.bf16.msra.mxu0 0
        %1984 = vmatprep.subr.bf16.mxu0 0
        %1985 = vmatpush2.bf16.msra.mxu0 0
        %1986 = vmatprep.subr.bf16.mxu0 0
        %1987 = vmatpush2.bf16.msra.mxu0 0
        %1988 = vmatprep.subr.bf16.mxu0 0
        %1989 = vmatpush2.bf16.msra.mxu0 0
        %1990 = vmatprep.subr.bf16.mxu0 0
        %1991 = vmatpush2.bf16.msra.mxu0 0
        %1992 = vmatprep.subr.bf16.mxu0 0
        %1993 = vmatpush2.bf16.msra.mxu0 0
        %1994 = vmatprep.subr.bf16.mxu0 0
        %1995 = vmatpush2.bf16.msra.mxu0 0
        %1996 = vmatprep.mubr.bf16.mxu0 0
        %1997 = vmatmul.mubr.bf16.gmra.mxu0 %v1962
        %v1998 = vpop.f32.mrf.mxu0
        %v1999 = vadd.f32 %v1947, %v1998
        %v2000 = vpop.f32.mrf.mxu0
        %v2001 = vpop.f32.mrf.mxu0
        %v2002 = vadd.f32 %v1947, %v2001
        %v2003 = vpop.f32.mrf.mxu0
        %2004 = vdwg.mxu0
        %v2005 = vadd.f32 %v1206, %v1999
        %v2006 = vadd.f32 %v1207, %v2002
        %v2007 = vld [vmem:[%s23] sm:$0x1]
        %v2008 = vld [vmem:[%s25] sm:$0x1]
        %v2009 = vsel %vm1267, %v2005, 0.0
        %2010 = vadd.xlane.f32.xlu0 %v2009
        %v2011 = vpop.xlane.xlu0 %2010
        %v2012 = vsel %vm1267, %v2006, 0.0
        %2013 = vadd.xlane.f32.xlu0 %v2012
        %v2014 = vpop.xlane.xlu0 %2013
        %v2015 = vrcp.pop 32.0
        %v2016 = vmul.f32 %v2011, %v2015
        %v2017 = vmul.f32 %v2014, %v2015
        %v2018 = vsub.f32 %v2005, %v2016
        %v2019 = vsub.f32 %v2006, %v2017
        %v2020 = vmul.f32 %v2018, %v2018
        %v2021 = vmul.f32 %v2019, %v2019
        %v2022 = vsel %vm1267, %v2020, 0.0
        %2023 = vadd.xlane.f32.xlu0 %v2022
        %v2024 = vpop.xlane.xlu0 %2023
        %v2025 = vsel %vm1267, %v2021, 0.0
        %2026 = vadd.xlane.f32.xlu0 %v2025
        %v2027 = vpop.xlane.xlu0 %2026
        %v2028 = vmul.f32 %v2024, %v2015
        %v2029 = vmul.f32 %v2027, %v2015
        %v2030 = vadd.f32 %v2028, 1e-05
        %v2031 = vadd.f32 %v2029, 1e-05
        %v2032 = vrsqrt.pop %v2030
        %v2033 = vrsqrt.pop %v2031
        %v2034 = vmul.f32 %v2018, %v2032
        %v2035 = vmul.f32 %v2019, %v2033
        %v2037 = vlaneseq
        %v2038 = vshrl.u32 %v2037, 7
        %v2039 = vsub.s32 0, %v2038
        %v2040 = vrot.slane %v2007, %v2039
        %v2042 = vmul.f32 %v2034, %v2040
        %v2043 = vmul.f32 %v2035, %v2040
        %v2045 = vlaneseq
        %v2046 = vshrl.u32 %v2045, 7
        %v2047 = vsub.s32 0, %v2046
        %v2048 = vrot.slane %v2008, %v2047
        %v2050 = vadd.f32 %v2042, %v2048
        %v2051 = vadd.f32 %v2043, %v2048
        %v2052 = vpack.c.bf16 %v2051, %v2050
        %v2053 = vld [vmem:[#allocation15] sm:$0xf]
        %v2054 = vld [vmem:[#allocation15 + $0x4] sm:$0xf]
        %v2055 = vld [vmem:[#allocation15 + $0x8] sm:$0xf]
        %v2056 = vld [vmem:[#allocation15 + $0xc] sm:$0xf]
        %v2057 = vld [vmem:[%s29] sm:$0x1]
        %v2059 = vlaneseq
        %v2060 = vshrl.u32 %v2059, 7
        %v2061 = vsub.s32 0, %v2060
        %v2062 = vrot.slane %v2057, %v2061
        %v2068 = vunpack.c.l.b16 %v2053
        %v2069 = vunpack.c.l.b16 %v2054
        %v2070 = vunpack.c.l.b16 %v2055
        %v2071 = vunpack.c.l.b16 %v2056
        %v2072 = vpack.c.b16 %v2069, %v2068
        %v2073 = vpack.c.b16 %v2071, %v2070
        %v2077 = vsel %vm1267, %v2052, 0
        %2079 = vmatprep.subr.bf16.mxu0 0
        %2080 = vmatpush1.bf16.msra.mxu0 0
        %2081 = vmatprep.subr.bf16.mxu0 0
        %2082 = vmatpush1.bf16.msra.mxu0 0
        %2083 = vmatprep.subr.bf16.mxu0 0
        %2084 = vmatpush1.bf16.msra.mxu0 0
        %2085 = vmatprep.subr.bf16.mxu0 0
        %2086 = vmatpush1.bf16.msra.mxu0 0
        %2087 = vmatprep.subr.bf16.mxu0 0
        %2088 = vmatpush1.bf16.msra.mxu0 0
        %2089 = vmatprep.subr.bf16.mxu0 0
        %2090 = vmatpush1.bf16.msra.mxu0 0
        %2091 = vmatprep.subr.bf16.mxu0 0
        %2092 = vmatpush1.bf16.msra.mxu0 %v2073
        %2093 = vmatprep.subr.bf16.mxu0 0
        %2094 = vmatpush1.bf16.msra.mxu0 %v2072
        %2095 = vmatprep.subr.bf16.mxu0 0
        %2096 = vmatpush2.bf16.msra.mxu0 0
        %2097 = vmatprep.subr.bf16.mxu0 0
        %2098 = vmatpush2.bf16.msra.mxu0 0
        %2099 = vmatprep.subr.bf16.mxu0 0
        %2100 = vmatpush2.bf16.msra.mxu0 0
        %2101 = vmatprep.subr.bf16.mxu0 0
        %2102 = vmatpush2.bf16.msra.mxu0 0
        %2103 = vmatprep.subr.bf16.mxu0 0
        %2104 = vmatpush2.bf16.msra.mxu0 0
        %2105 = vmatprep.subr.bf16.mxu0 0
        %2106 = vmatpush2.bf16.msra.mxu0 0
        %2107 = vmatprep.subr.bf16.mxu0 0
        %2108 = vmatpush2.bf16.msra.mxu0 0
        %2109 = vmatprep.subr.bf16.mxu0 0
        %2110 = vmatpush2.bf16.msra.mxu0 0
        %2111 = vmatprep.mubr.bf16.mxu0 0
        %2112 = vmatmul.mubr.bf16.gmra.mxu0 %v2077
        %v2113 = vpop.f32.mrf.mxu0
        %v2114 = vadd.f32 %v2062, %v2113
        %v2115 = vpop.f32.mrf.mxu0
        %v2116 = vpop.f32.mrf.mxu0
        %v2117 = vadd.f32 %v2062, %v2116
        %v2118 = vpop.f32.mrf.mxu0
        %2119 = vdwg.mxu0
        %v2120 = vmul.f32 %v2114, 0.5
        %v2121 = vmul.f32 %v2117, 0.5
        %v2122 = vmul.f32 %v2114, 0.044715
        %v2123 = vmul.f32 %v2117, 0.044715
        %v2124 = vmul.f32 %v2122, %v2114
        %v2125 = vmul.f32 %v2123, %v2117
        %v2126 = vmul.f32 %v2124, %v2114
        %v2127 = vmul.f32 %v2125, %v2117
        %v2128 = vadd.f32 %v2114, %v2126
        %v2129 = vadd.f32 %v2117, %v2127
        %v2130 = vmul.f32 %v2128, 0.7978846
        %v2131 = vmul.f32 %v2129, 0.7978846
        %v2132 = vtanh.pop %v2130
        %v2133 = vtanh.pop %v2131
        %v2134 = vadd.f32 %v2132, 1.0
        %v2135 = vadd.f32 %v2133, 1.0
        %v2136 = vmul.f32 %v2120, %v2134
        %v2137 = vmul.f32 %v2121, %v2135
        %v2138 = vpack.c.bf16 %v2137, %v2136
        %v2139 = vld [vmem:[#allocation17] sm:$0xf]
        %v2140 = vld [vmem:[#allocation17 + $0x4] sm:$0xf]
        %v2141 = vld [vmem:[#allocation17 + $0x8] sm:$0xf]
        %v2142 = vld [vmem:[#allocation17 + $0xc] sm:$0xf]
        %v2143 = vld [vmem:[%s33] sm:$0x1]
        %v2145 = vlaneseq
        %v2146 = vshrl.u32 %v2145, 7
        %v2147 = vsub.s32 0, %v2146
        %v2148 = vrot.slane %v2143, %v2147
        %v2154 = vunpack.c.l.b16 %v2139
        %v2155 = vunpack.c.l.b16 %v2140
        %v2156 = vunpack.c.l.b16 %v2141
        %v2157 = vunpack.c.l.b16 %v2142
        %v2158 = vpack.c.b16 %v2155, %v2154
        %v2159 = vpack.c.b16 %v2157, %v2156
        %v2163 = vsel %vm1267, %v2138, 0
        %2165 = vmatprep.subr.bf16.mxu0 0
        %2166 = vmatpush1.bf16.msra.mxu0 0
        %2167 = vmatprep.subr.bf16.mxu0 0
        %2168 = vmatpush1.bf16.msra.mxu0 0
        %2169 = vmatprep.subr.bf16.mxu0 0
        %2170 = vmatpush1.bf16.msra.mxu0 0
        %2171 = vmatprep.subr.bf16.mxu0 0
        %2172 = vmatpush1.bf16.msra.mxu0 0
        %2173 = vmatprep.subr.bf16.mxu0 0
        %2174 = vmatpush1.bf16.msra.mxu0 0
        %2175 = vmatprep.subr.bf16.mxu0 0
        %2176 = vmatpush1.bf16.msra.mxu0 0
        %2177 = vmatprep.subr.bf16.mxu0 0
        %2178 = vmatpush1.bf16.msra.mxu0 %v2159
        %2179 = vmatprep.subr.bf16.mxu0 0
        %2180 = vmatpush1.bf16.msra.mxu0 %v2158
        %2181 = vmatprep.subr.bf16.mxu0 0
        %2182 = vmatpush2.bf16.msra.mxu0 0
        %2183 = vmatprep.subr.bf16.mxu0 0
        %2184 = vmatpush2.bf16.msra.mxu0 0
        %2185 = vmatprep.subr.bf16.mxu0 0
        %2186 = vmatpush2.bf16.msra.mxu0 0
        %2187 = vmatprep.subr.bf16.mxu0 0
        %2188 = vmatpush2.bf16.msra.mxu0 0
        %2189 = vmatprep.subr.bf16.mxu0 0
        %2190 = vmatpush2.bf16.msra.mxu0 0
        %2191 = vmatprep.subr.bf16.mxu0 0
        %2192 = vmatpush2.bf16.msra.mxu0 0
        %2193 = vmatprep.subr.bf16.mxu0 0
        %2194 = vmatpush2.bf16.msra.mxu0 0
        %2195 = vmatprep.subr.bf16.mxu0 0
        %2196 = vmatpush2.bf16.msra.mxu0 0
        %2197 = vmatprep.mubr.bf16.mxu0 0
        %2198 = vmatmul.mubr.bf16.gmra.mxu0 %v2163
        %v2199 = vpop.f32.mrf.mxu0
        %v2200 = vadd.f32 %v2148, %v2199
        %v2201 = vpop.f32.mrf.mxu0
        %v2202 = vpop.f32.mrf.mxu0
        %v2203 = vadd.f32 %v2148, %v2202
        %v2204 = vpop.f32.mrf.mxu0
        %2205 = vdwg.mxu0
        %v2206 = vadd.f32 %v2050, %v2200
        %v2207 = vadd.f32 %v2051, %v2203
        %v2208 = vld [vmem:[%s35] sm:$0x1]
        %v2209 = vld [vmem:[%s37] sm:$0x1]
        %v2210 = vsel %vm1267, %v2206, 0.0
        %2211 = vadd.xlane.f32.xlu0 %v2210
        %v2212 = vpop.xlane.xlu0 %2211
        %v2213 = vsel %vm1267, %v2207, 0.0
        %2214 = vadd.xlane.f32.xlu0 %v2213
        %v2215 = vpop.xlane.xlu0 %2214
        %v2216 = vmul.f32 %v2212, %v2015
        %v2217 = vmul.f32 %v2215, %v2015
        %v2218 = vsub.f32 %v2206, %v2216
        %v2219 = vsub.f32 %v2207, %v2217
        %v2220 = vmul.f32 %v2218, %v2218
        %v2221 = vmul.f32 %v2219, %v2219
        %v2222 = vsel %vm1267, %v2220, 0.0
        %2223 = vadd.xlane.f32.xlu0 %v2222
        %v2224 = vpop.xlane.xlu0 %2223
        %v2225 = vsel %vm1267, %v2221, 0.0
        %2226 = vadd.xlane.f32.xlu0 %v2225
        %v2227 = vpop.xlane.xlu0 %2226
        %v2228 = vmul.f32 %v2224, %v2015
        %v2229 = vmul.f32 %v2227, %v2015
        %v2230 = vadd.f32 %v2228, 1e-05
        %v2231 = vadd.f32 %v2229, 1e-05
        %v2232 = vrsqrt.pop %v2230
        %v2233 = vrsqrt.pop %v2231
        %v2234 = vmul.f32 %v2218, %v2232
        %v2235 = vmul.f32 %v2219, %v2233
        %v2237 = vlaneseq
        %v2238 = vshrl.u32 %v2237, 7
        %v2239 = vsub.s32 0, %v2238
        %v2240 = vrot.slane %v2208, %v2239
        %v2242 = vmul.f32 %v2234, %v2240
        %v2243 = vmul.f32 %v2235, %v2240
        %v2245 = vlaneseq
        %v2246 = vshrl.u32 %v2245, 7
        %v2247 = vsub.s32 0, %v2246
        %v2248 = vrot.slane %v2209, %v2247
        %v2250 = vadd.f32 %v2242, %v2248
        %v2251 = vadd.f32 %v2243, %v2248
        %v2252 = vpack.c.bf16 %v2251, %v2250
        %s2253 = scalar_lea.vmem %s15, 48
        %v2254 = vld [vmem:[%s2253] sm:$0xff]
        %v2255 = vld [vmem:[%s2253 + $0x8] sm:$0xf]
        %v2256 = vld [vmem:[%s2253 + $0xc] sm:$0xff]
        %v2257 = vld [vmem:[%s2253 + $0x14] sm:$0xf]
        %v2258 = vld [vmem:[%s2253 + $0x18] sm:$0xff]
        %v2259 = vld [vmem:[%s2253 + $0x20] sm:$0xf]
        %v2260 = vld [vmem:[%s2253 + $0x24] sm:$0xff]
        %v2261 = vld [vmem:[%s2253 + $0x2c] sm:$0xf]
        %s2262 = scalar_lea.vmem %s17, 3
        %v2263 = vld [vmem:[%s2262] sm:$0x7]
        %v2265 = vlaneseq
        %v2266 = vshrl.u32 %v2265, 7
        %v2267 = vsub.s32 0, %v2266
        %v2268 = vrot.slane %v2263, %v2267
        %v2269 = vlaneseq
        %v2270 = vshrl.u32 %v2269, 7
        %v2271 = vsub.s32 1, %v2270
        %v2272 = vrot.slane %v2263, %v2271
        %v2273 = vlaneseq
        %v2274 = vshrl.u32 %v2273, 7
        %v2275 = vsub.s32 2, %v2274
        %v2276 = vrot.slane %v2263, %v2275
        %v2288 = vunpack.c.l.b16 %v2254
        %v2289 = vunpack.c.h.b16 %v2254
        %v2290 = vunpack.c.l.b16 %v2255
        %v2291 = vunpack.c.l.b16 %v2256
        %v2292 = vunpack.c.h.b16 %v2256
        %v2293 = vunpack.c.l.b16 %v2257
        %v2294 = vunpack.c.l.b16 %v2258
        %v2295 = vunpack.c.h.b16 %v2258
        %v2296 = vunpack.c.l.b16 %v2259
        %v2297 = vunpack.c.l.b16 %v2260
        %v2298 = vunpack.c.h.b16 %v2260
        %v2299 = vunpack.c.l.b16 %v2261
        %v2300 = vpack.c.b16 %v2291, %v2288
        %v2301 = vpack.c.b16 %v2292, %v2289
        %v2302 = vpack.c.b16 %v2293, %v2290
        %v2303 = vpack.c.b16 %v2297, %v2294
        %v2304 = vpack.c.b16 %v2298, %v2295
        %v2305 = vpack.c.b16 %v2299, %v2296
        %v2313 = vsel %vm1267, %v2252, 0
        %2315 = vmatprep.subr.bf16.mxu0 0
        %2316 = vmatpush1.bf16.msra.mxu0 0
        %2317 = vmatprep.subr.bf16.mxu0 0
        %2318 = vmatpush1.bf16.msra.mxu0 0
        %2319 = vmatprep.subr.bf16.mxu0 0
        %2320 = vmatpush1.bf16.msra.mxu0 0
        %2321 = vmatprep.subr.bf16.mxu0 0
        %2322 = vmatpush1.bf16.msra.mxu0 0
        %2323 = vmatprep.subr.bf16.mxu0 0
        %2324 = vmatpush1.bf16.msra.mxu0 0
        %2325 = vmatprep.subr.bf16.mxu0 0
        %2326 = vmatpush1.bf16.msra.mxu0 0
        %2327 = vmatprep.subr.bf16.mxu0 %v2304
        %2328 = vmatpush1.bf16.msra.mxu0 %v2303
        %2329 = vmatprep.subr.bf16.mxu0 %v2301
        %2330 = vmatpush1.bf16.msra.mxu0 %v2300
        %2331 = vmatprep.subr.bf16.mxu0 0
        %2332 = vmatpush2.bf16.msra.mxu0 0
        %2333 = vmatprep.subr.bf16.mxu0 0
        %2334 = vmatpush2.bf16.msra.mxu0 0
        %2335 = vmatprep.subr.bf16.mxu0 0
        %2336 = vmatpush2.bf16.msra.mxu0 0
        %2337 = vmatprep.subr.bf16.mxu0 0
        %2338 = vmatpush2.bf16.msra.mxu0 0
        %2339 = vmatprep.subr.bf16.mxu0 0
        %2340 = vmatpush2.bf16.msra.mxu0 0
        %2341 = vmatprep.subr.bf16.mxu0 0
        %2342 = vmatpush2.bf16.msra.mxu0 0
        %2343 = vmatprep.subr.bf16.mxu0 0
        %2344 = vmatpush2.bf16.msra.mxu0 0
        %2345 = vmatprep.subr.bf16.mxu0 0
        %2346 = vmatpush2.bf16.msra.mxu0 0
        %2347 = vmatprep.mubr.bf16.mxu0 0
        %2348 = vmatmul.mubr.bf16.gmra.mxu0 %v2313
        %v2349 = vpop.f32.mrf.mxu0
        %v2350 = vadd.f32 %v2268, %v2349
        %v2351 = vpop.f32.mrf.mxu0
        %v2352 = vadd.f32 %v2272, %v2351
        %v2353 = vpop.f32.mrf.mxu0
        %v2354 = vadd.f32 %v2268, %v2353
        %v2355 = vpop.f32.mrf.mxu0
        %v2356 = vadd.f32 %v2272, %v2355
        %2357 = vdwg.mxu0
        %2358 = vmatprep.subr.bf16.mxu0 0
        %2359 = vmatpush1.bf16.msra.mxu0 0
        %2360 = vmatprep.subr.bf16.mxu0 0
        %2361 = vmatpush1.bf16.msra.mxu0 0
        %2362 = vmatprep.subr.bf16.mxu0 0
        %2363 = vmatpush1.bf16.msra.mxu0 0
        %2364 = vmatprep.subr.bf16.mxu0 0
        %2365 = vmatpush1.bf16.msra.mxu0 0
        %2366 = vmatprep.subr.bf16.mxu0 0
        %2367 = vmatpush1.bf16.msra.mxu0 0
        %2368 = vmatprep.subr.bf16.mxu0 0
        %2369 = vmatpush1.bf16.msra.mxu0 0
        %2370 = vmatprep.subr.bf16.mxu0 0
        %2371 = vmatpush1.bf16.msra.mxu0 %v2305
        %2372 = vmatprep.subr.bf16.mxu0 0
        %2373 = vmatpush1.bf16.msra.mxu0 %v2302
        %2374 = vmatprep.subr.bf16.mxu0 0
        %2375 = vmatpush2.bf16.msra.mxu0 0
        %2376 = vmatprep.subr.bf16.mxu0 0
        %2377 = vmatpush2.bf16.msra.mxu0 0
        %2378 = vmatprep.subr.bf16.mxu0 0
        %2379 = vmatpush2.bf16.msra.mxu0 0
        %2380 = vmatprep.subr.bf16.mxu0 0
        %2381 = vmatpush2.bf16.msra.mxu0 0
        %2382 = vmatprep.subr.bf16.mxu0 0
        %2383 = vmatpush2.bf16.msra.mxu0 0
        %2384 = vmatprep.subr.bf16.mxu0 0
        %2385 = vmatpush2.bf16.msra.mxu0 0
        %2386 = vmatprep.subr.bf16.mxu0 0
        %2387 = vmatpush2.bf16.msra.mxu0 0
        %2388 = vmatprep.subr.bf16.mxu0 0
        %2389 = vmatpush2.bf16.msra.mxu0 0
        %2390 = vmatprep.mubr.bf16.mxu0 0
        %2391 = vmatmul.mubr.bf16.gmra.mxu0 %v2313
        %v2392 = vpop.f32.mrf.mxu0
        %v2393 = vadd.f32 %v2276, %v2392
        %v2394 = vpop.f32.mrf.mxu0
        %v2395 = vpop.f32.mrf.mxu0
        %v2396 = vadd.f32 %v2276, %v2395
        %v2397 = vpop.f32.mrf.mxu0
        %2398 = vdwg.mxu0
        %2401 = vrot.lane.b32.xlu0 %v2350, 120
        %v2402 = vpop.permute.xlu0 %2401
        %2403 = vrot.lane.b32.xlu0 %v2354, 120
        %v2404 = vpop.permute.xlu0 %2403
        %2407 = vrot.lane.b32.xlu0 %v2350, 112
        %v2408 = vpop.permute.xlu0 %2407
        %2409 = vrot.lane.b32.xlu0 %v2354, 112
        %v2410 = vpop.permute.xlu0 %2409
        %2413 = vrot.lane.b32.xlu0 %v2350, 104
        %v2414 = vpop.permute.xlu0 %2413
        %2415 = vrot.lane.b32.xlu0 %v2354, 104
        %v2416 = vpop.permute.xlu0 %2415
        %v2419 = vpack.c.bf16 %v2354, %v2350
        %v2420 = vpack.c.bf16 %v2404, %v2402
        %v2421 = vpack.c.bf16 %v2410, %v2408
        %v2422 = vpack.c.bf16 %v2416, %v2414
        %2425 = vrot.lane.b32.xlu0 %v2352, 120
        %v2426 = vpop.permute.xlu0 %2425
        %2427 = vrot.lane.b32.xlu0 %v2356, 120
        %v2428 = vpop.permute.xlu0 %2427
        %2431 = vrot.lane.b32.xlu0 %v2352, 112
        %v2432 = vpop.permute.xlu0 %2431
        %2433 = vrot.lane.b32.xlu0 %v2356, 112
        %v2434 = vpop.permute.xlu0 %2433
        %2437 = vrot.lane.b32.xlu0 %v2352, 104
        %v2438 = vpop.permute.xlu0 %2437
        %2439 = vrot.lane.b32.xlu0 %v2356, 104
        %v2440 = vpop.permute.xlu0 %2439
        %v2443 = vpack.c.bf16 %v2356, %v2352
        %v2444 = vpack.c.bf16 %v2428, %v2426
        %v2445 = vpack.c.bf16 %v2434, %v2432
        %v2446 = vpack.c.bf16 %v2440, %v2438
        %2449 = vrot.lane.b32.xlu0 %v2393, 120
        %v2450 = vpop.permute.xlu0 %2449
        %2451 = vrot.lane.b32.xlu0 %v2396, 120
        %v2452 = vpop.permute.xlu0 %2451
        %2455 = vrot.lane.b32.xlu0 %v2393, 112
        %v2456 = vpop.permute.xlu0 %2455
        %2457 = vrot.lane.b32.xlu0 %v2396, 112
        %v2458 = vpop.permute.xlu0 %2457
        %2461 = vrot.lane.b32.xlu0 %v2393, 104
        %v2462 = vpop.permute.xlu0 %2461
        %2463 = vrot.lane.b32.xlu0 %v2396, 104
        %v2464 = vpop.permute.xlu0 %2463
        %v2467 = vpack.c.bf16 %v2396, %v2393
        %v2468 = vpack.c.bf16 %v2452, %v2450
        %v2469 = vpack.c.bf16 %v2458, %v2456
        %v2470 = vpack.c.bf16 %v2464, %v2462
        %v2472 = vsel %vm1427, %v2419, 0
        %v2475 = vsel %vm1427, %v2443, 0
        %2477 = vmatprep.subr.bf16.mxu0 0
        %2478 = vmatpush1.bf16.xpose.msra.mxu0 0
        %2479 = vmatprep.subr.bf16.mxu0 0
        %2480 = vmatpush1.bf16.xpose.msra.mxu0 0
        %2481 = vmatprep.subr.bf16.mxu0 0
        %2482 = vmatpush1.bf16.xpose.msra.mxu0 0
        %2483 = vmatprep.subr.bf16.mxu0 0
        %2484 = vmatpush1.bf16.xpose.msra.mxu0 0
        %2485 = vmatprep.subr.bf16.mxu0 0
        %2486 = vmatpush1.bf16.xpose.msra.mxu0 0
        %2487 = vmatprep.subr.bf16.mxu0 0
        %2488 = vmatpush1.bf16.xpose.msra.mxu0 0
        %2489 = vmatprep.subr.bf16.mxu0 0
        %2490 = vmatpush1.bf16.xpose.msra.mxu0 0
        %2491 = vmatprep.subr.bf16.mxu0 0
        %2492 = vmatpush1.bf16.xpose.msra.mxu0 %v2475
        %2493 = vmatprep.subr.bf16.mxu0 0
        %2494 = vmatpush2.bf16.xpose.msra.mxu0 0
        %2495 = vmatprep.subr.bf16.mxu0 0
        %2496 = vmatpush2.bf16.xpose.msra.mxu0 0
        %2497 = vmatprep.subr.bf16.mxu0 0
        %2498 = vmatpush2.bf16.xpose.msra.mxu0 0
        %2499 = vmatprep.subr.bf16.mxu0 0
        %2500 = vmatpush2.bf16.xpose.msra.mxu0 0
        %2501 = vmatprep.subr.bf16.mxu0 0
        %2502 = vmatpush2.bf16.xpose.msra.mxu0 0
        %2503 = vmatprep.subr.bf16.mxu0 0
        %2504 = vmatpush2.bf16.xpose.msra.mxu0 0
        %2505 = vmatprep.subr.bf16.mxu0 0
        %2506 = vmatpush2.bf16.xpose.msra.mxu0 0
        %2507 = vmatprep.subr.bf16.mxu0 0
        %2508 = vmatpush2.bf16.xpose.msra.mxu0 0
        %2509 = vmatprep.mubr.bf16.mxu0 0
        %2510 = vmatmul.mubr.bf16.gmra.mxu0 %v2472
        %v2511 = vpop.f32.mrf.mxu0
        %v2512 = vadd.f32 0.0, %v2511
        %v2513 = vpop.f32.mrf.mxu0
        %v2514 = vpop.f32.mrf.mxu0
        %v2515 = vadd.f32 0.0, %v2514
        %v2516 = vpop.f32.mrf.mxu0
        %2517 = vdwg.mxu0
        %v2519 = vsel %vm1427, %v2420, 0
        %v2522 = vsel %vm1427, %v2444, 0
        %2524 = vmatprep.subr.bf16.mxu0 0
        %2525 = vmatpush1.bf16.xpose.msra.mxu0 0
        %2526 = vmatprep.subr.bf16.mxu0 0
        %2527 = vmatpush1.bf16.xpose.msra.mxu0 0
        %2528 = vmatprep.subr.bf16.mxu0 0
        %2529 = vmatpush1.bf16.xpose.msra.mxu0 0
        %2530 = vmatprep.subr.bf16.mxu0 0
        %2531 = vmatpush1.bf16.xpose.msra.mxu0 0
        %2532 = vmatprep.subr.bf16.mxu0 0
        %2533 = vmatpush1.bf16.xpose.msra.mxu0 0
        %2534 = vmatprep.subr.bf16.mxu0 0
        %2535 = vmatpush1.bf16.xpose.msra.mxu0 0
        %2536 = vmatprep.subr.bf16.mxu0 0
        %2537 = vmatpush1.bf16.xpose.msra.mxu0 0
        %2538 = vmatprep.subr.bf16.mxu0 0
        %2539 = vmatpush1.bf16.xpose.msra.mxu0 %v2522
        %2540 = vmatprep.subr.bf16.mxu0 0
        %2541 = vmatpush2.bf16.xpose.msra.mxu0 0
        %2542 = vmatprep.subr.bf16.mxu0 0
        %2543 = vmatpush2.bf16.xpose.msra.mxu0 0
        %2544 = vmatprep.subr.bf16.mxu0 0
        %2545 = vmatpush2.bf16.xpose.msra.mxu0 0
        %2546 = vmatprep.subr.bf16.mxu0 0
        %2547 = vmatpush2.bf16.xpose.msra.mxu0 0
        %2548 = vmatprep.subr.bf16.mxu0 0
        %2549 = vmatpush2.bf16.xpose.msra.mxu0 0
        %2550 = vmatprep.subr.bf16.mxu0 0
        %2551 = vmatpush2.bf16.xpose.msra.mxu0 0
        %2552 = vmatprep.subr.bf16.mxu0 0
        %2553 = vmatpush2.bf16.xpose.msra.mxu0 0
        %2554 = vmatprep.subr.bf16.mxu0 0
        %2555 = vmatpush2.bf16.xpose.msra.mxu0 0
        %2556 = vmatprep.mubr.bf16.mxu0 0
        %2557 = vmatmul.mubr.bf16.gmra.mxu0 %v2519
        %v2558 = vpop.f32.mrf.mxu0
        %v2559 = vadd.f32 0.0, %v2558
        %v2560 = vpop.f32.mrf.mxu0
        %v2561 = vpop.f32.mrf.mxu0
        %v2562 = vadd.f32 0.0, %v2561
        %v2563 = vpop.f32.mrf.mxu0
        %2564 = vdwg.mxu0
        %v2566 = vsel %vm1427, %v2421, 0
        %v2569 = vsel %vm1427, %v2445, 0
        %2571 = vmatprep.subr.bf16.mxu0 0
        %2572 = vmatpush1.bf16.xpose.msra.mxu0 0
        %2573 = vmatprep.subr.bf16.mxu0 0
        %2574 = vmatpush1.bf16.xpose.msra.mxu0 0
        %2575 = vmatprep.subr.bf16.mxu0 0
        %2576 = vmatpush1.bf16.xpose.msra.mxu0 0
        %2577 = vmatprep.subr.bf16.mxu0 0
        %2578 = vmatpush1.bf16.xpose.msra.mxu0 0
        %2579 = vmatprep.subr.bf16.mxu0 0
        %2580 = vmatpush1.bf16.xpose.msra.mxu0 0
        %2581 = vmatprep.subr.bf16.mxu0 0
        %2582 = vmatpush1.bf16.xpose.msra.mxu0 0
        %2583 = vmatprep.subr.bf16.mxu0 0
        %2584 = vmatpush1.bf16.xpose.msra.mxu0 0
        %2585 = vmatprep.subr.bf16.mxu0 0
        %2586 = vmatpush1.bf16.xpose.msra.mxu0 %v2569
        %2587 = vmatprep.subr.bf16.mxu0 0
        %2588 = vmatpush2.bf16.xpose.msra.mxu0 0
        %2589 = vmatprep.subr.bf16.mxu0 0
        %2590 = vmatpush2.bf16.xpose.msra.mxu0 0
        %2591 = vmatprep.subr.bf16.mxu0 0
        %2592 = vmatpush2.bf16.xpose.msra.mxu0 0
        %2593 = vmatprep.subr.bf16.mxu0 0
        %2594 = vmatpush2.bf16.xpose.msra.mxu0 0
        %2595 = vmatprep.subr.bf16.mxu0 0
        %2596 = vmatpush2.bf16.xpose.msra.mxu0 0
        %2597 = vmatprep.subr.bf16.mxu0 0
        %2598 = vmatpush2.bf16.xpose.msra.mxu0 0
        %2599 = vmatprep.subr.bf16.mxu0 0
        %2600 = vmatpush2.bf16.xpose.msra.mxu0 0
        %2601 = vmatprep.subr.bf16.mxu0 0
        %2602 = vmatpush2.bf16.xpose.msra.mxu0 0
        %2603 = vmatprep.mubr.bf16.mxu0 0
        %2604 = vmatmul.mubr.bf16.gmra.mxu0 %v2566
        %v2605 = vpop.f32.mrf.mxu0
        %v2606 = vadd.f32 0.0, %v2605
        %v2607 = vpop.f32.mrf.mxu0
        %v2608 = vpop.f32.mrf.mxu0
        %v2609 = vadd.f32 0.0, %v2608
        %v2610 = vpop.f32.mrf.mxu0
        %2611 = vdwg.mxu0
        %v2613 = vsel %vm1427, %v2422, 0
        %v2616 = vsel %vm1427, %v2446, 0
        %2618 = vmatprep.subr.bf16.mxu0 0
        %2619 = vmatpush1.bf16.xpose.msra.mxu0 0
        %2620 = vmatprep.subr.bf16.mxu0 0
        %2621 = vmatpush1.bf16.xpose.msra.mxu0 0
        %2622 = vmatprep.subr.bf16.mxu0 0
        %2623 = vmatpush1.bf16.xpose.msra.mxu0 0
        %2624 = vmatprep.subr.bf16.mxu0 0
        %2625 = vmatpush1.bf16.xpose.msra.mxu0 0
        %2626 = vmatprep.subr.bf16.mxu0 0
        %2627 = vmatpush1.bf16.xpose.msra.mxu0 0
        %2628 = vmatprep.subr.bf16.mxu0 0
        %2629 = vmatpush1.bf16.xpose.msra.mxu0 0
        %2630 = vmatprep.subr.bf16.mxu0 0
        %2631 = vmatpush1.bf16.xpose.msra.mxu0 0
        %2632 = vmatprep.subr.bf16.mxu0 0
        %2633 = vmatpush1.bf16.xpose.msra.mxu0 %v2616
        %2634 = vmatprep.subr.bf16.mxu0 0
        %2635 = vmatpush2.bf16.xpose.msra.mxu0 0
        %2636 = vmatprep.subr.bf16.mxu0 0
        %2637 = vmatpush2.bf16.xpose.msra.mxu0 0
        %2638 = vmatprep.subr.bf16.mxu0 0
        %2639 = vmatpush2.bf16.xpose.msra.mxu0 0
        %2640 = vmatprep.subr.bf16.mxu0 0
        %2641 = vmatpush2.bf16.xpose.msra.mxu0 0
        %2642 = vmatprep.subr.bf16.mxu0 0
        %2643 = vmatpush2.bf16.xpose.msra.mxu0 0
        %2644 = vmatprep.subr.bf16.mxu0 0
        %2645 = vmatpush2.bf16.xpose.msra.mxu0 0
        %2646 = vmatprep.subr.bf16.mxu0 0
        %2647 = vmatpush2.bf16.xpose.msra.mxu0 0
        %2648 = vmatprep.subr.bf16.mxu0 0
        %2649 = vmatpush2.bf16.xpose.msra.mxu0 0
        %2650 = vmatprep.mubr.bf16.mxu0 0
        %2651 = vmatmul.mubr.bf16.gmra.mxu0 %v2613
        %v2652 = vpop.f32.mrf.mxu0
        %v2653 = vadd.f32 0.0, %v2652
        %v2654 = vpop.f32.mrf.mxu0
        %v2655 = vpop.f32.mrf.mxu0
        %v2656 = vadd.f32 0.0, %v2655
        %v2657 = vpop.f32.mrf.mxu0
        %2658 = vdwg.mxu0
        %v2659 = vmul.f32 %v2512, 0.35355338
        %v2660 = vmul.f32 %v2515, 0.35355338
        %v2661 = vmul.f32 %v2559, 0.35355338
        %v2662 = vmul.f32 %v2562, 0.35355338
        %v2663 = vmul.f32 %v2606, 0.35355338
        %v2664 = vmul.f32 %v2609, 0.35355338
        %v2665 = vmul.f32 %v2653, 0.35355338
        %v2666 = vmul.f32 %v2656, 0.35355338
        %v2667 = vadd.f32 %v2659, %v1628
        %v2668 = vadd.f32 %v2660, %v1628
        %v2669 = vadd.f32 %v2661, %v1628
        %v2670 = vadd.f32 %v2662, %v1628
        %v2671 = vadd.f32 %v2663, %v1628
        %v2672 = vadd.f32 %v2664, %v1628
        %v2673 = vadd.f32 %v2665, %v1628
        %v2674 = vadd.f32 %v2666, %v1628
        %v2675 = vsel %vm1145, %v2667, -inf
        %2676 = vmax.xlane.f32.xlu0 %v2675
        %v2677 = vpop.xlane.xlu0 %2676
        %v2678 = vsel %vm1145, %v2668, -inf
        %2679 = vmax.xlane.f32.xlu0 %v2678
        %v2680 = vpop.xlane.xlu0 %2679
        %v2681 = vsel %vm1145, %v2669, -inf
        %2682 = vmax.xlane.f32.xlu0 %v2681
        %v2683 = vpop.xlane.xlu0 %2682
        %v2684 = vsel %vm1145, %v2670, -inf
        %2685 = vmax.xlane.f32.xlu0 %v2684
        %v2686 = vpop.xlane.xlu0 %2685
        %v2687 = vsel %vm1145, %v2671, -inf
        %2688 = vmax.xlane.f32.xlu0 %v2687
        %v2689 = vpop.xlane.xlu0 %2688
        %v2690 = vsel %vm1145, %v2672, -inf
        %2691 = vmax.xlane.f32.xlu0 %v2690
        %v2692 = vpop.xlane.xlu0 %2691
        %v2693 = vsel %vm1145, %v2673, -inf
        %2694 = vmax.xlane.f32.xlu0 %v2693
        %v2695 = vpop.xlane.xlu0 %2694
        %v2696 = vsel %vm1145, %v2674, -inf
        %2697 = vmax.xlane.f32.xlu0 %v2696
        %v2698 = vpop.xlane.xlu0 %2697
        %v2699 = vsub.f32 %v2667, %v2677
        %v2700 = vsub.f32 %v2668, %v2680
        %v2701 = vsub.f32 %v2669, %v2683
        %v2702 = vsub.f32 %v2670, %v2686
        %v2703 = vsub.f32 %v2671, %v2689
        %v2704 = vsub.f32 %v2672, %v2692
        %v2705 = vsub.f32 %v2673, %v2695
        %v2706 = vsub.f32 %v2674, %v2698
        %v2707 = vmul.f32 %v2699, 1.442695
        %v2708 = vpow.pop %v2707
        %v2709 = vmul.f32 %v2700, 1.442695
        %v2710 = vpow.pop %v2709
        %v2711 = vmul.f32 %v2701, 1.442695
        %v2712 = vpow.pop %v2711
        %v2713 = vmul.f32 %v2702, 1.442695
        %v2714 = vpow.pop %v2713
        %v2715 = vmul.f32 %v2703, 1.442695
        %v2716 = vpow.pop %v2715
        %v2717 = vmul.f32 %v2704, 1.442695
        %v2718 = vpow.pop %v2717
        %v2719 = vmul.f32 %v2705, 1.442695
        %v2720 = vpow.pop %v2719
        %v2721 = vmul.f32 %v2706, 1.442695
        %v2722 = vpow.pop %v2721
        %v2723 = vsel %vm1145, %v2708, 0.0
        %2724 = vadd.xlane.f32.xlu0 %v2723
        %v2725 = vpop.xlane.xlu0 %2724
        %v2726 = vsel %vm1145, %v2710, 0.0
        %2727 = vadd.xlane.f32.xlu0 %v2726
        %v2728 = vpop.xlane.xlu0 %2727
        %v2729 = vsel %vm1145, %v2712, 0.0
        %2730 = vadd.xlane.f32.xlu0 %v2729
        %v2731 = vpop.xlane.xlu0 %2730
        %v2732 = vsel %vm1145, %v2714, 0.0
        %2733 = vadd.xlane.f32.xlu0 %v2732
        %v2734 = vpop.xlane.xlu0 %2733
        %v2735 = vsel %vm1145, %v2716, 0.0
        %2736 = vadd.xlane.f32.xlu0 %v2735
        %v2737 = vpop.xlane.xlu0 %2736
        %v2738 = vsel %vm1145, %v2718, 0.0
        %2739 = vadd.xlane.f32.xlu0 %v2738
        %v2740 = vpop.xlane.xlu0 %2739
        %v2741 = vsel %vm1145, %v2720, 0.0
        %2742 = vadd.xlane.f32.xlu0 %v2741
        %v2743 = vpop.xlane.xlu0 %2742
        %v2744 = vsel %vm1145, %v2722, 0.0
        %2745 = vadd.xlane.f32.xlu0 %v2744
        %v2746 = vpop.xlane.xlu0 %2745
        %v2747 = vrcp.pop %v2725
        %v2748 = vrcp.pop %v2728
        %v2749 = vrcp.pop %v2731
        %v2750 = vrcp.pop %v2734
        %v2751 = vrcp.pop %v2737
        %v2752 = vrcp.pop %v2740
        %v2753 = vrcp.pop %v2743
        %v2754 = vrcp.pop %v2746
        %v2755 = vmul.f32 %v2708, %v2747
        %v2756 = vmul.f32 %v2710, %v2748
        %v2757 = vmul.f32 %v2712, %v2749
        %v2758 = vmul.f32 %v2714, %v2750
        %v2759 = vmul.f32 %v2716, %v2751
        %v2760 = vmul.f32 %v2718, %v2752
        %v2761 = vmul.f32 %v2720, %v2753
        %v2762 = vmul.f32 %v2722, %v2754
        %v2763 = vpack.c.bf16 %v2756, %v2755
        %v2764 = vpack.c.bf16 %v2758, %v2757
        %v2765 = vpack.c.bf16 %v2760, %v2759
        %v2766 = vpack.c.bf16 %v2762, %v2761
        %v2768 = vsel %vm1145, %v2763, 0
        %2770 = vmatprep.subr.bf16.mxu0 0
        %2771 = vmatpush1.bf16.msra.mxu0 0
        %2772 = vmatprep.subr.bf16.mxu0 0
        %2773 = vmatpush1.bf16.msra.mxu0 0
        %2774 = vmatprep.subr.bf16.mxu0 0
        %2775 = vmatpush1.bf16.msra.mxu0 0
        %2776 = vmatprep.subr.bf16.mxu0 0
        %2777 = vmatpush1.bf16.msra.mxu0 0
        %2778 = vmatprep.subr.bf16.mxu0 0
        %2779 = vmatpush1.bf16.msra.mxu0 0
        %2780 = vmatprep.subr.bf16.mxu0 0
        %2781 = vmatpush1.bf16.msra.mxu0 0
        %2782 = vmatprep.subr.bf16.mxu0 0
        %2783 = vmatpush1.bf16.msra.mxu0 0
        %2784 = vmatprep.subr.bf16.mxu0 0
        %2785 = vmatpush1.bf16.msra.mxu0 %v2467
        %2786 = vmatprep.subr.bf16.mxu0 0
        %2787 = vmatpush2.bf16.msra.mxu0 0
        %2788 = vmatprep.subr.bf16.mxu0 0
        %2789 = vmatpush2.bf16.msra.mxu0 0
        %2790 = vmatprep.subr.bf16.mxu0 0
        %2791 = vmatpush2.bf16.msra.mxu0 0
        %2792 = vmatprep.subr.bf16.mxu0 0
        %2793 = vmatpush2.bf16.msra.mxu0 0
        %2794 = vmatprep.subr.bf16.mxu0 0
        %2795 = vmatpush2.bf16.msra.mxu0 0
        %2796 = vmatprep.subr.bf16.mxu0 0
        %2797 = vmatpush2.bf16.msra.mxu0 0
        %2798 = vmatprep.subr.bf16.mxu0 0
        %2799 = vmatpush2.bf16.msra.mxu0 0
        %2800 = vmatprep.subr.bf16.mxu0 0
        %2801 = vmatpush2.bf16.msra.mxu0 0
        %2802 = vmatprep.mubr.bf16.mxu0 0
        %2803 = vmatmul.mubr.bf16.gmra.mxu0 %v2768
        %v2804 = vpop.f32.mrf.mxu0
        %v2805 = vadd.f32 0.0, %v2804
        %v2806 = vpop.f32.mrf.mxu0
        %v2807 = vpop.f32.mrf.mxu0
        %v2808 = vadd.f32 0.0, %v2807
        %v2809 = vpop.f32.mrf.mxu0
        %2810 = vdwg.mxu0
        %v2812 = vsel %vm1145, %v2764, 0
        %2814 = vmatprep.subr.bf16.mxu0 0
        %2815 = vmatpush1.bf16.msra.mxu0 0
        %2816 = vmatprep.subr.bf16.mxu0 0
        %2817 = vmatpush1.bf16.msra.mxu0 0
        %2818 = vmatprep.subr.bf16.mxu0 0
        %2819 = vmatpush1.bf16.msra.mxu0 0
        %2820 = vmatprep.subr.bf16.mxu0 0
        %2821 = vmatpush1.bf16.msra.mxu0 0
        %2822 = vmatprep.subr.bf16.mxu0 0
        %2823 = vmatpush1.bf16.msra.mxu0 0
        %2824 = vmatprep.subr.bf16.mxu0 0
        %2825 = vmatpush1.bf16.msra.mxu0 0
        %2826 = vmatprep.subr.bf16.mxu0 0
        %2827 = vmatpush1.bf16.msra.mxu0 0
        %2828 = vmatprep.subr.bf16.mxu0 0
        %2829 = vmatpush1.bf16.msra.mxu0 %v2468
        %2830 = vmatprep.subr.bf16.mxu0 0
        %2831 = vmatpush2.bf16.msra.mxu0 0
        %2832 = vmatprep.subr.bf16.mxu0 0
        %2833 = vmatpush2.bf16.msra.mxu0 0
        %2834 = vmatprep.subr.bf16.mxu0 0
        %2835 = vmatpush2.bf16.msra.mxu0 0
        %2836 = vmatprep.subr.bf16.mxu0 0
        %2837 = vmatpush2.bf16.msra.mxu0 0
        %2838 = vmatprep.subr.bf16.mxu0 0
        %2839 = vmatpush2.bf16.msra.mxu0 0
        %2840 = vmatprep.subr.bf16.mxu0 0
        %2841 = vmatpush2.bf16.msra.mxu0 0
        %2842 = vmatprep.subr.bf16.mxu0 0
        %2843 = vmatpush2.bf16.msra.mxu0 0
        %2844 = vmatprep.subr.bf16.mxu0 0
        %2845 = vmatpush2.bf16.msra.mxu0 0
        %2846 = vmatprep.mubr.bf16.mxu0 0
        %2847 = vmatmul.mubr.bf16.gmra.mxu0 %v2812
        %v2848 = vpop.f32.mrf.mxu0
        %v2849 = vadd.f32 0.0, %v2848
        %v2850 = vpop.f32.mrf.mxu0
        %v2851 = vpop.f32.mrf.mxu0
        %v2852 = vadd.f32 0.0, %v2851
        %v2853 = vpop.f32.mrf.mxu0
        %2854 = vdwg.mxu0
        %v2856 = vsel %vm1145, %v2765, 0
        %2858 = vmatprep.subr.bf16.mxu0 0
        %2859 = vmatpush1.bf16.msra.mxu0 0
        %2860 = vmatprep.subr.bf16.mxu0 0
        %2861 = vmatpush1.bf16.msra.mxu0 0
        %2862 = vmatprep.subr.bf16.mxu0 0
        %2863 = vmatpush1.bf16.msra.mxu0 0
        %2864 = vmatprep.subr.bf16.mxu0 0
        %2865 = vmatpush1.bf16.msra.mxu0 0
        %2866 = vmatprep.subr.bf16.mxu0 0
        %2867 = vmatpush1.bf16.msra.mxu0 0
        %2868 = vmatprep.subr.bf16.mxu0 0
        %2869 = vmatpush1.bf16.msra.mxu0 0
        %2870 = vmatprep.subr.bf16.mxu0 0
        %2871 = vmatpush1.bf16.msra.mxu0 0
        %2872 = vmatprep.subr.bf16.mxu0 0
        %2873 = vmatpush1.bf16.msra.mxu0 %v2469
        %2874 = vmatprep.subr.bf16.mxu0 0
        %2875 = vmatpush2.bf16.msra.mxu0 0
        %2876 = vmatprep.subr.bf16.mxu0 0
        %2877 = vmatpush2.bf16.msra.mxu0 0
        %2878 = vmatprep.subr.bf16.mxu0 0
        %2879 = vmatpush2.bf16.msra.mxu0 0
        %2880 = vmatprep.subr.bf16.mxu0 0
        %2881 = vmatpush2.bf16.msra.mxu0 0
        %2882 = vmatprep.subr.bf16.mxu0 0
        %2883 = vmatpush2.bf16.msra.mxu0 0
        %2884 = vmatprep.subr.bf16.mxu0 0
        %2885 = vmatpush2.bf16.msra.mxu0 0
        %2886 = vmatprep.subr.bf16.mxu0 0
        %2887 = vmatpush2.bf16.msra.mxu0 0
        %2888 = vmatprep.subr.bf16.mxu0 0
        %2889 = vmatpush2.bf16.msra.mxu0 0
        %2890 = vmatprep.mubr.bf16.mxu0 0
        %2891 = vmatmul.mubr.bf16.gmra.mxu0 %v2856
        %v2892 = vpop.f32.mrf.mxu0
        %v2893 = vadd.f32 0.0, %v2892
        %v2894 = vpop.f32.mrf.mxu0
        %v2895 = vpop.f32.mrf.mxu0
        %v2896 = vadd.f32 0.0, %v2895
        %v2897 = vpop.f32.mrf.mxu0
        %2898 = vdwg.mxu0
        %v2900 = vsel %vm1145, %v2766, 0
        %2902 = vmatprep.subr.bf16.mxu0 0
        %2903 = vmatpush1.bf16.msra.mxu0 0
        %2904 = vmatprep.subr.bf16.mxu0 0
        %2905 = vmatpush1.bf16.msra.mxu0 0
        %2906 = vmatprep.subr.bf16.mxu0 0
        %2907 = vmatpush1.bf16.msra.mxu0 0
        %2908 = vmatprep.subr.bf16.mxu0 0
        %2909 = vmatpush1.bf16.msra.mxu0 0
        %2910 = vmatprep.subr.bf16.mxu0 0
        %2911 = vmatpush1.bf16.msra.mxu0 0
        %2912 = vmatprep.subr.bf16.mxu0 0
        %2913 = vmatpush1.bf16.msra.mxu0 0
        %2914 = vmatprep.subr.bf16.mxu0 0
        %2915 = vmatpush1.bf16.msra.mxu0 0
        %2916 = vmatprep.subr.bf16.mxu0 0
        %2917 = vmatpush1.bf16.msra.mxu0 %v2470
        %2918 = vmatprep.subr.bf16.mxu0 0
        %2919 = vmatpush2.bf16.msra.mxu0 0
        %2920 = vmatprep.subr.bf16.mxu0 0
        %2921 = vmatpush2.bf16.msra.mxu0 0
        %2922 = vmatprep.subr.bf16.mxu0 0
        %2923 = vmatpush2.bf16.msra.mxu0 0
        %2924 = vmatprep.subr.bf16.mxu0 0
        %2925 = vmatpush2.bf16.msra.mxu0 0
        %2926 = vmatprep.subr.bf16.mxu0 0
        %2927 = vmatpush2.bf16.msra.mxu0 0
        %2928 = vmatprep.subr.bf16.mxu0 0
        %2929 = vmatpush2.bf16.msra.mxu0 0
        %2930 = vmatprep.subr.bf16.mxu0 0
        %2931 = vmatpush2.bf16.msra.mxu0 0
        %2932 = vmatprep.subr.bf16.mxu0 0
        %2933 = vmatpush2.bf16.msra.mxu0 0
        %2934 = vmatprep.mubr.bf16.mxu0 0
        %2935 = vmatmul.mubr.bf16.gmra.mxu0 %v2900
        %v2936 = vpop.f32.mrf.mxu0
        %v2937 = vadd.f32 0.0, %v2936
        %v2938 = vpop.f32.mrf.mxu0
        %v2939 = vpop.f32.mrf.mxu0
        %v2940 = vadd.f32 0.0, %v2939
        %v2941 = vpop.f32.mrf.mxu0
        %2942 = vdwg.mxu0
        %2945 = vrot.lane.b32.xlu0 %v2849, 8
        %v2946 = vpop.permute.xlu0 %2945
        %2947 = vrot.lane.b32.xlu0 %v2852, 8
        %v2948 = vpop.permute.xlu0 %2947
        %2953 = vrot.lane.b32.xlu0 %v2893, 16
        %v2954 = vpop.permute.xlu0 %2953
        %2955 = vrot.lane.b32.xlu0 %v2896, 16
        %v2956 = vpop.permute.xlu0 %2955
        %2961 = vrot.lane.b32.xlu0 %v2937, 24
        %v2962 = vpop.permute.xlu0 %2961
        %2963 = vrot.lane.b32.xlu0 %v2940, 24
        %v2964 = vpop.permute.xlu0 %2963
        %v2967 = vsel %vm1427, %v2805, %v2946
        %v2968 = vsel %vm1427, %v2808, %v2948
        %v2969 = vsel %vm1145, %v2967, %v2954
        %v2970 = vsel %vm1145, %v2968, %v2956
        %v2971 = vsel %vm1934, %v2969, %v2962
        %v2972 = vsel %vm1934, %v2970, %v2964
        %v2973 = vpack.c.bf16 %v2972, %v2971
        %s2974 = scalar_lea.vmem [#allocation12], 16
        %v2975 = vld [vmem:[%s2974] sm:$0xf]
        %v2976 = vld [vmem:[%s2974 + $0x4] sm:$0xf]
        %v2977 = vld [vmem:[%s2974 + $0x8] sm:$0xf]
        %v2978 = vld [vmem:[%s2974 + $0xc] sm:$0xf]
        %s2979 = scalar_lea.vmem [#allocation14], 1
        %v2980 = vld [vmem:[%s2979] sm:$0x1]
        %v2982 = vlaneseq
        %v2983 = vshrl.u32 %v2982, 7
        %v2984 = vsub.s32 0, %v2983
        %v2985 = vrot.slane %v2980, %v2984
        %v2991 = vunpack.c.l.b16 %v2975
        %v2992 = vunpack.c.l.b16 %v2976
        %v2993 = vunpack.c.l.b16 %v2977
        %v2994 = vunpack.c.l.b16 %v2978
        %v2995 = vpack.c.b16 %v2992, %v2991
        %v2996 = vpack.c.b16 %v2994, %v2993
        %v3000 = vsel %vm1267, %v2973, 0
        %3002 = vmatprep.subr.bf16.mxu0 0
        %3003 = vmatpush1.bf16.msra.mxu0 0
        %3004 = vmatprep.subr.bf16.mxu0 0
        %3005 = vmatpush1.bf16.msra.mxu0 0
        %3006 = vmatprep.subr.bf16.mxu0 0
        %3007 = vmatpush1.bf16.msra.mxu0 0
        %3008 = vmatprep.subr.bf16.mxu0 0
        %3009 = vmatpush1.bf16.msra.mxu0 0
        %3010 = vmatprep.subr.bf16.mxu0 0
        %3011 = vmatpush1.bf16.msra.mxu0 0
        %3012 = vmatprep.subr.bf16.mxu0 0
        %3013 = vmatpush1.bf16.msra.mxu0 0
        %3014 = vmatprep.subr.bf16.mxu0 0
        %3015 = vmatpush1.bf16.msra.mxu0 %v2996
        %3016 = vmatprep.subr.bf16.mxu0 0
        %3017 = vmatpush1.bf16.msra.mxu0 %v2995
        %3018 = vmatprep.subr.bf16.mxu0 0
        %3019 = vmatpush2.bf16.msra.mxu0 0
        %3020 = vmatprep.subr.bf16.mxu0 0
        %3021 = vmatpush2.bf16.msra.mxu0 0
        %3022 = vmatprep.subr.bf16.mxu0 0
        %3023 = vmatpush2.bf16.msra.mxu0 0
        %3024 = vmatprep.subr.bf16.mxu0 0
        %3025 = vmatpush2.bf16.msra.mxu0 0
        %3026 = vmatprep.subr.bf16.mxu0 0
        %3027 = vmatpush2.bf16.msra.mxu0 0
        %3028 = vmatprep.subr.bf16.mxu0 0
        %3029 = vmatpush2.bf16.msra.mxu0 0
        %3030 = vmatprep.subr.bf16.mxu0 0
        %3031 = vmatpush2.bf16.msra.mxu0 0
        %3032 = vmatprep.subr.bf16.mxu0 0
        %3033 = vmatpush2.bf16.msra.mxu0 0
        %3034 = vmatprep.mubr.bf16.mxu0 0
        %3035 = vmatmul.mubr.bf16.gmra.mxu0 %v3000
        %v3036 = vpop.f32.mrf.mxu0
        %v3037 = vadd.f32 %v2985, %v3036
        %v3038 = vpop.f32.mrf.mxu0
        %v3039 = vpop.f32.mrf.mxu0
        %v3040 = vadd.f32 %v2985, %v3039
        %v3041 = vpop.f32.mrf.mxu0
        %3042 = vdwg.mxu0
        %v3043 = vadd.f32 %v2250, %v3037
        %v3044 = vadd.f32 %v2251, %v3040
        %s3045 = scalar_lea.vmem %s23, 1
        %v3046 = vld [vmem:[%s3045] sm:$0x1]
        %s3047 = scalar_lea.vmem %s25, 1
        %v3048 = vld [vmem:[%s3047] sm:$0x1]
        %v3049 = vsel %vm1267, %v3043, 0.0
        %3050 = vadd.xlane.f32.xlu0 %v3049
        %v3051 = vpop.xlane.xlu0 %3050
        %v3052 = vsel %vm1267, %v3044, 0.0
        %3053 = vadd.xlane.f32.xlu0 %v3052
        %v3054 = vpop.xlane.xlu0 %3053
        %v3055 = vmul.f32 %v3051, %v2015
        %v3056 = vmul.f32 %v3054, %v2015
        %v3057 = vsub.f32 %v3043, %v3055
        %v3058 = vsub.f32 %v3044, %v3056
        %v3059 = vmul.f32 %v3057, %v3057
        %v3060 = vmul.f32 %v3058, %v3058
        %v3061 = vsel %vm1267, %v3059, 0.0
        %3062 = vadd.xlane.f32.xlu0 %v3061
        %v3063 = vpop.xlane.xlu0 %3062
        %v3064 = vsel %vm1267, %v3060, 0.0
        %3065 = vadd.xlane.f32.xlu0 %v3064
        %v3066 = vpop.xlane.xlu0 %3065
        %v3067 = vmul.f32 %v3063, %v2015
        %v3068 = vmul.f32 %v3066, %v2015
        %v3069 = vadd.f32 %v3067, 1e-05
        %v3070 = vadd.f32 %v3068, 1e-05
        %v3071 = vrsqrt.pop %v3069
        %v3072 = vrsqrt.pop %v3070
        %v3073 = vmul.f32 %v3057, %v3071
        %v3074 = vmul.f32 %v3058, %v3072
        %v3076 = vlaneseq
        %v3077 = vshrl.u32 %v3076, 7
        %v3078 = vsub.s32 0, %v3077
        %v3079 = vrot.slane %v3046, %v3078
        %v3081 = vmul.f32 %v3073, %v3079
        %v3082 = vmul.f32 %v3074, %v3079
        %v3084 = vlaneseq
        %v3085 = vshrl.u32 %v3084, 7
        %v3086 = vsub.s32 0, %v3085
        %v3087 = vrot.slane %v3048, %v3086
        %v3089 = vadd.f32 %v3081, %v3087
        %v3090 = vadd.f32 %v3082, %v3087
        %v3091 = vpack.c.bf16 %v3090, %v3089
        %s3092 = scalar_lea.vmem [#allocation15], 16
        %v3093 = vld [vmem:[%s3092] sm:$0xf]
        %v3094 = vld [vmem:[%s3092 + $0x4] sm:$0xf]
        %v3095 = vld [vmem:[%s3092 + $0x8] sm:$0xf]
        %v3096 = vld [vmem:[%s3092 + $0xc] sm:$0xf]
        %s3097 = scalar_lea.vmem %s29, 1
        %v3098 = vld [vmem:[%s3097] sm:$0x1]
        %v3100 = vlaneseq
        %v3101 = vshrl.u32 %v3100, 7
        %v3102 = vsub.s32 0, %v3101
        %v3103 = vrot.slane %v3098, %v3102
        %v3109 = vunpack.c.l.b16 %v3093
        %v3110 = vunpack.c.l.b16 %v3094
        %v3111 = vunpack.c.l.b16 %v3095
        %v3112 = vunpack.c.l.b16 %v3096
        %v3113 = vpack.c.b16 %v3110, %v3109
        %v3114 = vpack.c.b16 %v3112, %v3111
        %v3118 = vsel %vm1267, %v3091, 0
        %3120 = vmatprep.subr.bf16.mxu0 0
        %3121 = vmatpush1.bf16.msra.mxu0 0
        %3122 = vmatprep.subr.bf16.mxu0 0
        %3123 = vmatpush1.bf16.msra.mxu0 0
        %3124 = vmatprep.subr.bf16.mxu0 0
        %3125 = vmatpush1.bf16.msra.mxu0 0
        %3126 = vmatprep.subr.bf16.mxu0 0
        %3127 = vmatpush1.bf16.msra.mxu0 0
        %3128 = vmatprep.subr.bf16.mxu0 0
        %3129 = vmatpush1.bf16.msra.mxu0 0
        %3130 = vmatprep.subr.bf16.mxu0 0
        %3131 = vmatpush1.bf16.msra.mxu0 0
        %3132 = vmatprep.subr.bf16.mxu0 0
        %3133 = vmatpush1.bf16.msra.mxu0 %v3114
        %3134 = vmatprep.subr.bf16.mxu0 0
        %3135 = vmatpush1.bf16.msra.mxu0 %v3113
        %3136 = vmatprep.subr.bf16.mxu0 0
        %3137 = vmatpush2.bf16.msra.mxu0 0
        %3138 = vmatprep.subr.bf16.mxu0 0
        %3139 = vmatpush2.bf16.msra.mxu0 0
        %3140 = vmatprep.subr.bf16.mxu0 0
        %3141 = vmatpush2.bf16.msra.mxu0 0
        %3142 = vmatprep.subr.bf16.mxu0 0
        %3143 = vmatpush2.bf16.msra.mxu0 0
        %3144 = vmatprep.subr.bf16.mxu0 0
        %3145 = vmatpush2.bf16.msra.mxu0 0
        %3146 = vmatprep.subr.bf16.mxu0 0
        %3147 = vmatpush2.bf16.msra.mxu0 0
        %3148 = vmatprep.subr.bf16.mxu0 0
        %3149 = vmatpush2.bf16.msra.mxu0 0
        %3150 = vmatprep.subr.bf16.mxu0 0
        %3151 = vmatpush2.bf16.msra.mxu0 0
        %3152 = vmatprep.mubr.bf16.mxu0 0
        %3153 = vmatmul.mubr.bf16.gmra.mxu0 %v3118
        %v3154 = vpop.f32.mrf.mxu0
        %v3155 = vadd.f32 %v3103, %v3154
        %v3156 = vpop.f32.mrf.mxu0
        %v3157 = vpop.f32.mrf.mxu0
        %v3158 = vadd.f32 %v3103, %v3157
        %v3159 = vpop.f32.mrf.mxu0
        %3160 = vdwg.mxu0
        %v3161 = vmul.f32 %v3155, 0.5
        %v3162 = vmul.f32 %v3158, 0.5
        %v3163 = vmul.f32 %v3155, 0.044715
        %v3164 = vmul.f32 %v3158, 0.044715
        %v3165 = vmul.f32 %v3163, %v3155
        %v3166 = vmul.f32 %v3164, %v3158
        %v3167 = vmul.f32 %v3165, %v3155
        %v3168 = vmul.f32 %v3166, %v3158
        %v3169 = vadd.f32 %v3155, %v3167
        %v3170 = vadd.f32 %v3158, %v3168
        %v3171 = vmul.f32 %v3169, 0.7978846
        %v3172 = vmul.f32 %v3170, 0.7978846
        %v3173 = vtanh.pop %v3171
        %v3174 = vtanh.pop %v3172
        %v3175 = vadd.f32 %v3173, 1.0
        %v3176 = vadd.f32 %v3174, 1.0
        %v3177 = vmul.f32 %v3161, %v3175
        %v3178 = vmul.f32 %v3162, %v3176
        %v3179 = vpack.c.bf16 %v3178, %v3177
        %s3180 = scalar_lea.vmem [#allocation17], 16
        %v3181 = vld [vmem:[%s3180] sm:$0xf]
        %v3182 = vld [vmem:[%s3180 + $0x4] sm:$0xf]
        %v3183 = vld [vmem:[%s3180 + $0x8] sm:$0xf]
        %v3184 = vld [vmem:[%s3180 + $0xc] sm:$0xf]
        %s3185 = scalar_lea.vmem %s33, 1
        %v3186 = vld [vmem:[%s3185] sm:$0x1]
        %v3188 = vlaneseq
        %v3189 = vshrl.u32 %v3188, 7
        %v3190 = vsub.s32 0, %v3189
        %v3191 = vrot.slane %v3186, %v3190
        %v3197 = vunpack.c.l.b16 %v3181
        %v3198 = vunpack.c.l.b16 %v3182
        %v3199 = vunpack.c.l.b16 %v3183
        %v3200 = vunpack.c.l.b16 %v3184
        %v3201 = vpack.c.b16 %v3198, %v3197
        %v3202 = vpack.c.b16 %v3200, %v3199
        %v3206 = vsel %vm1267, %v3179, 0
        %3208 = vmatprep.subr.bf16.mxu0 0
        %3209 = vmatpush1.bf16.msra.mxu0 0
        %3210 = vmatprep.subr.bf16.mxu0 0
        %3211 = vmatpush1.bf16.msra.mxu0 0
        %3212 = vmatprep.subr.bf16.mxu0 0
        %3213 = vmatpush1.bf16.msra.mxu0 0
        %3214 = vmatprep.subr.bf16.mxu0 0
        %3215 = vmatpush1.bf16.msra.mxu0 0
        %3216 = vmatprep.subr.bf16.mxu0 0
        %3217 = vmatpush1.bf16.msra.mxu0 0
        %3218 = vmatprep.subr.bf16.mxu0 0
        %3219 = vmatpush1.bf16.msra.mxu0 0
        %3220 = vmatprep.subr.bf16.mxu0 0
        %3221 = vmatpush1.bf16.msra.mxu0 %v3202
        %3222 = vmatprep.subr.bf16.mxu0 0
        %3223 = vmatpush1.bf16.msra.mxu0 %v3201
        %3224 = vmatprep.subr.bf16.mxu0 0
        %3225 = vmatpush2.bf16.msra.mxu0 0
        %3226 = vmatprep.subr.bf16.mxu0 0
        %3227 = vmatpush2.bf16.msra.mxu0 0
        %3228 = vmatprep.subr.bf16.mxu0 0
        %3229 = vmatpush2.bf16.msra.mxu0 0
        %3230 = vmatprep.subr.bf16.mxu0 0
        %3231 = vmatpush2.bf16.msra.mxu0 0
        %3232 = vmatprep.subr.bf16.mxu0 0
        %3233 = vmatpush2.bf16.msra.mxu0 0
        %3234 = vmatprep.subr.bf16.mxu0 0
        %3235 = vmatpush2.bf16.msra.mxu0 0
        %3236 = vmatprep.subr.bf16.mxu0 0
        %3237 = vmatpush2.bf16.msra.mxu0 0
        %3238 = vmatprep.subr.bf16.mxu0 0
        %3239 = vmatpush2.bf16.msra.mxu0 0
        %3240 = vmatprep.mubr.bf16.mxu0 0
        %3241 = vmatmul.mubr.bf16.gmra.mxu0 %v3206
        %v3242 = vpop.f32.mrf.mxu0
        %v3243 = vadd.f32 %v3191, %v3242
        %v3244 = vpop.f32.mrf.mxu0
        %v3245 = vpop.f32.mrf.mxu0
        %v3246 = vadd.f32 %v3191, %v3245
        %v3247 = vpop.f32.mrf.mxu0
        %3248 = vdwg.mxu0
        %v3249 = vadd.f32 %v3089, %v3243
        %v3250 = vadd.f32 %v3090, %v3246
        %s3251 = scalar_lea.vmem %s35, 1
        %v3252 = vld [vmem:[%s3251] sm:$0x1]
        %s3253 = scalar_lea.vmem %s37, 1
        %v3254 = vld [vmem:[%s3253] sm:$0x1]
        %v3255 = vsel %vm1267, %v3249, 0.0
        %3256 = vadd.xlane.f32.xlu0 %v3255
        %v3257 = vpop.xlane.xlu0 %3256
        %v3258 = vsel %vm1267, %v3250, 0.0
        %3259 = vadd.xlane.f32.xlu0 %v3258
        %v3260 = vpop.xlane.xlu0 %3259
        %v3261 = vmul.f32 %v3257, %v2015
        %v3262 = vmul.f32 %v3260, %v2015
        %v3263 = vsub.f32 %v3249, %v3261
        %v3264 = vsub.f32 %v3250, %v3262
        %v3265 = vmul.f32 %v3263, %v3263
        %v3266 = vmul.f32 %v3264, %v3264
        %v3267 = vsel %vm1267, %v3265, 0.0
        %3268 = vadd.xlane.f32.xlu0 %v3267
        %v3269 = vpop.xlane.xlu0 %3268
        %v3270 = vsel %vm1267, %v3266, 0.0
        %3271 = vadd.xlane.f32.xlu0 %v3270
        %v3272 = vpop.xlane.xlu0 %3271
        %v3273 = vmul.f32 %v3269, %v2015
        %v3274 = vmul.f32 %v3272, %v2015
        %v3275 = vadd.f32 %v3273, 1e-05
        %v3276 = vadd.f32 %v3274, 1e-05
        %v3277 = vrsqrt.pop %v3275
        %v3278 = vrsqrt.pop %v3276
        %v3279 = vmul.f32 %v3263, %v3277
        %v3280 = vmul.f32 %v3264, %v3278
        %v3282 = vlaneseq
        %v3283 = vshrl.u32 %v3282, 7
        %v3284 = vsub.s32 0, %v3283
        %v3285 = vrot.slane %v3252, %v3284
        %v3287 = vmul.f32 %v3279, %v3285
        %v3288 = vmul.f32 %v3280, %v3285
        %v3290 = vlaneseq
        %v3291 = vshrl.u32 %v3290, 7
        %v3292 = vsub.s32 0, %v3291
        %v3293 = vrot.slane %v3254, %v3292
        %v3295 = vadd.f32 %v3287, %v3293
        %v3296 = vadd.f32 %v3288, %v3293
        %v3297 = vld [vmem:[%s39] sm:$0x1]
        %v3298 = vld [vmem:[%s41] sm:$0x1]
        %v3299 = vsel %vm1267, %v3295, 0.0
        %3300 = vadd.xlane.f32.xlu0 %v3299
        %v3301 = vpop.xlane.xlu0 %3300
        %v3302 = vsel %vm1267, %v3296, 0.0
        %3303 = vadd.xlane.f32.xlu0 %v3302
        %v3304 = vpop.xlane.xlu0 %3303
        %v3305 = vmul.f32 %v3301, %v2015
        %v3306 = vmul.f32 %v3304, %v2015
        %v3307 = vsub.f32 %v3295, %v3305
        %v3308 = vsub.f32 %v3296, %v3306
        %v3309 = vmul.f32 %v3307, %v3307
        %v3310 = vmul.f32 %v3308, %v3308
        %v3311 = vsel %vm1267, %v3309, 0.0
        %3312 = vadd.xlane.f32.xlu0 %v3311
        %v3313 = vpop.xlane.xlu0 %3312
        %v3314 = vsel %vm1267, %v3310, 0.0
        %3315 = vadd.xlane.f32.xlu0 %v3314
        %v3316 = vpop.xlane.xlu0 %3315
        %v3317 = vmul.f32 %v3313, %v2015
        %v3318 = vmul.f32 %v3316, %v2015
        %v3319 = vadd.f32 %v3317, 1e-05
        %v3320 = vadd.f32 %v3318, 1e-05
        %v3321 = vrsqrt.pop %v3319
        %v3322 = vrsqrt.pop %v3320
        %v3323 = vmul.f32 %v3307, %v3321
        %v3324 = vmul.f32 %v3308, %v3322
        %v3326 = vlaneseq
        %v3327 = vshrl.u32 %v3326, 7
        %v3328 = vsub.s32 0, %v3327
        %v3329 = vrot.slane %v3297, %v3328
        %v3331 = vmul.f32 %v3323, %v3329
        %v3332 = vmul.f32 %v3324, %v3329
        %v3334 = vlaneseq
        %v3335 = vshrl.u32 %v3334, 7
        %v3336 = vsub.s32 0, %v3335
        %v3337 = vrot.slane %v3298, %v3336
        %v3339 = vadd.f32 %v3331, %v3337
        %v3340 = vadd.f32 %v3332, %v3337
        %v3341 = vld [vmem:[#allocation8] sm:$0x1]
        %v3343 = vsel %vm1145, %v3341, 0
        %3345 = vmatprep.subr.mxu0 0.0
        %3346 = vmatpush1.msra.mxu0 0.0
        %3347 = vmatprep.subr.mxu0 0.0
        %3348 = vmatpush1.msra.mxu0 0.0
        %3349 = vmatprep.subr.mxu0 0.0
        %3350 = vmatpush1.msra.mxu0 0.0
        %3351 = vmatprep.subr.mxu0 0.0
        %3352 = vmatpush1.msra.mxu0 0.0
        %3353 = vmatprep.subr.mxu0 0.0
        %3354 = vmatpush1.msra.mxu0 0.0
        %3355 = vmatprep.subr.mxu0 0.0
        %3356 = vmatpush1.msra.mxu0 0.0
        %3357 = vmatprep.subr.mxu0 0.0
        %3358 = vmatpush1.msra.mxu0 0.0
        %3359 = vmatprep.subr.mxu0 0.0
        %3360 = vmatpush1.msra.mxu0 0.0
        %3361 = vmatprep.subr.mxu0 0.0
        %3362 = vmatpush1.msra.mxu0 0.0
        %3363 = vmatprep.subr.mxu0 0.0
        %3364 = vmatpush1.msra.mxu0 0.0
        %3365 = vmatprep.subr.mxu0 0.0
        %3366 = vmatpush1.msra.mxu0 0.0
        %3367 = vmatprep.subr.mxu0 0.0
        %3368 = vmatpush1.msra.mxu0 0.0
        %3369 = vmatprep.subr.mxu0 0.0
        %3370 = vmatpush1.msra.mxu0 0.0
        %3371 = vmatprep.subr.mxu0 0.0
        %3372 = vmatpush1.msra.mxu0 0.0
        %3373 = vmatprep.subr.mxu0 0.0
        %3374 = vmatpush1.msra.mxu0 %v3340
        %3375 = vmatprep.subr.mxu0 0.0
        %3376 = vmatpush1.msra.mxu0 %v3339
        %3377 = vmatprep.subr.mxu0 0.0
        %3378 = vmatpush2.msra.mxu0 0.0
        %3379 = vmatprep.subr.mxu0 0.0
        %3380 = vmatpush2.msra.mxu0 0.0
        %3381 = vmatprep.subr.mxu0 0.0
        %3382 = vmatpush2.msra.mxu0 0.0
        %3383 = vmatprep.subr.mxu0 0.0
        %3384 = vmatpush2.msra.mxu0 0.0
        %3385 = vmatprep.subr.mxu0 0.0
        %3386 = vmatpush2.msra.mxu0 0.0
        %3387 = vmatprep.subr.mxu0 0.0
        %3388 = vmatpush2.msra.mxu0 0.0
        %3389 = vmatprep.subr.mxu0 0.0
        %3390 = vmatpush2.msra.mxu0 0.0
        %3391 = vmatprep.subr.mxu0 0.0
        %3392 = vmatpush2.msra.mxu0 0.0
        %3393 = vmatprep.subr.mxu0 0.0
        %3394 = vmatpush2.msra.mxu0 0.0
        %3395 = vmatprep.subr.mxu0 0.0
        %3396 = vmatpush2.msra.mxu0 0.0
        %3397 = vmatprep.subr.mxu0 0.0
        %3398 = vmatpush2.msra.mxu0 0.0
        %3399 = vmatprep.subr.mxu0 0.0
        %3400 = vmatpush2.msra.mxu0 0.0
        %3401 = vmatprep.subr.mxu0 0.0
        %3402 = vmatpush2.msra.mxu0 0.0
        %3403 = vmatprep.subr.mxu0 0.0
        %3404 = vmatpush2.msra.mxu0 0.0
        %3405 = vmatprep.subr.mxu0 0.0
        %3406 = vmatpush2.msra.mxu0 0.0
        %3407 = vmatprep.subr.mxu0 0.0
        %3408 = vmatpush2.msra.mxu0 0.0
        %3409 = vmatprep.mubr.f32.mxu0 0.0
        %3410 = vmatmul.mubr.f32.gmra.mxu0 %v3343
        %v3411 = vpop.f32.mrf.mxu0
        %v3412 = vadd.f32 0.0, %v3411
        %v3413 = vpop.f32.mrf.mxu0
        %3414 = vdwg.mxu0
        %v3415 = vsel %vm1267, %v3412, 0.0
        %3416 = vst [vmem:[%s1108] sm:$0x1] %v3415
        %v3417 = vld [vmem:[#allocation18] sm:$0xff]
        %v3418 = vld [vmem:[#allocation18 + $0x8] sm:$0xff]
        %v3419 = vld [vmem:[#allocation18 + $0x10] sm:$0xff]
        %v3420 = vld [vmem:[#allocation18 + $0x18] sm:$0xff]
        %v3421 = vld [vmem:[%s45] sm:$0x1]
        %v3423 = vsel %vm1267, %v3412, 0
        %3425 = vmatprep.subr.mxu0 0.0
        %3426 = vmatpush1.msra.mxu0 0.0
        %3427 = vmatprep.subr.mxu0 0.0
        %3428 = vmatpush1.msra.mxu0 0.0
        %3429 = vmatprep.subr.mxu0 0.0
        %3430 = vmatpush1.msra.mxu0 0.0
        %3431 = vmatprep.subr.mxu0 0.0
        %3432 = vmatpush1.msra.mxu0 0.0
        %3433 = vmatprep.subr.mxu0 0.0
        %3434 = vmatpush1.msra.mxu0 0.0
        %3435 = vmatprep.subr.mxu0 0.0
        %3436 = vmatpush1.msra.mxu0 0.0
        %3437 = vmatprep.subr.mxu0 0.0
        %3438 = vmatpush1.msra.mxu0 0.0
        %3439 = vmatprep.subr.mxu0 0.0
        %3440 = vmatpush1.msra.mxu0 0.0
        %3441 = vmatprep.subr.mxu0 0.0
        %3442 = vmatpush1.msra.mxu0 0.0
        %3443 = vmatprep.subr.mxu0 0.0
        %3444 = vmatpush1.msra.mxu0 0.0
        %3445 = vmatprep.subr.mxu0 0.0
        %3446 = vmatpush1.msra.mxu0 0.0
        %3447 = vmatprep.subr.mxu0 0.0
        %3448 = vmatpush1.msra.mxu0 0.0
        %3449 = vmatprep.subr.mxu0 0.0
        %3450 = vmatpush1.msra.mxu0 %v3420
        %3451 = vmatprep.subr.mxu0 0.0
        %3452 = vmatpush1.msra.mxu0 %v3419
        %3453 = vmatprep.subr.mxu0 0.0
        %3454 = vmatpush1.msra.mxu0 %v3418
        %3455 = vmatprep.subr.mxu0 0.0
        %3456 = vmatpush1.msra.mxu0 %v3417
        %3457 = vmatprep.subr.mxu0 0.0
        %3458 = vmatpush2.msra.mxu0 0.0
        %3459 = vmatprep.subr.mxu0 0.0
        %3460 = vmatpush2.msra.mxu0 0.0
        %3461 = vmatprep.subr.mxu0 0.0
        %3462 = vmatpush2.msra.mxu0 0.0
        %3463 = vmatprep.subr.mxu0 0.0
        %3464 = vmatpush2.msra.mxu0 0.0
        %3465 = vmatprep.subr.mxu0 0.0
        %3466 = vmatpush2.msra.mxu0 0.0
        %3467 = vmatprep.subr.mxu0 0.0
        %3468 = vmatpush2.msra.mxu0 0.0
        %3469 = vmatprep.subr.mxu0 0.0
        %3470 = vmatpush2.msra.mxu0 0.0
        %3471 = vmatprep.subr.mxu0 0.0
        %3472 = vmatpush2.msra.mxu0 0.0
        %3473 = vmatprep.subr.mxu0 0.0
        %3474 = vmatpush2.msra.mxu0 0.0
        %3475 = vmatprep.subr.mxu0 0.0
        %3476 = vmatpush2.msra.mxu0 0.0
        %3477 = vmatprep.subr.mxu0 0.0
        %3478 = vmatpush2.msra.mxu0 0.0
        %3479 = vmatprep.subr.mxu0 0.0
        %3480 = vmatpush2.msra.mxu0 0.0
        %3481 = vmatprep.subr.mxu0 0.0
        %3482 = vmatpush2.msra.mxu0 0.0
        %3483 = vmatprep.subr.mxu0 0.0
        %3484 = vmatpush2.msra.mxu0 0.0
        %3485 = vmatprep.subr.mxu0 0.0
        %3486 = vmatpush2.msra.mxu0 0.0
        %3487 = vmatprep.subr.mxu0 0.0
        %3488 = vmatpush2.msra.mxu0 0.0
        %3489 = vmatprep.mubr.f32.mxu0 0.0
        %3490 = vmatmul.mubr.f32.gmra.mxu0 %v3423
        %v3491 = vpop.f32.mrf.mxu0
        %v3492 = vadd.f32 %v3421, %v3491
        %v3493 = vpop.f32.mrf.mxu0
        %3494 = vdwg.mxu0
        %v3495 = vmax.f32 %v3492, 0.0
        %v3496 = vld [vmem:[#allocation20] sm:$0xff]
        %v3497 = vld [vmem:[#allocation20 + $0x8] sm:$0xff]
        %v3498 = vld [vmem:[#allocation20 + $0x10] sm:$0xff]
        %v3499 = vld [vmem:[#allocation20 + $0x18] sm:$0xff]
        %v3500 = vld [vmem:[#allocation20 + $0x20] sm:$0xff]
        %v3501 = vld [vmem:[#allocation20 + $0x28] sm:$0xff]
        %v3502 = vld [vmem:[#allocation20 + $0x30] sm:$0xff]
        %v3503 = vld [vmem:[#allocation20 + $0x38] sm:$0xff]
        %v3504 = vld [vmem:[#allocation20 + $0x40] sm:$0xff]
        %v3505 = vld [vmem:[#allocation20 + $0x48] sm:$0xff]
        %v3506 = vld [vmem:[#allocation20 + $0x50] sm:$0xff]
        %v3507 = vld [vmem:[#allocation20 + $0x58] sm:$0xff]
        %v3508 = vld [vmem:[#allocation20 + $0x60] sm:$0xff]
        %v3509 = vld [vmem:[#allocation20 + $0x68] sm:$0xff]
        %v3510 = vld [vmem:[#allocation20 + $0x70] sm:$0xff]
        %v3511 = vld [vmem:[#allocation20 + $0x78] sm:$0xff]
        %v3512 = vld [vmem:[%s49] sm:$0x1]
        %3513 = vmatprep.subr.mxu0 0.0
        %3514 = vmatpush1.msra.mxu0 %v3511
        %3515 = vmatprep.subr.mxu0 0.0
        %3516 = vmatpush1.msra.mxu0 %v3510
        %3517 = vmatprep.subr.mxu0 0.0
        %3518 = vmatpush1.msra.mxu0 %v3509
        %3519 = vmatprep.subr.mxu0 0.0
        %3520 = vmatpush1.msra.mxu0 %v3508
        %3521 = vmatprep.subr.mxu0 0.0
        %3522 = vmatpush1.msra.mxu0 %v3507
        %3523 = vmatprep.subr.mxu0 0.0
        %3524 = vmatpush1.msra.mxu0 %v3506
        %3525 = vmatprep.subr.mxu0 0.0
        %3526 = vmatpush1.msra.mxu0 %v3505
        %3527 = vmatprep.subr.mxu0 0.0
        %3528 = vmatpush1.msra.mxu0 %v3504
        %3529 = vmatprep.subr.mxu0 0.0
        %3530 = vmatpush1.msra.mxu0 %v3503
        %3531 = vmatprep.subr.mxu0 0.0
        %3532 = vmatpush1.msra.mxu0 %v3502
        %3533 = vmatprep.subr.mxu0 0.0
        %3534 = vmatpush1.msra.mxu0 %v3501
        %3535 = vmatprep.subr.mxu0 0.0
        %3536 = vmatpush1.msra.mxu0 %v3500
        %3537 = vmatprep.subr.mxu0 0.0
        %3538 = vmatpush1.msra.mxu0 %v3499
        %3539 = vmatprep.subr.mxu0 0.0
        %3540 = vmatpush1.msra.mxu0 %v3498
        %3541 = vmatprep.subr.mxu0 0.0
        %3542 = vmatpush1.msra.mxu0 %v3497
        %3543 = vmatprep.subr.mxu0 0.0
        %3544 = vmatpush1.msra.mxu0 %v3496
        %3545 = vmatprep.subr.mxu0 0.0
        %3546 = vmatpush2.msra.mxu0 0.0
        %3547 = vmatprep.subr.mxu0 0.0
        %3548 = vmatpush2.msra.mxu0 0.0
        %3549 = vmatprep.subr.mxu0 0.0
        %3550 = vmatpush2.msra.mxu0 0.0
        %3551 = vmatprep.subr.mxu0 0.0
        %3552 = vmatpush2.msra.mxu0 0.0
        %3553 = vmatprep.subr.mxu0 0.0
        %3554 = vmatpush2.msra.mxu0 0.0
        %3555 = vmatprep.subr.mxu0 0.0
        %3556 = vmatpush2.msra.mxu0 0.0
        %3557 = vmatprep.subr.mxu0 0.0
        %3558 = vmatpush2.msra.mxu0 0.0
        %3559 = vmatprep.subr.mxu0 0.0
        %3560 = vmatpush2.msra.mxu0 0.0
        %3561 = vmatprep.subr.mxu0 0.0
        %3562 = vmatpush2.msra.mxu0 0.0
        %3563 = vmatprep.subr.mxu0 0.0
        %3564 = vmatpush2.msra.mxu0 0.0
        %3565 = vmatprep.subr.mxu0 0.0
        %3566 = vmatpush2.msra.mxu0 0.0
        %3567 = vmatprep.subr.mxu0 0.0
        %3568 = vmatpush2.msra.mxu0 0.0
        %3569 = vmatprep.subr.mxu0 0.0
        %3570 = vmatpush2.msra.mxu0 0.0
        %3571 = vmatprep.subr.mxu0 0.0
        %3572 = vmatpush2.msra.mxu0 0.0
        %3573 = vmatprep.subr.mxu0 0.0
        %3574 = vmatpush2.msra.mxu0 0.0
        %3575 = vmatprep.subr.mxu0 0.0
        %3576 = vmatpush2.msra.mxu0 0.0
        %3577 = vmatprep.mubr.f32.mxu0 0.0
        %3578 = vmatmul.mubr.f32.gmra.mxu0 %v3495
        %v3579 = vpop.f32.mrf.mxu0
        %v3580 = vadd.f32 %v3512, %v3579
        %v3581 = vpop.f32.mrf.mxu0
        %3582 = vdwg.mxu0
        %v3583 = vmax.f32 %v3580, 0.0
        %v3584 = vld [vmem:[#allocation21] sm:$0xff]
        %v3585 = vld [vmem:[#allocation21 + $0x8] sm:$0xff]
        %v3586 = vld [vmem:[#allocation21 + $0x10] sm:$0xff]
        %v3587 = vld [vmem:[#allocation21 + $0x18] sm:$0xff]
        %v3588 = vld [vmem:[#allocation21 + $0x20] sm:$0xff]
        %v3589 = vld [vmem:[#allocation21 + $0x28] sm:$0xff]
        %v3590 = vld [vmem:[#allocation21 + $0x30] sm:$0xff]
        %v3591 = vld [vmem:[#allocation21 + $0x38] sm:$0xff]
        %v3592 = vld [vmem:[#allocation21 + $0x40] sm:$0xff]
        %v3593 = vld [vmem:[#allocation21 + $0x48] sm:$0xff]
        %v3594 = vld [vmem:[#allocation21 + $0x50] sm:$0xff]
        %v3595 = vld [vmem:[#allocation21 + $0x58] sm:$0xff]
        %v3596 = vld [vmem:[#allocation21 + $0x60] sm:$0xff]
        %v3597 = vld [vmem:[#allocation21 + $0x68] sm:$0xff]
        %v3598 = vld [vmem:[#allocation21 + $0x70] sm:$0xff]
        %v3599 = vld [vmem:[#allocation21 + $0x78] sm:$0xff]
        %v3600 = vld [vmem:[%s53] sm:$0x1]
        %3601 = vmatprep.subr.mxu0 0.0
        %3602 = vmatpush1.msra.mxu0 %v3599
        %3603 = vmatprep.subr.mxu0 0.0
        %3604 = vmatpush1.msra.mxu0 %v3598
        %3605 = vmatprep.subr.mxu0 0.0
        %3606 = vmatpush1.msra.mxu0 %v3597
        %3607 = vmatprep.subr.mxu0 0.0
        %3608 = vmatpush1.msra.mxu0 %v3596
        %3609 = vmatprep.subr.mxu0 0.0
        %3610 = vmatpush1.msra.mxu0 %v3595
        %3611 = vmatprep.subr.mxu0 0.0
        %3612 = vmatpush1.msra.mxu0 %v3594
        %3613 = vmatprep.subr.mxu0 0.0
        %3614 = vmatpush1.msra.mxu0 %v3593
        %3615 = vmatprep.subr.mxu0 0.0
        %3616 = vmatpush1.msra.mxu0 %v3592
        %3617 = vmatprep.subr.mxu0 0.0
        %3618 = vmatpush1.msra.mxu0 %v3591
        %3619 = vmatprep.subr.mxu0 0.0
        %3620 = vmatpush1.msra.mxu0 %v3590
        %3621 = vmatprep.subr.mxu0 0.0
        %3622 = vmatpush1.msra.mxu0 %v3589
        %3623 = vmatprep.subr.mxu0 0.0
        %3624 = vmatpush1.msra.mxu0 %v3588
        %3625 = vmatprep.subr.mxu0 0.0
        %3626 = vmatpush1.msra.mxu0 %v3587
        %3627 = vmatprep.subr.mxu0 0.0
        %3628 = vmatpush1.msra.mxu0 %v3586
        %3629 = vmatprep.subr.mxu0 0.0
        %3630 = vmatpush1.msra.mxu0 %v3585
        %3631 = vmatprep.subr.mxu0 0.0
        %3632 = vmatpush1.msra.mxu0 %v3584
        %3633 = vmatprep.subr.mxu0 0.0
        %3634 = vmatpush2.msra.mxu0 0.0
        %3635 = vmatprep.subr.mxu0 0.0
        %3636 = vmatpush2.msra.mxu0 0.0
        %3637 = vmatprep.subr.mxu0 0.0
        %3638 = vmatpush2.msra.mxu0 0.0
        %3639 = vmatprep.subr.mxu0 0.0
        %3640 = vmatpush2.msra.mxu0 0.0
        %3641 = vmatprep.subr.mxu0 0.0
        %3642 = vmatpush2.msra.mxu0 0.0
        %3643 = vmatprep.subr.mxu0 0.0
        %3644 = vmatpush2.msra.mxu0 0.0
        %3645 = vmatprep.subr.mxu0 0.0
        %3646 = vmatpush2.msra.mxu0 0.0
        %3647 = vmatprep.subr.mxu0 0.0
        %3648 = vmatpush2.msra.mxu0 0.0
        %3649 = vmatprep.subr.mxu0 0.0
        %3650 = vmatpush2.msra.mxu0 0.0
        %3651 = vmatprep.subr.mxu0 0.0
        %3652 = vmatpush2.msra.mxu0 0.0
        %3653 = vmatprep.subr.mxu0 0.0
        %3654 = vmatpush2.msra.mxu0 0.0
        %3655 = vmatprep.subr.mxu0 0.0
        %3656 = vmatpush2.msra.mxu0 0.0
        %3657 = vmatprep.subr.mxu0 0.0
        %3658 = vmatpush2.msra.mxu0 0.0
        %3659 = vmatprep.subr.mxu0 0.0
        %3660 = vmatpush2.msra.mxu0 0.0
        %3661 = vmatprep.subr.mxu0 0.0
        %3662 = vmatpush2.msra.mxu0 0.0
        %3663 = vmatprep.subr.mxu0 0.0
        %3664 = vmatpush2.msra.mxu0 0.0
        %3665 = vmatprep.mubr.f32.mxu0 0.0
        %3666 = vmatmul.mubr.f32.gmra.mxu0 %v3583
        %v3667 = vpop.f32.mrf.mxu0
        %v3668 = vadd.f32 %v3600, %v3667
        %v3669 = vpop.f32.mrf.mxu0
        %3670 = vdwg.mxu0
        %v3671 = vmax.f32 %v3668, 0.0
        %v3672 = vld [vmem:[%s55] sm:$0x1]
        %v3673 = vmul.f32 %v3671, %v3672
        %vm3674 = vcmask 1040384
        %v3675 = vsel %vm3674, %v3673, 0.0
        %3676 = vadd.xlane.f32.xlu0 %v3675
        %v3677 = vpop.xlane.xlu0 %3676
        %v3678 = vld [vmem:[#allocation2] sm:$0x1]
        %v3679 = vadd.f32 %v3677, %v3678
        %3681 = vset.pattern.permute.xlu0 0
        %3682 = vperm.xlu0 %3681, %v3679
        %v3683 = vpop.permute.xlu0 %3682
        %3685 = vst [vmem:[%s1125] sm:$0x1] %v3683
        %s3686 = sand.u32 %s712, 1
        %s3687 = scalar_lea.sflag [#allocation5], %s3686
        %s3688 = sand.u32 %s712, 1
        %s3689 = scalar_lea.vmem [#allocation23], %s3688
        %p3690 = scmp.lt.s32.totalorder %s85, 1
        %s3691 = scalar_select %p3690, %s85, 1
        %s3692 = scalar_lea.vmem %s61, %s3691
        // Predicated region
        $region185: #{_lambda_.1} parent=135 // pred_check
          %p3693 = pneg %p722
        $region186: #{_lambda_.1} parent=135 // pred_check_branch
          %3695 = sbr.rel (%p3693) target = $region188
        $region187: #{_lambda_.1} parent=135 // pred_region
          %s3697 = ssub.s32 16, 16
          %3698 = vsyncadd %s3687, %s3697
          %s3699 = smul.addr %s85, 16
          %s3700 = scalar_lea.hbm %s59, %s3699
          %s3702 = sshll.u32 %s3689, 4
          %s3703 = int_to_ptr.vmem [resolvable:$true] %s3702
          %3705 = dma.vmem_to_hbm [thread:$0]  %s3703, 16, %s3700, %s3687
        $region188: #{_lambda_.1} parent=135 // pred_fallthru
          _
        // Predicated region
        $region189: #{_lambda_.1} parent=135 // pred_check
          %p3706 = pneg %p748
        $region190: #{_lambda_.1} parent=135 // pred_check_branch
          %3708 = sbr.rel (%p3706) target = $region192
        $region191: #{_lambda_.1} parent=135 // pred_region
          _
        $region192: #{_lambda_.1} parent=135 // pred_fallthru
          _
      $region136: #{_lambda_.1} parent=5 // pred_fallthru
        _
      %p3709 = scmp.le.s32.totalorder 2, %s80
      // Predicated region
      $region193: #{_lambda_.1} parent=5 // pred_check
        %p3710 = pneg %p3709
      $region194: #{_lambda_.1} parent=5 // pred_check_branch
        %3712 = sbr.rel (%p3710) target = $region196
      $region195: #{_lambda_.1} parent=5 // pred_region
        %s3713 = ssub.s32 %s80, 2
        // Predicated region
        $region197: #{_lambda_.1} parent=195 // pred_check
          %p3714 = pneg %p728
        $region198: #{_lambda_.1} parent=195 // pred_check_branch
          %3716 = sbr.rel (%p3714) target = $region200
        $region199: #{_lambda_.1} parent=195 // pred_region
          %s3717 = sand.u32 %s713, 1
          %s3718 = scalar_lea.sflag [#allocation5], %s3717
          %s3719 = sand.u32 %s713, 1
          %s3720 = scalar_lea.vmem [#allocation23], %s3719
          %3721 = dma.done %s3718, 16
        $region200: #{_lambda_.1} parent=195 // pred_fallthru
          _
        // Predicated region
        $region201: #{_lambda_.1} parent=195 // pred_check
          %p3722 = pneg %p754
        $region202: #{_lambda_.1} parent=195 // pred_check_branch
          %3724 = sbr.rel (%p3722) target = $region204
        $region203: #{_lambda_.1} parent=195 // pred_region
          %p3725 = scmp.lt.s32.totalorder %s86, 1
          %s3726 = scalar_select %p3725, %s86, 1
          %s3727 = scalar_lea.vmem %s61, %s3726
        $region204: #{_lambda_.1} parent=195 // pred_fallthru
          _
      $region196: #{_lambda_.1} parent=5 // pred_fallthru
        _
    $region6: #{_lambda_.1} parent=1 // loop_footer
      %s84 = sadd.s32 1, %s80
    $region7: #{_lambda_.1} parent=1 // loop_footer_branch
      %79 = sbr.rel target = $region3
    $region8: #{_lambda_.1} parent=1 // loop_exit
      _
    %3728 = vsyncpa [#allocation4], 1
    %s3729 = scalar_lea.sflag [#allocation4], 1
    %3730 = vsyncpa %s3729, 1
    %3731 = vsyncpa [#allocation7], 1
    %3732 = vsyncpa [#allocation10], 1
    %3733 = vsyncpa [#allocation13], 1
    %3734 = vsyncpa [#allocation16], 1
    %3735 = vsyncpa [#allocation19], 1
    %3736 = vsyncpa [#allocation22], 1
    %3737 = vsyncpa [#allocation5], 1
    %s3738 = scalar_lea.sflag [#allocation5], 1
    %3739 = vsyncpa %s3738, 1

</llo_original>
